<compile_context>
chip_gen: v7x
topology: tpu7x:2x2x1
jax: 0.10.0
libtpu: 0.0.40
codegen_flags: <defaults>
</compile_context>

<pallas_src>
import jax
import jax.numpy as jnp
from jax import lax
from jax.experimental import pallas as pl
from jax.experimental.pallas import tpu as pltpu


def _round_up(x, m):
    return ((x + m - 1) // m) * m


# ---------------------------------------------------------------------------
# Fused kernel: per (batch, row-tile) block.
#   x_top / x_mid / x_bot are bf16 NHWC blocks of the SAME input tensor:
#   mid = the tile's rows, top/bot = 1-row halo fetched with clamped indices.
#   h1s_ref is a persistent VMEM scratch (tile_h+2, W+2, Cm) holding the
#   haloed, W-padded output of conv1+BN+ReLU in f32.
# ---------------------------------------------------------------------------
def bottleneck_end_kernel(x_top_ref, x_mid_ref, x_bot_ref,
                          w1_ref, s1_ref, b1_ref,
                          w2_ref, s2_ref, b2_ref,
                          w3_ref, s3_ref, b3_ref,
                          o_ref, h1s_ref):
    t = pl.program_id(1)
    n_t = pl.num_programs(1)
    _, tile_h, w, cp = x_mid_ref.shape
    cm = w1_ref.shape[1]

    w1 = w1_ref[...]
    s1 = s1_ref[...]
    b1 = b1_ref[...]

    # Zero the haloed / W-padded h1 scratch: this *is* the SAME zero padding
    # (pad columns + out-of-image halo rows).  Cheap: (tile_h+2)*(W+2)*Cm f32.
    h1s_ref[...] = jnp.zeros_like(h1s_ref)

    # ---- 1x1 conv + BN + ReLU for the tile rows (bf16 MXU, f32 epilogue) ----
    x_mid = x_mid_ref[...].reshape(tile_h * w, cp)
    h1 = jnp.dot(x_mid, w1, preferred_element_type=jnp.float32)
    h1 = jnp.maximum(h1 * s1 + b1, 0.0)
    h1s_ref[1:tile_h + 1, 1:w + 1, :] = h1.reshape(tile_h, w, cm)

    # ---- halo rows: only computed on interior tile edges; boundary edges
    #      keep the zeroed scratch row (SAME padding), no dead matmul. -------
    @pl.when(t > 0)
    def _():
        ht = jnp.dot(x_top_ref[0, 0], w1, preferred_element_type=jnp.float32)
        ht = jnp.maximum(ht * s1 + b1, 0.0)
        h1s_ref[0:1, 1:w + 1, :] = ht.reshape(1, w, cm)

    @pl.when(t < n_t - 1)
    def _():
        hb = jnp.dot(x_bot_ref[0, 0], w1, preferred_element_type=jnp.float32)
        hb = jnp.maximum(hb * s1 + b1, 0.0)
        h1s_ref[tile_h + 1:tile_h + 2, 1:w + 1, :] = hb.reshape(1, w, cm)

    # ---- 3x3 conv as 9 accumulating dots over offset windows of the scratch
    #      (no im2col buffer, no concatenates). ------------------------------
    acc = jnp.zeros((tile_h * w, cm), jnp.float32)
    k = 0
    for dy in range(3):
        for dx in range(3):
            tap = h1s_ref[dy:dy + tile_h, dx:dx + w, :]
            tap = tap.reshape(tile_h * w, cm).astype(jnp.bfloat16)
            acc = acc + jnp.dot(tap, w2_ref[k],
                                preferred_element_type=jnp.float32)
            k += 1
    h2 = jnp.maximum(acc * s2_ref[...] + b2_ref[...], 0.0).astype(jnp.bfloat16)

    # ---- 1x1 conv + BN + residual add + ReLU, single fused bf16 store ------
    h3 = jnp.dot(h2, w3_ref[...], preferred_element_type=jnp.float32)
    h3 = h3 * s3_ref[...] + b3_ref[...]
    # NOTE: residual is the bf16-cast input (documented quantization of the
    # skip path; within the verification tolerance).
    res = x_mid.astype(jnp.float32)
    out = jnp.maximum(h3 + res, 0.0)
    o_ref[...] = out.reshape(1, tile_h, w, cp).astype(o_ref.dtype)


# ---------------------------------------------------------------------------
# VMEM budgeting (generation-aware).
# ---------------------------------------------------------------------------
def _vmem_limit_bytes():
    try:
        cap = int(pltpu.get_tpu_info().vmem_capacity_bytes)
    except Exception:
        cap = 64 * 1024 * 1024          # conservative (v7x per-TC capacity)
    # ~48 MiB on v7x (64 MiB/TC), ~96 MiB on v5e/v6e (128 MiB).
    return min((cap * 3) // 4, 100 * 1024 * 1024)


def _choose_tile_h(H, W, Cp, Cm, vmem_limit=None):
    """Largest row-tile dividing H whose real VMEM footprint fits the limit."""
    if vmem_limit is None:
        vmem_limit = _vmem_limit_bytes()
    # Constant-index weight/scale blocks (double-buffered by the pipeline).
    weight_bytes = 2 * ((Cp * Cm + 9 * Cm * Cm + Cm * Cp) * 2
                        + (4 * Cm + 2 * Cp) * 4)
    budget = max(vmem_limit - weight_bytes - (4 << 20), 1 << 20)
    best = 1
    for th in range(1, H + 1):
        if H % th:
            continue
        per_step = (
            2 * th * W * Cp * 2              # double-buffered bf16 input tile
            + 2 * 2 * W * Cp * 2             # double-buffered halo rows
            + 2 * th * W * Cp * 2            # double-buffered bf16 output tile
            + (th + 2) * (W + 2) * Cm * 4    # haloed h1 scratch (f32)
            + 2 * th * W * Cm * 4            # h1 / conv2 accumulator (f32)
            + 2 * th * W * Cp * 4            # conv3 + residual temporaries
            + th * W * (Cm + Cp) * 2)        # bf16 tap / h2 temporaries
        if per_step <= budget:
            best = th
    return best


# ---------------------------------------------------------------------------
# Wrapper: NCHW in / NCHW out, matching the PyTorch module semantics.
# ---------------------------------------------------------------------------
def bottleneck_end_forward(x_nchw, params, tile_h=None):
    B, C, H, W = x_nchw.shape
    Cp, Cm = params["w1"].shape                      # padded channel dims

    # Cast to bf16 BEFORE transpose/pad to halve wrapper HBM traffic.
    x_nhwc = jnp.transpose(x_nchw.astype(jnp.bfloat16), (0, 2, 3, 1))
    if Cp != C:
        x_nhwc = jnp.pad(x_nhwc, ((0, 0), (0, 0), (0, 0), (0, Cp - C)))

    if tile_h is None:
        tile_h = _choose_tile_h(H, W, Cp, Cm)
    assert H % tile_h == 0, "tile_h must divide H"
    # TODO(synk): ragged last row-tile and W tiling for very large W.
    n_t = H // tile_h

    def mid_map(b, t):
        return (b, t, 0, 0)

    def top_map(b, t):                       # clamped halo row above the tile
        return (b, jnp.maximum(t * tile_h - 1, 0), 0, 0)

    def bot_map(b, t):                       # clamped halo row below the tile
        return (b, jnp.minimum((t + 1) * tile_h, H - 1), 0, 0)

    def w_map2(b, t):
        return (0, 0)

    def w_map3(b, t):
        return (0, 0, 0)

    in_specs = [
        pl.BlockSpec((1, 1, W, Cp), top_map),        # top halo row
        pl.BlockSpec((1, tile_h, W, Cp), mid_map),   # tile rows (also residual)
        pl.BlockSpec((1, 1, W, Cp), bot_map),        # bottom halo row
        pl.BlockSpec((Cp, Cm), w_map2),              # w1
        pl.BlockSpec((1, Cm), w_map2),               # s1
        pl.BlockSpec((1, Cm), w_map2),               # b1
        pl.BlockSpec((9, Cm, Cm), w_map3),           # w2 (one slab per tap)
        pl.BlockSpec((1, Cm), w_map2),               # s2
        pl.BlockSpec((1, Cm), w_map2),               # b2
        pl.BlockSpec((Cm, Cp), w_map2),              # w3
        pl.BlockSpec((1, Cp), w_map2),               # s3
        pl.BlockSpec((1, Cp), w_map2),               # b3
    ]
    out_spec = pl.BlockSpec((1, tile_h, W, Cp), mid_map)

    out = pl.pallas_call(
        bottleneck_end_kernel,
        out_shape=jax.ShapeDtypeStruct((B, H, W, Cp), jnp.bfloat16),
        grid=(B, n_t),
        in_specs=in_specs,
        out_specs=out_spec,
        scratch_shapes=[pltpu.VMEM((tile_h + 2, W + 2, Cm), jnp.float32)],
        compiler_params=pltpu.CompilerParams(
            dimension_semantics=("parallel", "parallel"),
            vmem_limit_bytes=_vmem_limit_bytes()),
    )(x_nhwc, x_nhwc, x_nhwc,
      params["w1"], params["s1"], params["b1"],
      params["w2"], params["s2"], params["b2"],
      params["w3"], params["s3"], params["b3"])

    out = out[..., :C]
    return jnp.transpose(out, (0, 3, 1, 2)).astype(jnp.float32)


# ---------------------------------------------------------------------------
# Parameter construction (BN folded, channels padded to 128, weights in bf16)
# + pure-JAX f32 reference for verification.
# ---------------------------------------------------------------------------
def make_params(key, C, Cm, eps=1e-5):
    ks = jax.random.split(key, 6)
    w1_oihw = 0.1 * jax.random.normal(ks[0], (Cm, C, 1, 1), jnp.float32)
    w2_oihw = 0.1 * jax.random.normal(ks[1], (Cm, Cm, 3, 3), jnp.float32)
    w3_oihw = 0.1 * jax.random.normal(ks[2], (C, Cm, 1, 1), jnp.float32)

    def bn_raw(k, ch):
        k1, k2, k3, k4 = jax.random.split(k, 4)
        gamma = 1.0 + 0.1 * jax.random.normal(k1, (ch,), jnp.float32)
        beta = 0.1 * jax.random.normal(k2, (ch,), jnp.float32)
        mean = 0.1 * jax.random.normal(k3, (ch,), jnp.float32)
        var = jax.random.uniform(k4, (ch,), jnp.float32, 0.5, 1.5)
        return gamma, beta, mean, var

    bn1, bn2, bn3 = bn_raw(ks[3], Cm), bn_raw(ks[4], Cm), bn_raw(ks[5], C)

    Cp = _round_up(C, 128)
    Cmp = _round_up(Cm, 128)

    def fold(bn, cpad):
        gamma, beta, mean, var = bn
        s = gamma / jnp.sqrt(var + eps)
        b = beta - mean * s
        s = jnp.pad(s, (0, cpad - s.shape[0])).reshape(1, cpad)
        b = jnp.pad(b, (0, cpad - b.shape[0])).reshape(1, cpad)
        return s, b

    s1, b1 = fold(bn1, Cmp)
    s2, b2 = fold(bn2, Cmp)
    s3, b3 = fold(bn3, Cp)

    def pad2(w, r, c):
        return jnp.pad(w, ((0, r - w.shape[0]), (0, c - w.shape[1])))

    w1 = pad2(w1_oihw[:, :, 0, 0].T, Cp, Cmp).astype(jnp.bfloat16)    # (Cp, Cmp)
    w2 = jnp.stack(
        [pad2(w2_oihw[:, :, dy, dx].T, Cmp, Cmp)
         for dy in range(3) for dx in range(3)],
        axis=0).astype(jnp.bfloat16)                                   # (9, Cmp, Cmp)
    w3 = pad2(w3_oihw[:, :, 0, 0].T, Cmp, Cp).astype(jnp.bfloat16)    # (Cmp, Cp)

    kernel_params = {"w1": w1, "w2": w2, "w3": w3,
                     "s1": s1, "b1": b1, "s2": s2, "b2": b2,
                     "s3": s3, "b3": b3}
    raw_params = {"w1": w1_oihw, "w2": w2_oihw, "w3": w3_oihw,
                  "bn1": bn1, "bn2": bn2, "bn3": bn3, "eps": eps}
    return kernel_params, raw_params


def reference_forward(x_nchw, raw):
    eps = raw["eps"]

    def bn(y, p):
        gamma, beta, mean, var = p
        inv = (gamma / jnp.sqrt(var + eps))[None, :, None, None]
        return (y - mean[None, :, None, None]) * inv + beta[None, :, None, None]

    dn = ("NCHW", "OIHW", "NCHW")
    y = lax.conv_general_dilated(x_nchw, raw["w1"], (1, 1), "VALID",
                                 dimension_numbers=dn)
    y = jax.nn.relu(bn(y, raw["bn1"]))
    y = lax.conv_general_dilated(y, raw["w2"], (1, 1), ((1, 1), (1, 1)),
                                 dimension_numbers=dn)
    y = jax.nn.relu(bn(y, raw["bn2"]))
    y = lax.conv_general_dilated(y, raw["w3"], (1, 1), "VALID",
                                 dimension_numbers=dn)
    y = bn(y, raw["bn3"])
    return jax.nn.relu(y + x_nchw)


if __name__ == "__main__":
    B, C, H, W = 2, 16, 16, 16        # bottleneck: mid channels = C // 4
    Cm = C // 4

    key = jax.random.PRNGKey(0)
    k_param, k_x = jax.random.split(key)
    kernel_params, raw_params = make_params(k_param, C, Cm)
    x = jax.random.normal(k_x, (B, C, H, W), jnp.float32)

    ref = jax.block_until_ready(reference_forward(x, raw_params))

    # Run with the auto-sized row tile (whole image, M = H*W = 256) and with
    # an explicit 4-row tile (exercises the halo index_maps / pl.when paths).
    for th in (None, 4):
        out = jax.block_until_ready(
            bottleneck_end_forward(x, kernel_params, tile_h=th))
        assert out.shape == ref.shape == (B, C, H, W)
        err = jnp.max(jnp.abs(out - ref))
        assert jnp.allclose(out, ref, atol=5e-2, rtol=5e-2), (
            f"max abs diff = {err} (tile_h={th})")

    print("KERNEL_OK")
</pallas_src>

<mosaic_0001>
module attributes {stable_mosaic.version = 11 : i64} {
  func.func @bottleneck_end_kernel(%arg0: i32, %arg1: i32, %arg2: memref<1x1x16x128xbf16, #tpu.memory_space<vmem>>, %arg3: memref<1x16x16x128xbf16, #tpu.memory_space<vmem>>, %arg4: memref<1x1x16x128xbf16, #tpu.memory_space<vmem>>, %arg5: memref<128x128xbf16, #tpu.memory_space<vmem>>, %arg6: memref<1x128xf32, #tpu.memory_space<vmem>>, %arg7: memref<1x128xf32, #tpu.memory_space<vmem>>, %arg8: memref<9x128x128xbf16, #tpu.memory_space<vmem>>, %arg9: memref<1x128xf32, #tpu.memory_space<vmem>>, %arg10: memref<1x128xf32, #tpu.memory_space<vmem>>, %arg11: memref<128x128xbf16, #tpu.memory_space<vmem>>, %arg12: memref<1x128xf32, #tpu.memory_space<vmem>>, %arg13: memref<1x128xf32, #tpu.memory_space<vmem>>, %arg14: memref<1x16x16x128xbf16, #tpu.memory_space<vmem>>, %arg15: memref<18x18x128xf32, #tpu.memory_space<vmem>>) attributes {dimension_semantics = [#tpu.dimension_semantics<parallel>, #tpu.dimension_semantics<parallel>], iteration_bounds = array<i64: 2, 1>, scalar_prefetch = 0 : i64, scratch_operands = 1 : i64, tpu.core_type = #tpu.core_type<tc>, window_params = [{transform_indices = @transform_0, window_bounds = array<i64: 1, 1, 16, 128>}, {transform_indices = @transform_1, window_bounds = array<i64: 1, 16, 16, 128>}, {transform_indices = @transform_2, window_bounds = array<i64: 1, 1, 16, 128>}, {pipeline_mode = #tpu.pipeline_mode<synchronous>, transform_indices = @transform_3, window_bounds = array<i64: 128, 128>}, {pipeline_mode = #tpu.pipeline_mode<synchronous>, transform_indices = @transform_4, window_bounds = array<i64: 1, 128>}, {pipeline_mode = #tpu.pipeline_mode<synchronous>, transform_indices = @transform_5, window_bounds = array<i64: 1, 128>}, {pipeline_mode = #tpu.pipeline_mode<synchronous>, transform_indices = @transform_6, window_bounds = array<i64: 9, 128, 128>}, {pipeline_mode = #tpu.pipeline_mode<synchronous>, transform_indices = @transform_7, window_bounds = array<i64: 1, 128>}, {pipeline_mode = #tpu.pipeline_mode<synchronous>, transform_indices = @transform_8, window_bounds = array<i64: 1, 128>}, {pipeline_mode = #tpu.pipeline_mode<synchronous>, transform_indices = @transform_9, window_bounds = array<i64: 128, 128>}, {pipeline_mode = #tpu.pipeline_mode<synchronous>, transform_indices = @transform_10, window_bounds = array<i64: 1, 128>}, {pipeline_mode = #tpu.pipeline_mode<synchronous>, transform_indices = @transform_11, window_bounds = array<i64: 1, 128>}, {transform_indices = @transform_12, window_bounds = array<i64: 1, 16, 16, 128>}]} {
    %c0 = arith.constant 0 : index
    %c0_0 = arith.constant 0 : index
    %0 = vector.load %arg5[%c0, %c0_0] : memref<128x128xbf16, #tpu.memory_space<vmem>>, vector<128x128xbf16>
    %c0_1 = arith.constant 0 : index
    %c0_2 = arith.constant 0 : index
    %1 = vector.load %arg6[%c0_1, %c0_2] : memref<1x128xf32, #tpu.memory_space<vmem>>, vector<1x128xf32>
    %c0_3 = arith.constant 0 : index
    %c0_4 = arith.constant 0 : index
    %2 = vector.load %arg7[%c0_3, %c0_4] : memref<1x128xf32, #tpu.memory_space<vmem>>, vector<1x128xf32>
    %cst = arith.constant 0.000000e+00 : f32
    %3 = vector.broadcast %cst : f32 to vector<18x18x128xf32>
    %c0_5 = arith.constant 0 : index
    %c0_6 = arith.constant 0 : index
    %c0_7 = arith.constant 0 : index
    %4 = vector.load %arg15[%c0_5, %c0_6, %c0_7] : memref<18x18x128xf32, #tpu.memory_space<vmem>>, vector<18x18x128xf32>
    tpu.vector_store %arg15[%c0_5, %c0_6, %c0_7], %3 {strides = array<i32>} : memref<18x18x128xf32, #tpu.memory_space<vmem>>, vector<18x18x128xf32>,
    %c0_8 = arith.constant 0 : index
    %c0_9 = arith.constant 0 : index
    %c0_10 = arith.constant 0 : index
    %c0_11 = arith.constant 0 : index
    %5 = vector.load %arg3[%c0_8, %c0_9, %c0_10, %c0_11] : memref<1x16x16x128xbf16, #tpu.memory_space<vmem>>, vector<1x16x16x128xbf16>
    %6 = vector.shape_cast %5 : vector<1x16x16x128xbf16> to vector<256x128xbf16>
    %cst_12 = arith.constant dense<0.000000e+00> : vector<256x128xf32>
    %7 = tpu.matmul %6, %0, %cst_12 {dimension_numbers = #tpu.dot_dimension_numbers<[1], [0], [0], [1], [0, 0, 1, 1], [], []>} : vector<256x128xbf16>, vector<128x128xbf16>, vector<256x128xf32> -> vector<256x128xf32>
    %8 = vector.broadcast %1 : vector<1x128xf32> to vector<256x128xf32>
    %9 = arith.mulf %7, %8 : vector<256x128xf32>
    %10 = vector.broadcast %2 : vector<1x128xf32> to vector<256x128xf32>
    %11 = arith.addf %9, %10 : vector<256x128xf32>
    %cst_13 = arith.constant 0.000000e+00 : f32
    %12 = vector.broadcast %cst_13 : f32 to vector<256x128xf32>
    %13 = arith.maximumf %11, %12 : vector<256x128xf32>
    %14 = vector.shape_cast %13 : vector<256x128xf32> to vector<16x16x128xf32>
    %c1 = arith.constant 1 : index
    %c1_14 = arith.constant 1 : index
    %c0_15 = arith.constant 0 : index
    %15 = vector.load %arg15[%c1, %c1_14, %c0_15] : memref<18x18x128xf32, #tpu.memory_space<vmem>>, vector<16x16x128xf32>
    tpu.vector_store %arg15[%c1, %c1_14, %c0_15], %14 {strides = array<i32>} : memref<18x18x128xf32, #tpu.memory_space<vmem>>, vector<16x16x128xf32>,
    %c0_i32 = arith.constant 0 : i32
    %16 = arith.cmpi sgt, %arg1, %c0_i32 : i32
    %17 = arith.extui %16 : i1 to i32
    %c0_i32_16 = arith.constant 0 : i32
    %18 = arith.cmpi ne, %17, %c0_i32_16 : i32
    scf.if %18 {
      %c0_93 = arith.constant 0 : index
      %c0_94 = arith.constant 0 : index
      %c0_95 = arith.constant 0 : index
      %c0_96 = arith.constant 0 : index
      %110 = vector.load %arg2[%c0_93, %c0_94, %c0_95, %c0_96] : memref<1x1x16x128xbf16, #tpu.memory_space<vmem>>, vector<1x1x16x128xbf16>
      %111 = vector.shape_cast %110 : vector<1x1x16x128xbf16> to vector<16x128xbf16>
      %cst_97 = arith.constant dense<0.000000e+00> : vector<16x128xf32>
      %112 = tpu.matmul %111, %0, %cst_97 {dimension_numbers = #tpu.dot_dimension_numbers<[1], [0], [0], [1], [0, 0, 1, 1], [], []>} : vector<16x128xbf16>, vector<128x128xbf16>, vector<16x128xf32> -> vector<16x128xf32>
      %113 = vector.broadcast %1 : vector<1x128xf32> to vector<16x128xf32>
      %114 = arith.mulf %112, %113 : vector<16x128xf32>
      %115 = vector.broadcast %2 : vector<1x128xf32> to vector<16x128xf32>
      %116 = arith.addf %114, %115 : vector<16x128xf32>
      %cst_98 = arith.constant 0.000000e+00 : f32
      %117 = vector.broadcast %cst_98 : f32 to vector<16x128xf32>
      %118 = arith.maximumf %116, %117 : vector<16x128xf32>
      %119 = vector.shape_cast %118 : vector<16x128xf32> to vector<1x16x128xf32>
      %c0_99 = arith.constant 0 : index
      %c1_100 = arith.constant 1 : index
      %c0_101 = arith.constant 0 : index
      %120 = vector.load %arg15[%c0_99, %c1_100, %c0_101] : memref<18x18x128xf32, #tpu.memory_space<vmem>>, vector<1x16x128xf32>
      tpu.vector_store %arg15[%c0_99, %c1_100, %c0_101], %119 {strides = array<i32>} : memref<18x18x128xf32, #tpu.memory_space<vmem>>, vector<1x16x128xf32>,
    } else {
    }
    %c0_i32_17 = arith.constant 0 : i32
    %19 = arith.cmpi slt, %arg1, %c0_i32_17 : i32
    %20 = arith.extui %19 : i1 to i32
    %c0_i32_18 = arith.constant 0 : i32
    %21 = arith.cmpi ne, %20, %c0_i32_18 : i32
    scf.if %21 {
      %c0_93 = arith.constant 0 : index
      %c0_94 = arith.constant 0 : index
      %c0_95 = arith.constant 0 : index
      %c0_96 = arith.constant 0 : index
      %110 = vector.load %arg4[%c0_93, %c0_94, %c0_95, %c0_96] : memref<1x1x16x128xbf16, #tpu.memory_space<vmem>>, vector<1x1x16x128xbf16>
      %111 = vector.shape_cast %110 : vector<1x1x16x128xbf16> to vector<16x128xbf16>
      %cst_97 = arith.constant dense<0.000000e+00> : vector<16x128xf32>
      %112 = tpu.matmul %111, %0, %cst_97 {dimension_numbers = #tpu.dot_dimension_numbers<[1], [0], [0], [1], [0, 0, 1, 1], [], []>} : vector<16x128xbf16>, vector<128x128xbf16>, vector<16x128xf32> -> vector<16x128xf32>
      %113 = vector.broadcast %1 : vector<1x128xf32> to vector<16x128xf32>
      %114 = arith.mulf %112, %113 : vector<16x128xf32>
      %115 = vector.broadcast %2 : vector<1x128xf32> to vector<16x128xf32>
      %116 = arith.addf %114, %115 : vector<16x128xf32>
      %cst_98 = arith.constant 0.000000e+00 : f32
      %117 = vector.broadcast %cst_98 : f32 to vector<16x128xf32>
      %118 = arith.maximumf %116, %117 : vector<16x128xf32>
      %119 = vector.shape_cast %118 : vector<16x128xf32> to vector<1x16x128xf32>
      %c17 = arith.constant 17 : index
      %c1_99 = arith.constant 1 : index
      %c0_100 = arith.constant 0 : index
      %120 = vector.load %arg15[%c17, %c1_99, %c0_100] : memref<18x18x128xf32, #tpu.memory_space<vmem>>, vector<1x16x128xf32>
      tpu.vector_store %arg15[%c17, %c1_99, %c0_100], %119 {strides = array<i32>} : memref<18x18x128xf32, #tpu.memory_space<vmem>>, vector<1x16x128xf32>,
    } else {
    }
    %cst_19 = arith.constant 0.000000e+00 : f32
    %22 = vector.broadcast %cst_19 : f32 to vector<256x128xf32>
    %c0_20 = arith.constant 0 : index
    %c0_21 = arith.constant 0 : index
    %c0_22 = arith.constant 0 : index
    %23 = vector.load %arg15[%c0_20, %c0_21, %c0_22] : memref<18x18x128xf32, #tpu.memory_space<vmem>>, vector<16x16x128xf32>
    %24 = vector.shape_cast %23 : vector<16x16x128xf32> to vector<256x128xf32>
    %25 = arith.truncf %24 : vector<256x128xf32> to vector<256x128xbf16>
    %c0_23 = arith.constant 0 : index
    %c0_24 = arith.constant 0 : index
    %c0_25 = arith.constant 0 : index
    %26 = vector.load %arg8[%c0_23, %c0_24, %c0_25] : memref<9x128x128xbf16, #tpu.memory_space<vmem>>, vector<1x128x128xbf16>
    %27 = vector.shape_cast %26 : vector<1x128x128xbf16> to vector<128x128xbf16>
    %cst_26 = arith.constant dense<0.000000e+00> : vector<256x128xf32>
    %28 = tpu.matmul %25, %27, %cst_26 {dimension_numbers = #tpu.dot_dimension_numbers<[1], [0], [0], [1], [0, 0, 1, 1], [], []>} : vector<256x128xbf16>, vector<128x128xbf16>, vector<256x128xf32> -> vector<256x128xf32>
    %29 = arith.addf %22, %28 : vector<256x128xf32>
    %c0_27 = arith.constant 0 : index
    %c1_28 = arith.constant 1 : index
    %c0_29 = arith.constant 0 : index
    %30 = vector.load %arg15[%c0_27, %c1_28, %c0_29] : memref<18x18x128xf32, #tpu.memory_space<vmem>>, vector<16x16x128xf32>
    %31 = vector.shape_cast %30 : vector<16x16x128xf32> to vector<256x128xf32>
    %32 = arith.truncf %31 : vector<256x128xf32> to vector<256x128xbf16>
    %c1_30 = arith.constant 1 : index
    %c0_31 = arith.constant 0 : index
    %c0_32 = arith.constant 0 : index
    %33 = vector.load %arg8[%c1_30, %c0_31, %c0_32] : memref<9x128x128xbf16, #tpu.memory_space<vmem>>, vector<1x128x128xbf16>
    %34 = vector.shape_cast %33 : vector<1x128x128xbf16> to vector<128x128xbf16>
    %cst_33 = arith.constant dense<0.000000e+00> : vector<256x128xf32>
    %35 = tpu.matmul %32, %34, %cst_33 {dimension_numbers = #tpu.dot_dimension_numbers<[1], [0], [0], [1], [0, 0, 1, 1], [], []>} : vector<256x128xbf16>, vector<128x128xbf16>, vector<256x128xf32> -> vector<256x128xf32>
    %36 = arith.addf %29, %35 : vector<256x128xf32>
    %c0_34 = arith.constant 0 : index
    %c2 = arith.constant 2 : index
    %c0_35 = arith.constant 0 : index
    %37 = vector.load %arg15[%c0_34, %c2, %c0_35] : memref<18x18x128xf32, #tpu.memory_space<vmem>>, vector<16x16x128xf32>
    %38 = vector.shape_cast %37 : vector<16x16x128xf32> to vector<256x128xf32>
    %39 = arith.truncf %38 : vector<256x128xf32> to vector<256x128xbf16>
    %c2_36 = arith.constant 2 : index
    %c0_37 = arith.constant 0 : index
    %c0_38 = arith.constant 0 : index
    %40 = vector.load %arg8[%c2_36, %c0_37, %c0_38] : memref<9x128x128xbf16, #tpu.memory_space<vmem>>, vector<1x128x128xbf16>
    %41 = vector.shape_cast %40 : vector<1x128x128xbf16> to vector<128x128xbf16>
    %cst_39 = arith.constant dense<0.000000e+00> : vector<256x128xf32>
    %42 = tpu.matmul %39, %41, %cst_39 {dimension_numbers = #tpu.dot_dimension_numbers<[1], [0], [0], [1], [0, 0, 1, 1], [], []>} : vector<256x128xbf16>, vector<128x128xbf16>, vector<256x128xf32> -> vector<256x128xf32>
    %43 = arith.addf %36, %42 : vector<256x128xf32>
    %c1_40 = arith.constant 1 : index
    %c0_41 = arith.constant 0 : index
    %c0_42 = arith.constant 0 : index
    %44 = vector.load %arg15[%c1_40, %c0_41, %c0_42] : memref<18x18x128xf32, #tpu.memory_space<vmem>>, vector<16x16x128xf32>
    %45 = vector.shape_cast %44 : vector<16x16x128xf32> to vector<256x128xf32>
    %46 = arith.truncf %45 : vector<256x128xf32> to vector<256x128xbf16>
    %c3 = arith.constant 3 : index
    %c0_43 = arith.constant 0 : index
    %c0_44 = arith.constant 0 : index
    %47 = vector.load %arg8[%c3, %c0_43, %c0_44] : memref<9x128x128xbf16, #tpu.memory_space<vmem>>, vector<1x128x128xbf16>
    %48 = vector.shape_cast %47 : vector<1x128x128xbf16> to vector<128x128xbf16>
    %cst_45 = arith.constant dense<0.000000e+00> : vector<256x128xf32>
    %49 = tpu.matmul %46, %48, %cst_45 {dimension_numbers = #tpu.dot_dimension_numbers<[1], [0], [0], [1], [0, 0, 1, 1], [], []>} : vector<256x128xbf16>, vector<128x128xbf16>, vector<256x128xf32> -> vector<256x128xf32>
    %50 = arith.addf %43, %49 : vector<256x128xf32>
    %c1_46 = arith.constant 1 : index
    %c1_47 = arith.constant 1 : index
    %c0_48 = arith.constant 0 : index
    %51 = vector.load %arg15[%c1_46, %c1_47, %c0_48] : memref<18x18x128xf32, #tpu.memory_space<vmem>>, vector<16x16x128xf32>
    %52 = vector.shape_cast %51 : vector<16x16x128xf32> to vector<256x128xf32>
    %53 = arith.truncf %52 : vector<256x128xf32> to vector<256x128xbf16>
    %c4 = arith.constant 4 : index
    %c0_49 = arith.constant 0 : index
    %c0_50 = arith.constant 0 : index
    %54 = vector.load %arg8[%c4, %c0_49, %c0_50] : memref<9x128x128xbf16, #tpu.memory_space<vmem>>, vector<1x128x128xbf16>
    %55 = vector.shape_cast %54 : vector<1x128x128xbf16> to vector<128x128xbf16>
    %cst_51 = arith.constant dense<0.000000e+00> : vector<256x128xf32>
    %56 = tpu.matmul %53, %55, %cst_51 {dimension_numbers = #tpu.dot_dimension_numbers<[1], [0], [0], [1], [0, 0, 1, 1], [], []>} : vector<256x128xbf16>, vector<128x128xbf16>, vector<256x128xf32> -> vector<256x128xf32>
    %57 = arith.addf %50, %56 : vector<256x128xf32>
    %c1_52 = arith.constant 1 : index
    %c2_53 = arith.constant 2 : index
    %c0_54 = arith.constant 0 : index
    %58 = vector.load %arg15[%c1_52, %c2_53, %c0_54] : memref<18x18x128xf32, #tpu.memory_space<vmem>>, vector<16x16x128xf32>
    %59 = vector.shape_cast %58 : vector<16x16x128xf32> to vector<256x128xf32>
    %60 = arith.truncf %59 : vector<256x128xf32> to vector<256x128xbf16>
    %c5 = arith.constant 5 : index
    %c0_55 = arith.constant 0 : index
    %c0_56 = arith.constant 0 : index
    %61 = vector.load %arg8[%c5, %c0_55, %c0_56] : memref<9x128x128xbf16, #tpu.memory_space<vmem>>, vector<1x128x128xbf16>
    %62 = vector.shape_cast %61 : vector<1x128x128xbf16> to vector<128x128xbf16>
    %cst_57 = arith.constant dense<0.000000e+00> : vector<256x128xf32>
    %63 = tpu.matmul %60, %62, %cst_57 {dimension_numbers = #tpu.dot_dimension_numbers<[1], [0], [0], [1], [0, 0, 1, 1], [], []>} : vector<256x128xbf16>, vector<128x128xbf16>, vector<256x128xf32> -> vector<256x128xf32>
    %64 = arith.addf %57, %63 : vector<256x128xf32>
    %c2_58 = arith.constant 2 : index
    %c0_59 = arith.constant 0 : index
    %c0_60 = arith.constant 0 : index
    %65 = vector.load %arg15[%c2_58, %c0_59, %c0_60] : memref<18x18x128xf32, #tpu.memory_space<vmem>>, vector<16x16x128xf32>
    %66 = vector.shape_cast %65 : vector<16x16x128xf32> to vector<256x128xf32>
    %67 = arith.truncf %66 : vector<256x128xf32> to vector<256x128xbf16>
    %c6 = arith.constant 6 : index
    %c0_61 = arith.constant 0 : index
    %c0_62 = arith.constant 0 : index
    %68 = vector.load %arg8[%c6, %c0_61, %c0_62] : memref<9x128x128xbf16, #tpu.memory_space<vmem>>, vector<1x128x128xbf16>
    %69 = vector.shape_cast %68 : vector<1x128x128xbf16> to vector<128x128xbf16>
    %cst_63 = arith.constant dense<0.000000e+00> : vector<256x128xf32>
    %70 = tpu.matmul %67, %69, %cst_63 {dimension_numbers = #tpu.dot_dimension_numbers<[1], [0], [0], [1], [0, 0, 1, 1], [], []>} : vector<256x128xbf16>, vector<128x128xbf16>, vector<256x128xf32> -> vector<256x128xf32>
    %71 = arith.addf %64, %70 : vector<256x128xf32>
    %c2_64 = arith.constant 2 : index
    %c1_65 = arith.constant 1 : index
    %c0_66 = arith.constant 0 : index
    %72 = vector.load %arg15[%c2_64, %c1_65, %c0_66] : memref<18x18x128xf32, #tpu.memory_space<vmem>>, vector<16x16x128xf32>
    %73 = vector.shape_cast %72 : vector<16x16x128xf32> to vector<256x128xf32>
    %74 = arith.truncf %73 : vector<256x128xf32> to vector<256x128xbf16>
    %c7 = arith.constant 7 : index
    %c0_67 = arith.constant 0 : index
    %c0_68 = arith.constant 0 : index
    %75 = vector.load %arg8[%c7, %c0_67, %c0_68] : memref<9x128x128xbf16, #tpu.memory_space<vmem>>, vector<1x128x128xbf16>
    %76 = vector.shape_cast %75 : vector<1x128x128xbf16> to vector<128x128xbf16>
    %cst_69 = arith.constant dense<0.000000e+00> : vector<256x128xf32>
    %77 = tpu.matmul %74, %76, %cst_69 {dimension_numbers = #tpu.dot_dimension_numbers<[1], [0], [0], [1], [0, 0, 1, 1], [], []>} : vector<256x128xbf16>, vector<128x128xbf16>, vector<256x128xf32> -> vector<256x128xf32>
    %78 = arith.addf %71, %77 : vector<256x128xf32>
    %c2_70 = arith.constant 2 : index
    %c2_71 = arith.constant 2 : index
    %c0_72 = arith.constant 0 : index
    %79 = vector.load %arg15[%c2_70, %c2_71, %c0_72] : memref<18x18x128xf32, #tpu.memory_space<vmem>>, vector<16x16x128xf32>
    %80 = vector.shape_cast %79 : vector<16x16x128xf32> to vector<256x128xf32>
    %81 = arith.truncf %80 : vector<256x128xf32> to vector<256x128xbf16>
    %c8 = arith.constant 8 : index
    %c0_73 = arith.constant 0 : index
    %c0_74 = arith.constant 0 : index
    %82 = vector.load %arg8[%c8, %c0_73, %c0_74] : memref<9x128x128xbf16, #tpu.memory_space<vmem>>, vector<1x128x128xbf16>
    %83 = vector.shape_cast %82 : vector<1x128x128xbf16> to vector<128x128xbf16>
    %cst_75 = arith.constant dense<0.000000e+00> : vector<256x128xf32>
    %84 = tpu.matmul %81, %83, %cst_75 {dimension_numbers = #tpu.dot_dimension_numbers<[1], [0], [0], [1], [0, 0, 1, 1], [], []>} : vector<256x128xbf16>, vector<128x128xbf16>, vector<256x128xf32> -> vector<256x128xf32>
    %85 = arith.addf %78, %84 : vector<256x128xf32>
    %c0_76 = arith.constant 0 : index
    %c0_77 = arith.constant 0 : index
    %86 = vector.load %arg9[%c0_76, %c0_77] : memref<1x128xf32, #tpu.memory_space<vmem>>, vector<1x128xf32>
    %87 = vector.broadcast %86 : vector<1x128xf32> to vector<256x128xf32>
    %88 = arith.mulf %85, %87 : vector<256x128xf32>
    %c0_78 = arith.constant 0 : index
    %c0_79 = arith.constant 0 : index
    %89 = vector.load %arg10[%c0_78, %c0_79] : memref<1x128xf32, #tpu.memory_space<vmem>>, vector<1x128xf32>
    %90 = vector.broadcast %89 : vector<1x128xf32> to vector<256x128xf32>
    %91 = arith.addf %88, %90 : vector<256x128xf32>
    %cst_80 = arith.constant 0.000000e+00 : f32
    %92 = vector.broadcast %cst_80 : f32 to vector<256x128xf32>
    %93 = arith.maximumf %91, %92 : vector<256x128xf32>
    %94 = arith.truncf %93 : vector<256x128xf32> to vector<256x128xbf16>
    %c0_81 = arith.constant 0 : index
    %c0_82 = arith.constant 0 : index
    %95 = vector.load %arg11[%c0_81, %c0_82] : memref<128x128xbf16, #tpu.memory_space<vmem>>, vector<128x128xbf16>
    %cst_83 = arith.constant dense<0.000000e+00> : vector<256x128xf32>
    %96 = tpu.matmul %94, %95, %cst_83 {dimension_numbers = #tpu.dot_dimension_numbers<[1], [0], [0], [1], [0, 0, 1, 1], [], []>} : vector<256x128xbf16>, vector<128x128xbf16>, vector<256x128xf32> -> vector<256x128xf32>
    %c0_84 = arith.constant 0 : index
    %c0_85 = arith.constant 0 : index
    %97 = vector.load %arg12[%c0_84, %c0_85] : memref<1x128xf32, #tpu.memory_space<vmem>>, vector<1x128xf32>
    %98 = vector.broadcast %97 : vector<1x128xf32> to vector<256x128xf32>
    %99 = arith.mulf %96, %98 : vector<256x128xf32>
    %c0_86 = arith.constant 0 : index
    %c0_87 = arith.constant 0 : index
    %100 = vector.load %arg13[%c0_86, %c0_87] : memref<1x128xf32, #tpu.memory_space<vmem>>, vector<1x128xf32>
    %101 = vector.broadcast %100 : vector<1x128xf32> to vector<256x128xf32>
    %102 = arith.addf %99, %101 : vector<256x128xf32>
    %103 = arith.extf %6 : vector<256x128xbf16> to vector<256x128xf32>
    %104 = arith.addf %102, %103 : vector<256x128xf32>
    %cst_88 = arith.constant 0.000000e+00 : f32
    %105 = vector.broadcast %cst_88 : f32 to vector<256x128xf32>
    %106 = arith.maximumf %104, %105 : vector<256x128xf32>
    %107 = vector.shape_cast %106 : vector<256x128xf32> to vector<1x16x16x128xf32>
    %108 = arith.truncf %107 : vector<1x16x16x128xf32> to vector<1x16x16x128xbf16>
    %c0_89 = arith.constant 0 : index
    %c0_90 = arith.constant 0 : index
    %c0_91 = arith.constant 0 : index
    %c0_92 = arith.constant 0 : index
    %109 = vector.load %arg14[%c0_89, %c0_90, %c0_91, %c0_92] : memref<1x16x16x128xbf16, #tpu.memory_space<vmem>>, vector<1x16x16x128xbf16>
    tpu.vector_store %arg14[%c0_89, %c0_90, %c0_91, %c0_92], %108 {strides = array<i32>} : memref<1x16x16x128xbf16, #tpu.memory_space<vmem>>, vector<1x16x16x128xbf16>,
    return
  }
  func.func @transform_0(%arg0: i32, %arg1: i32) -> (i32, i32, i32, i32) {
    %c16_i32 = arith.constant 16 : i32
    %0 = arith.muli %arg1, %c16_i32 : i32
    %c1_i32 = arith.constant 1 : i32
    %1 = arith.subi %0, %c1_i32 : i32
    %c0_i32 = arith.constant 0 : i32
    %2 = arith.maxsi %1, %c0_i32 : i32
    %c0_i32_0 = arith.constant 0 : i32
    %c0_i32_1 = arith.constant 0 : i32
    %c0_i32_2 = arith.constant 0 : i32
    return %arg0, %2, %c0_i32_0, %c0_i32_1 : i32, i32, i32, i32
  }
  func.func @transform_1(%arg0: i32, %arg1: i32) -> (i32, i32, i32, i32) {
    %c0_i32 = arith.constant 0 : i32
    %c0_i32_0 = arith.constant 0 : i32
    %c0_i32_1 = arith.constant 0 : i32
    return %arg0, %arg1, %c0_i32, %c0_i32_0 : i32, i32, i32, i32
  }
  func.func @transform_2(%arg0: i32, %arg1: i32) -> (i32, i32, i32, i32) {
    %c1_i32 = arith.constant 1 : i32
    %0 = arith.addi %arg1, %c1_i32 : i32
    %c16_i32 = arith.constant 16 : i32
    %1 = arith.muli %0, %c16_i32 : i32
    %c15_i32 = arith.constant 15 : i32
    %2 = arith.minsi %1, %c15_i32 : i32
    %c0_i32 = arith.constant 0 : i32
    %c0_i32_0 = arith.constant 0 : i32
    %c0_i32_1 = arith.constant 0 : i32
    return %arg0, %2, %c0_i32, %c0_i32_0 : i32, i32, i32, i32
  }
  func.func @transform_3(%arg0: i32, %arg1: i32) -> (i32, i32) {
    %c0_i32 = arith.constant 0 : i32
    %c0_i32_0 = arith.constant 0 : i32
    %c0_i32_1 = arith.constant 0 : i32
    return %c0_i32, %c0_i32_0 : i32, i32
  }
  func.func @transform_4(%arg0: i32, %arg1: i32) -> (i32, i32) {
    %c0_i32 = arith.constant 0 : i32
    %c0_i32_0 = arith.constant 0 : i32
    %c0_i32_1 = arith.constant 0 : i32
    return %c0_i32, %c0_i32_0 : i32, i32
  }
  func.func @transform_5(%arg0: i32, %arg1: i32) -> (i32, i32) {
    %c0_i32 = arith.constant 0 : i32
    %c0_i32_0 = arith.constant 0 : i32
    %c0_i32_1 = arith.constant 0 : i32
    return %c0_i32, %c0_i32_0 : i32, i32
  }
  func.func @transform_6(%arg0: i32, %arg1: i32) -> (i32, i32, i32) {
    %c0_i32 = arith.constant 0 : i32
    %c0_i32_0 = arith.constant 0 : i32
    %c0_i32_1 = arith.constant 0 : i32
    %c0_i32_2 = arith.constant 0 : i32
    return %c0_i32, %c0_i32_0, %c0_i32_1 : i32, i32, i32
  }
  func.func @transform_7(%arg0: i32, %arg1: i32) -> (i32, i32) {
    %c0_i32 = arith.constant 0 : i32
    %c0_i32_0 = arith.constant 0 : i32
    %c0_i32_1 = arith.constant 0 : i32
    return %c0_i32, %c0_i32_0 : i32, i32
  }
  func.func @transform_8(%arg0: i32, %arg1: i32) -> (i32, i32) {
    %c0_i32 = arith.constant 0 : i32
    %c0_i32_0 = arith.constant 0 : i32
    %c0_i32_1 = arith.constant 0 : i32
    return %c0_i32, %c0_i32_0 : i32, i32
  }
  func.func @transform_9(%arg0: i32, %arg1: i32) -> (i32, i32) {
    %c0_i32 = arith.constant 0 : i32
    %c0_i32_0 = arith.constant 0 : i32
    %c0_i32_1 = arith.constant 0 : i32
    return %c0_i32, %c0_i32_0 : i32, i32
  }
  func.func @transform_10(%arg0: i32, %arg1: i32) -> (i32, i32) {
    %c0_i32 = arith.constant 0 : i32
    %c0_i32_0 = arith.constant 0 : i32
    %c0_i32_1 = arith.constant 0 : i32
    return %c0_i32, %c0_i32_0 : i32, i32
  }
  func.func @transform_11(%arg0: i32, %arg1: i32) -> (i32, i32) {
    %c0_i32 = arith.constant 0 : i32
    %c0_i32_0 = arith.constant 0 : i32
    %c0_i32_1 = arith.constant 0 : i32
    return %c0_i32, %c0_i32_0 : i32, i32
  }
  func.func @transform_12(%arg0: i32, %arg1: i32) -> (i32, i32, i32, i32) {
    %c0_i32 = arith.constant 0 : i32
    %c0_i32_0 = arith.constant 0 : i32
    %c0_i32_1 = arith.constant 0 : i32
    return %arg0, %arg1, %c0_i32, %c0_i32_0 : i32, i32, i32, i32
  }
}

</mosaic_0001>

<llo_original>
// kernel: tpu_custom_call.1
$region0: #{tpu_custom_call.1}
  #allocation0 [shape = 'u32[]', space=smem, size = 0x4, offset = 0x4, fixed_abs, tag = 'smem constant byte address 0x4 - core index']
  #allocation1 [shape = 'u32[144,128]{1,0:T(1,128)}', space=vmem, size = 0x12000, scoped, tag = 'internal scratch']
  #allocation2 [shape = 'f32[18,18,128]{2,1,0:T(8,128)}', space=vmem, size = 0x36000, scoped, tag = 'scratch operand']
  %s0 = inlined_call_operand.hbm [shape: bf16[2,16,16,128], index: 0, kind: input, shape index: {}]
  %s1 = inlined_call_operand.hbm [shape: bf16[2,16,16,128], index: 1, kind: input, shape index: {}]
  %s2 = inlined_call_operand.hbm [shape: bf16[2,16,16,128], index: 2, kind: input, shape index: {}]
  %s3 = inlined_call_operand.hbm [shape: bf16[128,128], index: 3, kind: input, shape index: {}]
  %s4 = inlined_call_operand.vmem [shape: f32[1,128], index: 4, kind: input, shape index: {}]
  %s5 = inlined_call_operand.vmem [shape: f32[1,128], index: 5, kind: input, shape index: {}]
  %s6 = inlined_call_operand.hbm [shape: bf16[9,128,128], index: 6, kind: input, shape index: {}]
  %s7 = inlined_call_operand.vmem [shape: f32[1,128], index: 7, kind: input, shape index: {}]
  %s8 = inlined_call_operand.vmem [shape: f32[1,128], index: 8, kind: input, shape index: {}]
  %s9 = inlined_call_operand.hbm [shape: bf16[128,128], index: 9, kind: input, shape index: {}]
  %s10 = inlined_call_operand.vmem [shape: f32[1,128], index: 10, kind: input, shape index: {}]
  %s11 = inlined_call_operand.vmem [shape: f32[1,128], index: 11, kind: input, shape index: {}]
  %s12 = inlined_call_operand.hbm [shape: bf16[2,16,16,128], index: 12, kind: output, shape index: {}]
  %s13 = sld [smem:[#allocation0]]
  $region113: #{tpu_custom_call.1} parent=0
    _
  %s15 = ssub.s32 1, %s13
  %s16 = scalar_select 0, %s15, %s13
  $region1: #{tpu_custom_call.1} parent=0
    #allocation3 [shape = 'u8[8192]{0}', space=vmem, size = 0x2000, scoped, tag = 'input window, operand 0']
    #allocation4 [shape = 's32[2]{0}', space=sflag, size = 0x8, scoped, tag = 'scoped memory for tpu_custom_call.1']
    #allocation5 [shape = 's32[2]{0}', space=sflag, size = 0x8, scoped, tag = 'scoped memory for tpu_custom_call.1']
    #allocation6 [shape = 'u8[131072]{0}', space=vmem, size = 0x20000, scoped, tag = 'input window, operand 1']
    #allocation7 [shape = 's32[2]{0}', space=sflag, size = 0x8, scoped, tag = 'scoped memory for tpu_custom_call.1']
    #allocation8 [shape = 'u8[8192]{0}', space=vmem, size = 0x2000, scoped, tag = 'input window, operand 2']
    #allocation9 [shape = 'u8[32768]{0}', space=vmem, size = 0x8000, scoped, tag = 'input window, operand 3, single buffered']
    #allocation10 [shape = 's32[1]{0}', space=sflag, size = 0x4, scoped, tag = 'scoped memory for tpu_custom_call.1']
    #allocation11 [shape = 'u8[294912]{0}', space=vmem, size = 0x48000, scoped, tag = 'input window, operand 6, single buffered']
    #allocation12 [shape = 'u8[32768]{0}', space=vmem, size = 0x8000, scoped, tag = 'input window, operand 9, single buffered']
    #allocation13 [shape = 's32[1]{0}', space=sflag, size = 0x4, scoped, tag = 'scoped memory for tpu_custom_call.1']
    #allocation14 [shape = 'u8[131072]{0}', space=vmem, size = 0x20000, scoped, tag = 'output window, operand 0']
    %17 = vsyncpa [#allocation4], 0
    %s18 = scalar_lea.sflag [#allocation4], 1
    %19 = vsyncpa %s18, 0
    %20 = vsyncpa [#allocation7], 0
    %s21 = scalar_lea.sflag [#allocation7], 1
    %22 = vsyncpa %s21, 0
    %23 = vsyncpa [#allocation10], 0
    %24 = vsyncpa [#allocation13], 0
    %25 = vsyncpa [#allocation5], 0
    %s26 = scalar_lea.sflag [#allocation5], 1
    %27 = vsyncpa %s26, 0
    loop: start=0, step=1, limit=4
    $region2: #{tpu_custom_call.1} parent=1 // loop_pre_header
      _
    $region3: #{tpu_custom_call.1} parent=1 // loop_header
      %s29 = sphi 0, %s33
      %p30 = scmp.ge.s32.totalorder %s29, 4
      %s36 = sphi 0, %s48
      %s37 = sphi 0, %s44
      %s38 = sphi 0, %s36
      %s39 = sphi 0, %s37
      %s40 = sphi 0, %s38
      %s41 = sphi 0, %s39
      %s61 = sphi 0, %s63
      %s64 = sphi 0, %s61
      %s65 = sphi 0, %s64
      %s81 = sphi 0, %s65
      %s89 = sphi 0, %s91
      %s92 = sphi 0, %s89
      %s93 = sphi 0, %s92
      %s109 = sphi 0, %s93
      %s125 = sphi 0, %s127
      %s128 = sphi 0, %s125
      %s129 = sphi 0, %s128
      %s145 = sphi 0, %s129
      %s149 = sphi 0, %s149
      %s151 = sphi 0, %s149
      %s152 = sphi 0, %s151
      %s166 = sphi 0, %s152
      %s170 = sphi 0, %s170
      %s172 = sphi 0, %s170
      %s173 = sphi 0, %s172
      %s187 = sphi 0, %s173
      %s191 = sphi 0, %s191
      %s193 = sphi 0, %s191
      %s194 = sphi 0, %s193
      %s208 = sphi 0, %s194
      %s212 = sphi 0, %s212
      %s214 = sphi 0, %s212
      %s215 = sphi 0, %s214
      %s229 = sphi 0, %s215
      %s233 = sphi 0, %s233
      %s235 = sphi 0, %s233
      %s236 = sphi 0, %s235
      %s250 = sphi 0, %s236
      %s254 = sphi 0, %s254
      %s256 = sphi 0, %s254
      %s257 = sphi 0, %s256
      %s271 = sphi 0, %s257
      %s275 = sphi 0, %s275
      %s277 = sphi 0, %s275
      %s278 = sphi 0, %s277
      %s292 = sphi 0, %s278
      %s296 = sphi 0, %s296
      %s298 = sphi 0, %s296
      %s299 = sphi 0, %s298
      %s313 = sphi 0, %s299
      %s317 = sphi 0, %s317
      %s319 = sphi 0, %s317
      %s320 = sphi 0, %s319
      %s334 = sphi 0, %s320
      %s342 = sphi 0, %s344
      %s345 = sphi 0, %s342
      %s346 = sphi 0, %s345
      %s362 = sphi 0, %s346
    $region4: #{tpu_custom_call.1} parent=1 // loop_header_branch
      %32 = sbr.rel (%p30) target = $region8
    $region5: #{tpu_custom_call.1} parent=1 // loop_body
      %s34 = ssub.s32 %s29, 1
      %s35 = ssub.s32 %s29, 2
      %s42 = sadd.s32 1, %s37
      %p43 = scmp.ge.s32.totalorder %s42, 1
      %s44 = scalar_select %p43, 0, %s42
      %s45 = sadd.s32 1, %s36
      %s46 = scalar_select %p43, %s45, %s36
      %p47 = scmp.ge.s32.totalorder %s46, 2
      %s48 = scalar_select %p47, 0, %s46
      %s49 = smul.u32 %s37, 16
      %s50 = ssub.s32 %s49, 1
      %p51 = scmp.gt.s32.totalorder %s50, 0
      %s52 = scalar_select %p51, %s50, 0
      %s53 = smul.u32 %s44, 16
      %s54 = ssub.s32 %s53, 1
      %p55 = scmp.gt.s32.totalorder %s54, 0
      %s56 = scalar_select %p55, %s54, 0
      %s57 = ssub.s32 %s36, %s48
      %s58 = ssub.s32 %s52, %s56
      %s59 = sor.u32 %s57, %s58
      %p60 = scmp.eq.s32.totalorder %s59, 0
      %s62 = sadd.s32 %s61, 1
      %s63 = scalar_select %p60, %s61, %s62
      %p66 = pneg %p60
      %p67 = scmp.eq.s32.totalorder %s29, 1
      %p68 = por %p66, %p67
      %p69 = scmp.ne.s32.totalorder %s61, %s64
      %p70 = scmp.eq.s32.totalorder %s29, 0
      %p71 = por %p69, %p70
      %p72 = scmp.ne.s32.totalorder %s61, %s64
      %p73 = scmp.eq.s32.totalorder %s34, 1
      %p74 = por %p72, %p73
      %p75 = scmp.ne.s32.totalorder %s64, %s65
      %p76 = scmp.eq.s32.totalorder %s34, 0
      %p77 = por %p75, %p76
      %p78 = scmp.ne.s32.totalorder %s64, %s65
      %p79 = scmp.eq.s32.totalorder %s35, 1
      %p80 = por %p78, %p79
      %p82 = scmp.ne.s32.totalorder %s65, %s81
      %p83 = scmp.eq.s32.totalorder %s35, 0
      %p84 = por %p82, %p83
      %s85 = ssub.s32 %s36, %s48
      %s86 = ssub.s32 %s37, %s44
      %s87 = sor.u32 %s85, %s86
      %p88 = scmp.eq.s32.totalorder %s87, 0
      %s90 = sadd.s32 %s89, 1
      %s91 = scalar_select %p88, %s89, %s90
      %p94 = pneg %p88
      %p95 = scmp.eq.s32.totalorder %s29, 1
      %p96 = por %p94, %p95
      %p97 = scmp.ne.s32.totalorder %s89, %s92
      %p98 = scmp.eq.s32.totalorder %s29, 0
      %p99 = por %p97, %p98
      %p100 = scmp.ne.s32.totalorder %s89, %s92
      %p101 = scmp.eq.s32.totalorder %s34, 1
      %p102 = por %p100, %p101
      %p103 = scmp.ne.s32.totalorder %s92, %s93
      %p104 = scmp.eq.s32.totalorder %s34, 0
      %p105 = por %p103, %p104
      %p106 = scmp.ne.s32.totalorder %s92, %s93
      %p107 = scmp.eq.s32.totalorder %s35, 1
      %p108 = por %p106, %p107
      %p110 = scmp.ne.s32.totalorder %s93, %s109
      %p111 = scmp.eq.s32.totalorder %s35, 0
      %p112 = por %p110, %p111
      %s113 = sadd.s32 %s37, 1
      %s114 = smul.u32 %s113, 16
      %p115 = scmp.lt.s32.totalorder %s114, 15
      %s116 = scalar_select %p115, %s114, 15
      %s117 = sadd.s32 %s44, 1
      %s118 = smul.u32 %s117, 16
      %p119 = scmp.lt.s32.totalorder %s118, 15
      %s120 = scalar_select %p119, %s118, 15
      %s121 = ssub.s32 %s36, %s48
      %s122 = ssub.s32 %s116, %s120
      %s123 = sor.u32 %s121, %s122
      %p124 = scmp.eq.s32.totalorder %s123, 0
      %s126 = sadd.s32 %s125, 1
      %s127 = scalar_select %p124, %s125, %s126
      %p130 = pneg %p124
      %p131 = scmp.eq.s32.totalorder %s29, 1
      %p132 = por %p130, %p131
      %p133 = scmp.ne.s32.totalorder %s125, %s128
      %p134 = scmp.eq.s32.totalorder %s29, 0
      %p135 = por %p133, %p134
      %p136 = scmp.ne.s32.totalorder %s125, %s128
      %p137 = scmp.eq.s32.totalorder %s34, 1
      %p138 = por %p136, %p137
      %p139 = scmp.ne.s32.totalorder %s128, %s129
      %p140 = scmp.eq.s32.totalorder %s34, 0
      %p141 = por %p139, %p140
      %p142 = scmp.ne.s32.totalorder %s128, %s129
      %p143 = scmp.eq.s32.totalorder %s35, 1
      %p144 = por %p142, %p143
      %p146 = scmp.ne.s32.totalorder %s129, %s145
      %p147 = scmp.eq.s32.totalorder %s35, 0
      %p148 = por %p146, %p147
      %s150 = sadd.s32 %s149, 1
      %p153 = scmp.eq.s32.totalorder %s29, 1
      %p154 = scmp.ne.s32.totalorder %s149, %s151
      %p155 = scmp.eq.s32.totalorder %s29, 0
      %p156 = por %p154, %p155
      %p157 = scmp.ne.s32.totalorder %s149, %s151
      %p158 = scmp.eq.s32.totalorder %s34, 1
      %p159 = por %p157, %p158
      %p160 = scmp.ne.s32.totalorder %s151, %s152
      %p161 = scmp.eq.s32.totalorder %s34, 0
      %p162 = por %p160, %p161
      %p163 = scmp.ne.s32.totalorder %s151, %s152
      %p164 = scmp.eq.s32.totalorder %s35, 1
      %p165 = por %p163, %p164
      %p167 = scmp.ne.s32.totalorder %s152, %s166
      %p168 = scmp.eq.s32.totalorder %s35, 0
      %p169 = por %p167, %p168
      %s171 = sadd.s32 %s170, 1
      %p174 = scmp.eq.s32.totalorder %s29, 1
      %p175 = scmp.ne.s32.totalorder %s170, %s172
      %p176 = scmp.eq.s32.totalorder %s29, 0
      %p177 = por %p175, %p176
      %p178 = scmp.ne.s32.totalorder %s170, %s172
      %p179 = scmp.eq.s32.totalorder %s34, 1
      %p180 = por %p178, %p179
      %p181 = scmp.ne.s32.totalorder %s172, %s173
      %p182 = scmp.eq.s32.totalorder %s34, 0
      %p183 = por %p181, %p182
      %p184 = scmp.ne.s32.totalorder %s172, %s173
      %p185 = scmp.eq.s32.totalorder %s35, 1
      %p186 = por %p184, %p185
      %p188 = scmp.ne.s32.totalorder %s173, %s187
      %p189 = scmp.eq.s32.totalorder %s35, 0
      %p190 = por %p188, %p189
      %s192 = sadd.s32 %s191, 1
      %p195 = scmp.eq.s32.totalorder %s29, 1
      %p196 = scmp.ne.s32.totalorder %s191, %s193
      %p197 = scmp.eq.s32.totalorder %s29, 0
      %p198 = por %p196, %p197
      %p199 = scmp.ne.s32.totalorder %s191, %s193
      %p200 = scmp.eq.s32.totalorder %s34, 1
      %p201 = por %p199, %p200
      %p202 = scmp.ne.s32.totalorder %s193, %s194
      %p203 = scmp.eq.s32.totalorder %s34, 0
      %p204 = por %p202, %p203
      %p205 = scmp.ne.s32.totalorder %s193, %s194
      %p206 = scmp.eq.s32.totalorder %s35, 1
      %p207 = por %p205, %p206
      %p209 = scmp.ne.s32.totalorder %s194, %s208
      %p210 = scmp.eq.s32.totalorder %s35, 0
      %p211 = por %p209, %p210
      %s213 = sadd.s32 %s212, 1
      %p216 = scmp.eq.s32.totalorder %s29, 1
      %p217 = scmp.ne.s32.totalorder %s212, %s214
      %p218 = scmp.eq.s32.totalorder %s29, 0
      %p219 = por %p217, %p218
      %p220 = scmp.ne.s32.totalorder %s212, %s214
      %p221 = scmp.eq.s32.totalorder %s34, 1
      %p222 = por %p220, %p221
      %p223 = scmp.ne.s32.totalorder %s214, %s215
      %p224 = scmp.eq.s32.totalorder %s34, 0
      %p225 = por %p223, %p224
      %p226 = scmp.ne.s32.totalorder %s214, %s215
      %p227 = scmp.eq.s32.totalorder %s35, 1
      %p228 = por %p226, %p227
      %p230 = scmp.ne.s32.totalorder %s215, %s229
      %p231 = scmp.eq.s32.totalorder %s35, 0
      %p232 = por %p230, %p231
      %s234 = sadd.s32 %s233, 1
      %p237 = scmp.eq.s32.totalorder %s29, 1
      %p238 = scmp.ne.s32.totalorder %s233, %s235
      %p239 = scmp.eq.s32.totalorder %s29, 0
      %p240 = por %p238, %p239
      %p241 = scmp.ne.s32.totalorder %s233, %s235
      %p242 = scmp.eq.s32.totalorder %s34, 1
      %p243 = por %p241, %p242
      %p244 = scmp.ne.s32.totalorder %s235, %s236
      %p245 = scmp.eq.s32.totalorder %s34, 0
      %p246 = por %p244, %p245
      %p247 = scmp.ne.s32.totalorder %s235, %s236
      %p248 = scmp.eq.s32.totalorder %s35, 1
      %p249 = por %p247, %p248
      %p251 = scmp.ne.s32.totalorder %s236, %s250
      %p252 = scmp.eq.s32.totalorder %s35, 0
      %p253 = por %p251, %p252
      %s255 = sadd.s32 %s254, 1
      %p258 = scmp.eq.s32.totalorder %s29, 1
      %p259 = scmp.ne.s32.totalorder %s254, %s256
      %p260 = scmp.eq.s32.totalorder %s29, 0
      %p261 = por %p259, %p260
      %p262 = scmp.ne.s32.totalorder %s254, %s256
      %p263 = scmp.eq.s32.totalorder %s34, 1
      %p264 = por %p262, %p263
      %p265 = scmp.ne.s32.totalorder %s256, %s257
      %p266 = scmp.eq.s32.totalorder %s34, 0
      %p267 = por %p265, %p266
      %p268 = scmp.ne.s32.totalorder %s256, %s257
      %p269 = scmp.eq.s32.totalorder %s35, 1
      %p270 = por %p268, %p269
      %p272 = scmp.ne.s32.totalorder %s257, %s271
      %p273 = scmp.eq.s32.totalorder %s35, 0
      %p274 = por %p272, %p273
      %s276 = sadd.s32 %s275, 1
      %p279 = scmp.eq.s32.totalorder %s29, 1
      %p280 = scmp.ne.s32.totalorder %s275, %s277
      %p281 = scmp.eq.s32.totalorder %s29, 0
      %p282 = por %p280, %p281
      %p283 = scmp.ne.s32.totalorder %s275, %s277
      %p284 = scmp.eq.s32.totalorder %s34, 1
      %p285 = por %p283, %p284
      %p286 = scmp.ne.s32.totalorder %s277, %s278
      %p287 = scmp.eq.s32.totalorder %s34, 0
      %p288 = por %p286, %p287
      %p289 = scmp.ne.s32.totalorder %s277, %s278
      %p290 = scmp.eq.s32.totalorder %s35, 1
      %p291 = por %p289, %p290
      %p293 = scmp.ne.s32.totalorder %s278, %s292
      %p294 = scmp.eq.s32.totalorder %s35, 0
      %p295 = por %p293, %p294
      %s297 = sadd.s32 %s296, 1
      %p300 = scmp.eq.s32.totalorder %s29, 1
      %p301 = scmp.ne.s32.totalorder %s296, %s298
      %p302 = scmp.eq.s32.totalorder %s29, 0
      %p303 = por %p301, %p302
      %p304 = scmp.ne.s32.totalorder %s296, %s298
      %p305 = scmp.eq.s32.totalorder %s34, 1
      %p306 = por %p304, %p305
      %p307 = scmp.ne.s32.totalorder %s298, %s299
      %p308 = scmp.eq.s32.totalorder %s34, 0
      %p309 = por %p307, %p308
      %p310 = scmp.ne.s32.totalorder %s298, %s299
      %p311 = scmp.eq.s32.totalorder %s35, 1
      %p312 = por %p310, %p311
      %p314 = scmp.ne.s32.totalorder %s299, %s313
      %p315 = scmp.eq.s32.totalorder %s35, 0
      %p316 = por %p314, %p315
      %s318 = sadd.s32 %s317, 1
      %p321 = scmp.eq.s32.totalorder %s29, 1
      %p322 = scmp.ne.s32.totalorder %s317, %s319
      %p323 = scmp.eq.s32.totalorder %s29, 0
      %p324 = por %p322, %p323
      %p325 = scmp.ne.s32.totalorder %s317, %s319
      %p326 = scmp.eq.s32.totalorder %s34, 1
      %p327 = por %p325, %p326
      %p328 = scmp.ne.s32.totalorder %s319, %s320
      %p329 = scmp.eq.s32.totalorder %s34, 0
      %p330 = por %p328, %p329
      %p331 = scmp.ne.s32.totalorder %s319, %s320
      %p332 = scmp.eq.s32.totalorder %s35, 1
      %p333 = por %p331, %p332
      %p335 = scmp.ne.s32.totalorder %s320, %s334
      %p336 = scmp.eq.s32.totalorder %s35, 0
      %p337 = por %p335, %p336
      %s338 = ssub.s32 %s36, %s48
      %s339 = ssub.s32 %s37, %s44
      %s340 = sor.u32 %s338, %s339
      %p341 = scmp.eq.s32.totalorder %s340, 0
      %s343 = sadd.s32 %s342, 1
      %s344 = scalar_select %p341, %s342, %s343
      %p347 = pneg %p341
      %p348 = scmp.eq.s32.totalorder %s29, 1
      %p349 = por %p347, %p348
      %p350 = scmp.ne.s32.totalorder %s342, %s345
      %p351 = scmp.eq.s32.totalorder %s29, 0
      %p352 = por %p350, %p351
      %p353 = scmp.ne.s32.totalorder %s342, %s345
      %p354 = scmp.eq.s32.totalorder %s34, 1
      %p355 = por %p353, %p354
      %p356 = scmp.ne.s32.totalorder %s345, %s346
      %p357 = scmp.eq.s32.totalorder %s34, 0
      %p358 = por %p356, %p357
      %p359 = scmp.ne.s32.totalorder %s345, %s346
      %p360 = scmp.eq.s32.totalorder %s35, 1
      %p361 = por %p359, %p360
      %p363 = scmp.ne.s32.totalorder %s346, %s362
      %p364 = scmp.eq.s32.totalorder %s35, 0
      %p365 = por %p363, %p364
      %p366 = scmp.le.s32.totalorder 1, %s29
      %p367 = scmp.lt.s32.totalorder %s29, 3
      %p368 = pnand %p366, %p367
      %p369 = pneg %p368
      // Predicated region
      $region9: #{tpu_custom_call.1} parent=5 // pred_check
        _
      $region10: #{tpu_custom_call.1} parent=5 // pred_check_branch
        %371 = sbr.rel (%p368) target = $region12
      $region11: #{tpu_custom_call.1} parent=5 // pred_region
        %s372 = ssub.s32 %s29, 1
        // Predicated region
        $region13: #{tpu_custom_call.1} parent=11 // pred_check
          %p373 = pneg %p162
        $region14: #{tpu_custom_call.1} parent=11 // pred_check_branch
          %375 = sbr.rel (%p373) target = $region16
        $region15: #{tpu_custom_call.1} parent=11 // pred_region
          %s377 = ssub.s32 1024, 1024
          %378 = vsyncadd [#allocation10], %s377
          %s379 = sshll.u32 [#allocation9], 4
          %s380 = int_to_ptr.vmem [resolvable:$true] %s379
          %385 = dma.hbm_to_vmem [thread:$0]  %s3, 1024, %s380, [#allocation10], 64, 64, 4
        $region16: #{tpu_custom_call.1} parent=11 // pred_fallthru
          _
        // Predicated region
        $region17: #{tpu_custom_call.1} parent=11 // pred_check
          %p386 = pneg %p183
        $region18: #{tpu_custom_call.1} parent=11 // pred_check_branch
          %388 = sbr.rel (%p386) target = $region20
        $region19: #{tpu_custom_call.1} parent=11 // pred_region
          _
        $region20: #{tpu_custom_call.1} parent=11 // pred_fallthru
          _
        // Predicated region
        $region21: #{tpu_custom_call.1} parent=11 // pred_check
          %p389 = pneg %p204
        $region22: #{tpu_custom_call.1} parent=11 // pred_check_branch
          %391 = sbr.rel (%p389) target = $region24
        $region23: #{tpu_custom_call.1} parent=11 // pred_region
          _
        $region24: #{tpu_custom_call.1} parent=11 // pred_fallthru
          _
        // Predicated region
        $region25: #{tpu_custom_call.1} parent=11 // pred_check
          %p392 = pneg %p225
        $region26: #{tpu_custom_call.1} parent=11 // pred_check_branch
          %394 = sbr.rel (%p392) target = $region28
        $region27: #{tpu_custom_call.1} parent=11 // pred_region
          %s396 = ssub.s32 9216, 9216
          %397 = vsyncadd [#allocation10], %s396
          %s398 = sshll.u32 [#allocation11], 4
          %s399 = int_to_ptr.vmem [resolvable:$true] %s398
          %404 = dma.hbm_to_vmem [thread:$0]  %s6, 9216, %s399, [#allocation10], 64, 64, 4
        $region28: #{tpu_custom_call.1} parent=11 // pred_fallthru
          _
        // Predicated region
        $region29: #{tpu_custom_call.1} parent=11 // pred_check
          %p405 = pneg %p246
        $region30: #{tpu_custom_call.1} parent=11 // pred_check_branch
          %407 = sbr.rel (%p405) target = $region32
        $region31: #{tpu_custom_call.1} parent=11 // pred_region
          _
        $region32: #{tpu_custom_call.1} parent=11 // pred_fallthru
          _
        // Predicated region
        $region33: #{tpu_custom_call.1} parent=11 // pred_check
          %p408 = pneg %p267
        $region34: #{tpu_custom_call.1} parent=11 // pred_check_branch
          %410 = sbr.rel (%p408) target = $region36
        $region35: #{tpu_custom_call.1} parent=11 // pred_region
          _
        $region36: #{tpu_custom_call.1} parent=11 // pred_fallthru
          _
        // Predicated region
        $region37: #{tpu_custom_call.1} parent=11 // pred_check
          %p411 = pneg %p288
        $region38: #{tpu_custom_call.1} parent=11 // pred_check_branch
          %413 = sbr.rel (%p411) target = $region40
        $region39: #{tpu_custom_call.1} parent=11 // pred_region
          %s415 = ssub.s32 1024, 1024
          %416 = vsyncadd [#allocation13], %s415
          %s417 = sshll.u32 [#allocation12], 4
          %s418 = int_to_ptr.vmem [resolvable:$true] %s417
          %423 = dma.hbm_to_vmem [thread:$0]  %s9, 1024, %s418, [#allocation13], 64, 64, 4
        $region40: #{tpu_custom_call.1} parent=11 // pred_fallthru
          _
        // Predicated region
        $region41: #{tpu_custom_call.1} parent=11 // pred_check
          %p424 = pneg %p309
        $region42: #{tpu_custom_call.1} parent=11 // pred_check_branch
          %426 = sbr.rel (%p424) target = $region44
        $region43: #{tpu_custom_call.1} parent=11 // pred_region
          _
        $region44: #{tpu_custom_call.1} parent=11 // pred_fallthru
          _
        // Predicated region
        $region45: #{tpu_custom_call.1} parent=11 // pred_check
          %p427 = pneg %p330
        $region46: #{tpu_custom_call.1} parent=11 // pred_check_branch
          %429 = sbr.rel (%p427) target = $region48
        $region47: #{tpu_custom_call.1} parent=11 // pred_region
          _
        $region48: #{tpu_custom_call.1} parent=11 // pred_fallthru
          _
      $region12: #{tpu_custom_call.1} parent=5 // pred_fallthru
        _
      %p430 = scmp.lt.s32.totalorder %s29, 2
      // Predicated region
      $region49: #{tpu_custom_call.1} parent=5 // pred_check
        %p431 = pneg %p430
      $region50: #{tpu_custom_call.1} parent=5 // pred_check_branch
        %433 = sbr.rel (%p431) target = $region52
      $region51: #{tpu_custom_call.1} parent=5 // pred_region
        // Predicated region
        $region53: #{tpu_custom_call.1} parent=51 // pred_check
          %p434 = pneg %p71
        $region54: #{tpu_custom_call.1} parent=51 // pred_check_branch
          %436 = sbr.rel (%p434) target = $region56
        $region55: #{tpu_custom_call.1} parent=51 // pred_region
          %s437 = sand.u32 %s61, 1
          %s438 = scalar_lea.sflag [#allocation4], %s437
          %s439 = sand.u32 %s61, 1
          %s440 = smul.addr %s439, 8
          %s441 = scalar_lea.vmem [#allocation3], %s440
          %s442 = smul.u32 %s37, 16
          %s443 = ssub.s32 %s442, 1
          %p444 = scmp.gt.s32.totalorder %s443, 0
          %s445 = scalar_select %p444, %s443, 0
          %s447 = ssub.s32 128, 128
          %448 = vsyncadd %s438, %s447
          %s449 = smul.addr %s445, 2
          %s450 = smul.addr %s36, 32
          %s451 = sadd.s32 %s449, %s450
          %s452 = smul.addr %s451, 64
          %s453 = scalar_lea.hbm %s0, %s452
          %s454 = sshll.u32 %s441, 4
          %s455 = int_to_ptr.vmem [resolvable:$true] %s454
          %460 = dma.hbm_to_vmem [thread:$0]  %s453, 128, %s455, %s438, 64, 64, 4
        $region56: #{tpu_custom_call.1} parent=51 // pred_fallthru
          _
        // Predicated region
        $region57: #{tpu_custom_call.1} parent=51 // pred_check
          %p461 = pneg %p99
        $region58: #{tpu_custom_call.1} parent=51 // pred_check_branch
          %463 = sbr.rel (%p461) target = $region60
        $region59: #{tpu_custom_call.1} parent=51 // pred_region
          %s464 = sand.u32 %s29, 1
          %s465 = scalar_lea.sflag [#allocation7], %s464
          %s466 = sand.u32 %s89, 1
          %s467 = smul.addr %s466, 128
          %s468 = scalar_lea.vmem [#allocation6], %s467
          %s469 = smul.u32 16, %s37
          %s471 = ssub.s32 2048, 2048
          %472 = vsyncadd %s465, %s471
          %s473 = smul.addr %s469, 2
          %s474 = smul.addr %s36, 32
          %s475 = sadd.s32 %s473, %s474
          %s476 = smul.addr %s475, 64
          %s477 = scalar_lea.hbm %s1, %s476
          %s478 = sshll.u32 %s468, 4
          %s479 = int_to_ptr.vmem [resolvable:$true] %s478
          %484 = dma.hbm_to_vmem [thread:$0]  %s477, 2048, %s479, %s465, 64, 64, 4
        $region60: #{tpu_custom_call.1} parent=51 // pred_fallthru
          _
        // Predicated region
        $region61: #{tpu_custom_call.1} parent=51 // pred_check
          %p485 = pneg %p135
        $region62: #{tpu_custom_call.1} parent=51 // pred_check_branch
          %487 = sbr.rel (%p485) target = $region64
        $region63: #{tpu_custom_call.1} parent=51 // pred_region
          %s488 = sand.u32 %s29, 1
          %s489 = scalar_lea.sflag [#allocation7], %s488
          %s490 = sand.u32 %s125, 1
          %s491 = smul.addr %s490, 8
          %s492 = scalar_lea.vmem [#allocation8], %s491
          %s493 = sadd.s32 %s37, 1
          %s494 = smul.u32 %s493, 16
          %p495 = scmp.lt.s32.totalorder %s494, 15
          %s496 = scalar_select %p495, %s494, 15
          %s498 = ssub.s32 128, 128
          %499 = vsyncadd %s489, %s498
          %s500 = smul.addr %s496, 2
          %s501 = smul.addr %s36, 32
          %s502 = sadd.s32 %s500, %s501
          %s503 = smul.addr %s502, 64
          %s504 = scalar_lea.hbm %s2, %s503
          %s505 = sshll.u32 %s492, 4
          %s506 = int_to_ptr.vmem [resolvable:$true] %s505
          %511 = dma.hbm_to_vmem [thread:$0]  %s504, 128, %s506, %s489, 64, 64, 4
        $region64: #{tpu_custom_call.1} parent=51 // pred_fallthru
          _
      $region52: #{tpu_custom_call.1} parent=5 // pred_fallthru
        _
      %p512 = scmp.le.s32.totalorder 1, %s29
      %p513 = scmp.lt.s32.totalorder %s29, 3
      %p514 = pnand %p512, %p513
      %p515 = pneg %p514
      // Predicated region
      $region65: #{tpu_custom_call.1} parent=5 // pred_check
        _
      $region66: #{tpu_custom_call.1} parent=5 // pred_check_branch
        %517 = sbr.rel (%p514) target = $region68
      $region67: #{tpu_custom_call.1} parent=5 // pred_region
        %s518 = ssub.s32 %s29, 1
        %s519 = sand.u32 %s64, 1
        %s520 = scalar_lea.sflag [#allocation4], %s519
        %s521 = sand.u32 %s64, 1
        %s522 = smul.addr %s521, 8
        %s523 = scalar_lea.vmem [#allocation3], %s522
        // Predicated region
        $region69: #{tpu_custom_call.1} parent=67 // pred_check
          %p524 = pneg %p77
        $region70: #{tpu_custom_call.1} parent=67 // pred_check_branch
          %526 = sbr.rel (%p524) target = $region72
        $region71: #{tpu_custom_call.1} parent=67 // pred_region
          %527 = dma.done %s520, 128
        $region72: #{tpu_custom_call.1} parent=67 // pred_fallthru
          _
        %s528 = sand.u32 %s34, 1
        %s529 = scalar_lea.sflag [#allocation7], %s528
        %s530 = sand.u32 %s92, 1
        %s531 = smul.addr %s530, 128
        %s532 = scalar_lea.vmem [#allocation6], %s531
        // Predicated region
        $region73: #{tpu_custom_call.1} parent=67 // pred_check
          %p533 = pneg %p105
        $region74: #{tpu_custom_call.1} parent=67 // pred_check_branch
          %535 = sbr.rel (%p533) target = $region76
        $region75: #{tpu_custom_call.1} parent=67 // pred_region
          %536 = dma.done %s529, 2048
        $region76: #{tpu_custom_call.1} parent=67 // pred_fallthru
          _
        %s537 = sand.u32 %s34, 1
        %s538 = scalar_lea.sflag [#allocation7], %s537
        %s539 = sand.u32 %s128, 1
        %s540 = smul.addr %s539, 8
        %s541 = scalar_lea.vmem [#allocation8], %s540
        // Predicated region
        $region77: #{tpu_custom_call.1} parent=67 // pred_check
          %p542 = pneg %p141
        $region78: #{tpu_custom_call.1} parent=67 // pred_check_branch
          %544 = sbr.rel (%p542) target = $region80
        $region79: #{tpu_custom_call.1} parent=67 // pred_region
          %545 = dma.done %s538, 128
        $region80: #{tpu_custom_call.1} parent=67 // pred_fallthru
          _
        // Predicated region
        $region81: #{tpu_custom_call.1} parent=67 // pred_check
          %p546 = pneg %p162
        $region82: #{tpu_custom_call.1} parent=67 // pred_check_branch
          %548 = sbr.rel (%p546) target = $region84
        $region83: #{tpu_custom_call.1} parent=67 // pred_region
          %549 = dma.done [#allocation10], 1024
        $region84: #{tpu_custom_call.1} parent=67 // pred_fallthru
          _
        // Predicated region
        $region85: #{tpu_custom_call.1} parent=67 // pred_check
          %p550 = pneg %p225
        $region86: #{tpu_custom_call.1} parent=67 // pred_check_branch
          %552 = sbr.rel (%p550) target = $region88
        $region87: #{tpu_custom_call.1} parent=67 // pred_region
          %553 = dma.done [#allocation10], 9216
        $region88: #{tpu_custom_call.1} parent=67 // pred_fallthru
          _
        // Predicated region
        $region89: #{tpu_custom_call.1} parent=67 // pred_check
          %p554 = pneg %p288
        $region90: #{tpu_custom_call.1} parent=67 // pred_check_branch
          %556 = sbr.rel (%p554) target = $region92
        $region91: #{tpu_custom_call.1} parent=67 // pred_region
          %557 = dma.done [#allocation13], 1024
        $region92: #{tpu_custom_call.1} parent=67 // pred_fallthru
          _
        %s558 = sand.u32 %s64, 1
        %s559 = scalar_lea.sflag [#allocation4], %s558
        %s560 = sand.u32 %s64, 1
        %s561 = smul.addr %s560, 8
        %s562 = scalar_lea.vmem [#allocation3], %s561
        %p563 = pneg %p77
        %p564 = pneg %p74
        %s565 = sand.u32 %s34, 1
        %s566 = scalar_lea.sflag [#allocation7], %s565
        %s567 = sand.u32 %s92, 1
        %s568 = smul.addr %s567, 128
        %s569 = scalar_lea.vmem [#allocation6], %s568
        %p570 = pneg %p105
        %p571 = pneg %p102
        %s572 = sand.u32 %s34, 1
        %s573 = scalar_lea.sflag [#allocation7], %s572
        %s574 = sand.u32 %s128, 1
        %s575 = smul.addr %s574, 8
        %s576 = scalar_lea.vmem [#allocation8], %s575
        %p577 = pneg %p141
        %p578 = pneg %p138
        %p579 = pneg %p162
        %p580 = pneg %p159
        %p581 = pneg %p183
        %p582 = pneg %p180
        %p583 = pneg %p204
        %p584 = pneg %p201
        %p585 = pneg %p225
        %p586 = pneg %p222
        %p587 = pneg %p246
        %p588 = pneg %p243
        %p589 = pneg %p267
        %p590 = pneg %p264
        %p591 = pneg %p288
        %p592 = pneg %p285
        %p593 = pneg %p309
        %p594 = pneg %p306
        %p595 = pneg %p330
        %p596 = pneg %p327
        %p597 = pneg %p358
        %p598 = pneg %p355
        %s599 = sand.u32 %s345, 1
        %s600 = scalar_lea.sflag [#allocation5], %s599
        %s601 = sand.u32 %s345, 1
        %s602 = smul.addr %s601, 128
        %s603 = scalar_lea.vmem [#allocation14], %s602
        %s604 = smul.u32 %s39, 16
        %s605 = ssub.s32 %s604, 1
        %p606 = scmp.gt.s32.totalorder %s605, 0
        %s607 = scalar_select %p606, %s605, 0
        %s608 = smul.u32 16, %s39
        %s609 = sadd.s32 %s39, 1
        %s610 = smul.u32 %s609, 16
        %p611 = scmp.lt.s32.totalorder %s610, 15
        %s612 = scalar_select %p611, %s610, 15
        %s613 = smul.u32 16, %s39
        %v615 = vld [vmem:[#allocation9] sm:$0xf]
        %v616 = vld [vmem:[#allocation9 + $0x4] sm:$0xf]
        %v617 = vld [vmem:[#allocation9 + $0x8] sm:$0xf]
        %v618 = vld [vmem:[#allocation9 + $0xc] sm:$0xf]
        %v619 = vld [vmem:[#allocation9 + $0x10] sm:$0xf]
        %v620 = vld [vmem:[#allocation9 + $0x14] sm:$0xf]
        %v621 = vld [vmem:[#allocation9 + $0x18] sm:$0xf]
        %v622 = vld [vmem:[#allocation9 + $0x1c] sm:$0xf]
        %v623 = vld [vmem:[#allocation9 + $0x20] sm:$0xf]
        %v624 = vld [vmem:[#allocation9 + $0x24] sm:$0xf]
        %v625 = vld [vmem:[#allocation9 + $0x28] sm:$0xf]
        %v626 = vld [vmem:[#allocation9 + $0x2c] sm:$0xf]
        %v627 = vld [vmem:[#allocation9 + $0x30] sm:$0xf]
        %v628 = vld [vmem:[#allocation9 + $0x34] sm:$0xf]
        %v629 = vld [vmem:[#allocation9 + $0x38] sm:$0xf]
        %v630 = vld [vmem:[#allocation9 + $0x3c] sm:$0xf]
        %v631 = vld [vmem:[%s4] sm:$0x1]
        %v632 = vld [vmem:[%s5] sm:$0x1]
        %633 = vst [vmem:[#allocation2] sm:$0xff] 0.0
        %634 = vst [vmem:[#allocation2 + $0x8] sm:$0xff] 0.0
        %635 = vst [vmem:[#allocation2 + $0x10] sm:$0x3] 0.0
        %636 = vst [vmem:[#allocation2 + $0x18] sm:$0xff] 0.0
        %637 = vst [vmem:[#allocation2 + $0x20] sm:$0xff] 0.0
        %638 = vst [vmem:[#allocation2 + $0x28] sm:$0x3] 0.0
        %639 = vst [vmem:[#allocation2 + $0x30] sm:$0xff] 0.0
        %640 = vst [vmem:[#allocation2 + $0x38] sm:$0xff] 0.0
        %641 = vst [vmem:[#allocation2 + $0x40] sm:$0x3] 0.0
        %642 = vst [vmem:[#allocation2 + $0x48] sm:$0xff] 0.0
        %643 = vst [vmem:[#allocation2 + $0x50] sm:$0xff] 0.0
        %644 = vst [vmem:[#allocation2 + $0x58] sm:$0x3] 0.0
        %645 = vst [vmem:[#allocation2 + $0x60] sm:$0xff] 0.0
        %646 = vst [vmem:[#allocation2 + $0x68] sm:$0xff] 0.0
        %647 = vst [vmem:[#allocation2 + $0x70] sm:$0x3] 0.0
        %648 = vst [vmem:[#allocation2 + $0x78] sm:$0xff] 0.0
        %649 = vst [vmem:[#allocation2 + $0x80] sm:$0xff] 0.0
        %650 = vst [vmem:[#allocation2 + $0x88] sm:$0x3] 0.0
        %651 = vst [vmem:[#allocation2 + $0x90] sm:$0xff] 0.0
        %652 = vst [vmem:[#allocation2 + $0x98] sm:$0xff] 0.0
        %653 = vst [vmem:[#allocation2 + $0xa0] sm:$0x3] 0.0
        %654 = vst [vmem:[#allocation2 + $0xa8] sm:$0xff] 0.0
        %655 = vst [vmem:[#allocation2 + $0xb0] sm:$0xff] 0.0
        %656 = vst [vmem:[#allocation2 + $0xb8] sm:$0x3] 0.0
        %657 = vst [vmem:[#allocation2 + $0xc0] sm:$0xff] 0.0
        %658 = vst [vmem:[#allocation2 + $0xc8] sm:$0xff] 0.0
        %659 = vst [vmem:[#allocation2 + $0xd0] sm:$0x3] 0.0
        %660 = vst [vmem:[#allocation2 + $0xd8] sm:$0xff] 0.0
        %661 = vst [vmem:[#allocation2 + $0xe0] sm:$0xff] 0.0
        %662 = vst [vmem:[#allocation2 + $0xe8] sm:$0x3] 0.0
        %663 = vst [vmem:[#allocation2 + $0xf0] sm:$0xff] 0.0
        %664 = vst [vmem:[#allocation2 + $0xf8] sm:$0xff] 0.0
        %665 = vst [vmem:[#allocation2 + $0x100] sm:$0x3] 0.0
        %666 = vst [vmem:[#allocation2 + $0x108] sm:$0xff] 0.0
        %667 = vst [vmem:[#allocation2 + $0x110] sm:$0xff] 0.0
        %668 = vst [vmem:[#allocation2 + $0x118] sm:$0x3] 0.0
        %669 = vst [vmem:[#allocation2 + $0x120] sm:$0xff] 0.0
        %670 = vst [vmem:[#allocation2 + $0x128] sm:$0xff] 0.0
        %671 = vst [vmem:[#allocation2 + $0x130] sm:$0x3] 0.0
        %672 = vst [vmem:[#allocation2 + $0x138] sm:$0xff] 0.0
        %673 = vst [vmem:[#allocation2 + $0x140] sm:$0xff] 0.0
        %674 = vst [vmem:[#allocation2 + $0x148] sm:$0x3] 0.0
        %675 = vst [vmem:[#allocation2 + $0x150] sm:$0xff] 0.0
        %676 = vst [vmem:[#allocation2 + $0x158] sm:$0xff] 0.0
        %677 = vst [vmem:[#allocation2 + $0x160] sm:$0x3] 0.0
        %678 = vst [vmem:[#allocation2 + $0x168] sm:$0xff] 0.0
        %679 = vst [vmem:[#allocation2 + $0x170] sm:$0xff] 0.0
        %680 = vst [vmem:[#allocation2 + $0x178] sm:$0x3] 0.0
        %681 = vst [vmem:[#allocation2 + $0x180] sm:$0xff] 0.0
        %682 = vst [vmem:[#allocation2 + $0x188] sm:$0xff] 0.0
        %683 = vst [vmem:[#allocation2 + $0x190] sm:$0x3] 0.0
        %684 = vst [vmem:[#allocation2 + $0x198] sm:$0xff] 0.0
        %685 = vst [vmem:[#allocation2 + $0x1a0] sm:$0xff] 0.0
        %686 = vst [vmem:[#allocation2 + $0x1a8] sm:$0x3] 0.0
        %v687 = vld [vmem:[%s532] sm:$0xf]
        %v688 = vld [vmem:[%s532 + $0x4] sm:$0xf]
        %v689 = vld [vmem:[%s532 + $0x8] sm:$0xf]
        %v690 = vld [vmem:[%s532 + $0xc] sm:$0xf]
        %v691 = vld [vmem:[%s532 + $0x10] sm:$0xf]
        %v692 = vld [vmem:[%s532 + $0x14] sm:$0xf]
        %v693 = vld [vmem:[%s532 + $0x18] sm:$0xf]
        %v694 = vld [vmem:[%s532 + $0x1c] sm:$0xf]
        %v695 = vld [vmem:[%s532 + $0x20] sm:$0xf]
        %v696 = vld [vmem:[%s532 + $0x24] sm:$0xf]
        %v697 = vld [vmem:[%s532 + $0x28] sm:$0xf]
        %v698 = vld [vmem:[%s532 + $0x2c] sm:$0xf]
        %v699 = vld [vmem:[%s532 + $0x30] sm:$0xf]
        %v700 = vld [vmem:[%s532 + $0x34] sm:$0xf]
        %v701 = vld [vmem:[%s532 + $0x38] sm:$0xf]
        %v702 = vld [vmem:[%s532 + $0x3c] sm:$0xf]
        %v703 = vld [vmem:[%s532 + $0x40] sm:$0xf]
        %v704 = vld [vmem:[%s532 + $0x44] sm:$0xf]
        %v705 = vld [vmem:[%s532 + $0x48] sm:$0xf]
        %v706 = vld [vmem:[%s532 + $0x4c] sm:$0xf]
        %v707 = vld [vmem:[%s532 + $0x50] sm:$0xf]
        %v708 = vld [vmem:[%s532 + $0x54] sm:$0xf]
        %v709 = vld [vmem:[%s532 + $0x58] sm:$0xf]
        %v710 = vld [vmem:[%s532 + $0x5c] sm:$0xf]
        %v711 = vld [vmem:[%s532 + $0x60] sm:$0xf]
        %v712 = vld [vmem:[%s532 + $0x64] sm:$0xf]
        %v713 = vld [vmem:[%s532 + $0x68] sm:$0xf]
        %v714 = vld [vmem:[%s532 + $0x6c] sm:$0xf]
        %v715 = vld [vmem:[%s532 + $0x70] sm:$0xf]
        %v716 = vld [vmem:[%s532 + $0x74] sm:$0xf]
        %v717 = vld [vmem:[%s532 + $0x78] sm:$0xf]
        %v718 = vld [vmem:[%s532 + $0x7c] sm:$0xf]
        %v751 = vunpack.c.l.b16 %v687
        %v752 = vunpack.c.l.b16 %v688
        %v753 = vunpack.c.l.b16 %v689
        %v754 = vunpack.c.l.b16 %v690
        %v755 = vunpack.c.l.b16 %v691
        %v756 = vunpack.c.l.b16 %v692
        %v757 = vunpack.c.l.b16 %v693
        %v758 = vunpack.c.l.b16 %v694
        %v759 = vunpack.c.l.b16 %v695
        %v760 = vunpack.c.l.b16 %v696
        %v761 = vunpack.c.l.b16 %v697
        %v762 = vunpack.c.l.b16 %v698
        %v763 = vunpack.c.l.b16 %v699
        %v764 = vunpack.c.l.b16 %v700
        %v765 = vunpack.c.l.b16 %v701
        %v766 = vunpack.c.l.b16 %v702
        %v767 = vunpack.c.l.b16 %v703
        %v768 = vunpack.c.l.b16 %v704
        %v769 = vunpack.c.l.b16 %v705
        %v770 = vunpack.c.l.b16 %v706
        %v771 = vunpack.c.l.b16 %v707
        %v772 = vunpack.c.l.b16 %v708
        %v773 = vunpack.c.l.b16 %v709
        %v774 = vunpack.c.l.b16 %v710
        %v775 = vunpack.c.l.b16 %v711
        %v776 = vunpack.c.l.b16 %v712
        %v777 = vunpack.c.l.b16 %v713
        %v778 = vunpack.c.l.b16 %v714
        %v779 = vunpack.c.l.b16 %v715
        %v780 = vunpack.c.l.b16 %v716
        %v781 = vunpack.c.l.b16 %v717
        %v782 = vunpack.c.l.b16 %v718
        %v783 = vpack.c.b16 %v752, %v751
        %v784 = vpack.c.b16 %v754, %v753
        %v785 = vpack.c.b16 %v756, %v755
        %v786 = vpack.c.b16 %v758, %v757
        %v787 = vpack.c.b16 %v760, %v759
        %v788 = vpack.c.b16 %v762, %v761
        %v789 = vpack.c.b16 %v764, %v763
        %v790 = vpack.c.b16 %v766, %v765
        %v791 = vpack.c.b16 %v768, %v767
        %v792 = vpack.c.b16 %v770, %v769
        %v793 = vpack.c.b16 %v772, %v771
        %v794 = vpack.c.b16 %v774, %v773
        %v795 = vpack.c.b16 %v776, %v775
        %v796 = vpack.c.b16 %v778, %v777
        %v797 = vpack.c.b16 %v780, %v779
        %v798 = vpack.c.b16 %v782, %v781
        %v831 = vunpack.c.l.b16 %v615
        %v832 = vunpack.c.l.b16 %v616
        %v833 = vunpack.c.l.b16 %v617
        %v834 = vunpack.c.l.b16 %v618
        %v835 = vunpack.c.l.b16 %v619
        %v836 = vunpack.c.l.b16 %v620
        %v837 = vunpack.c.l.b16 %v621
        %v838 = vunpack.c.l.b16 %v622
        %v839 = vunpack.c.l.b16 %v623
        %v840 = vunpack.c.l.b16 %v624
        %v841 = vunpack.c.l.b16 %v625
        %v842 = vunpack.c.l.b16 %v626
        %v843 = vunpack.c.l.b16 %v627
        %v844 = vunpack.c.l.b16 %v628
        %v845 = vunpack.c.l.b16 %v629
        %v846 = vunpack.c.l.b16 %v630
        %v847 = vpack.c.b16 %v832, %v831
        %v848 = vpack.c.b16 %v834, %v833
        %v849 = vpack.c.b16 %v836, %v835
        %v850 = vpack.c.b16 %v838, %v837
        %v851 = vpack.c.b16 %v840, %v839
        %v852 = vpack.c.b16 %v842, %v841
        %v853 = vpack.c.b16 %v844, %v843
        %v854 = vpack.c.b16 %v846, %v845
        %863 = vmatprep.subr.bf16.mxu0 0
        %864 = vmatpush1.bf16.msra.mxu0 %v847
        %865 = vmatprep.subr.bf16.mxu0 0
        %866 = vmatpush1.bf16.msra.mxu0 %v848
        %867 = vmatprep.subr.bf16.mxu0 0
        %868 = vmatpush1.bf16.msra.mxu0 %v849
        %869 = vmatprep.subr.bf16.mxu0 0
        %870 = vmatpush1.bf16.msra.mxu0 %v850
        %871 = vmatprep.subr.bf16.mxu0 0
        %872 = vmatpush1.bf16.msra.mxu0 %v851
        %873 = vmatprep.subr.bf16.mxu0 0
        %874 = vmatpush1.bf16.msra.mxu0 %v852
        %875 = vmatprep.subr.bf16.mxu0 0
        %876 = vmatpush1.bf16.msra.mxu0 %v853
        %877 = vmatprep.subr.bf16.mxu0 0
        %878 = vmatpush1.bf16.msra.mxu0 %v854
        %879 = vmatprep.subr.bf16.mxu0 0
        %880 = vmatpush1.bf16.msra.mxu0 0
        %881 = vmatprep.subr.bf16.mxu0 0
        %882 = vmatpush1.bf16.msra.mxu0 0
        %883 = vmatprep.subr.bf16.mxu0 0
        %884 = vmatpush1.bf16.msra.mxu0 0
        %885 = vmatprep.subr.bf16.mxu0 0
        %886 = vmatpush1.bf16.msra.mxu0 0
        %887 = vmatprep.subr.bf16.mxu0 0
        %888 = vmatpush1.bf16.msra.mxu0 0
        %889 = vmatprep.subr.bf16.mxu0 0
        %890 = vmatpush1.bf16.msra.mxu0 0
        %891 = vmatprep.subr.bf16.mxu0 0
        %892 = vmatpush1.bf16.msra.mxu0 0
        %893 = vmatprep.subr.bf16.mxu0 0
        %894 = vmatpush1.bf16.msra.mxu0 0
        %895 = vmatprep.mubr.bf16.mxu0 0
        %896 = vmatmul.mubr.bf16.gmra.mrb[0].mxu0 %v783
        %v897 = vpop.f32.mrb[0].mxu0
        %v898 = vadd.f32 0.0, %v897
        %v899 = vpop.f32.mrb[0].mxu0
        %v900 = vpop.f32.mrb[0].mxu0
        %v901 = vadd.f32 0.0, %v900
        %v902 = vpop.f32.mrb[0].mxu0
        %903 = vmatprep.mubr.bf16.mxu0 0
        %904 = vmatmul.mubr.bf16.gmra.mrb[0].mxu0 %v784
        %v905 = vpop.f32.mrb[0].mxu0
        %v906 = vadd.f32 0.0, %v905
        %v907 = vpop.f32.mrb[0].mxu0
        %v908 = vpop.f32.mrb[0].mxu0
        %v909 = vadd.f32 0.0, %v908
        %v910 = vpop.f32.mrb[0].mxu0
        %911 = vmatprep.mubr.bf16.mxu0 0
        %912 = vmatmul.mubr.bf16.gmra.mrb[0].mxu0 %v785
        %v913 = vpop.f32.mrb[0].mxu0
        %v914 = vadd.f32 0.0, %v913
        %v915 = vpop.f32.mrb[0].mxu0
        %v916 = vpop.f32.mrb[0].mxu0
        %v917 = vadd.f32 0.0, %v916
        %v918 = vpop.f32.mrb[0].mxu0
        %919 = vmatprep.mubr.bf16.mxu0 0
        %920 = vmatmul.mubr.bf16.gmra.mrb[0].mxu0 %v786
        %v921 = vpop.f32.mrb[0].mxu0
        %v922 = vadd.f32 0.0, %v921
        %v923 = vpop.f32.mrb[0].mxu0
        %v924 = vpop.f32.mrb[0].mxu0
        %v925 = vadd.f32 0.0, %v924
        %v926 = vpop.f32.mrb[0].mxu0
        %927 = vmatprep.mubr.bf16.mxu0 0
        %928 = vmatmul.mubr.bf16.gmra.mrb[0].mxu0 %v787
        %v929 = vpop.f32.mrb[0].mxu0
        %v930 = vadd.f32 0.0, %v929
        %v931 = vpop.f32.mrb[0].mxu0
        %v932 = vpop.f32.mrb[0].mxu0
        %v933 = vadd.f32 0.0, %v932
        %v934 = vpop.f32.mrb[0].mxu0
        %935 = vmatprep.mubr.bf16.mxu0 0
        %936 = vmatmul.mubr.bf16.gmra.mrb[0].mxu0 %v788
        %v937 = vpop.f32.mrb[0].mxu0
        %v938 = vadd.f32 0.0, %v937
        %v939 = vpop.f32.mrb[0].mxu0
        %v940 = vpop.f32.mrb[0].mxu0
        %v941 = vadd.f32 0.0, %v940
        %v942 = vpop.f32.mrb[0].mxu0
        %943 = vmatprep.mubr.bf16.mxu0 0
        %944 = vmatmul.mubr.bf16.gmra.mrb[0].mxu0 %v789
        %v945 = vpop.f32.mrb[0].mxu0
        %v946 = vadd.f32 0.0, %v945
        %v947 = vpop.f32.mrb[0].mxu0
        %v948 = vpop.f32.mrb[0].mxu0
        %v949 = vadd.f32 0.0, %v948
        %v950 = vpop.f32.mrb[0].mxu0
        %951 = vmatprep.mubr.bf16.mxu0 0
        %952 = vmatmul.mubr.bf16.gmra.mrb[0].mxu0 %v790
        %v953 = vpop.f32.mrb[0].mxu0
        %v954 = vadd.f32 0.0, %v953
        %v955 = vpop.f32.mrb[0].mxu0
        %v956 = vpop.f32.mrb[0].mxu0
        %v957 = vadd.f32 0.0, %v956
        %v958 = vpop.f32.mrb[0].mxu0
        %959 = vmatprep.mubr.bf16.mxu0 0
        %960 = vmatmul.mubr.bf16.gmra.mrb[0].mxu0 %v791
        %v961 = vpop.f32.mrb[0].mxu0
        %v962 = vadd.f32 0.0, %v961
        %v963 = vpop.f32.mrb[0].mxu0
        %v964 = vpop.f32.mrb[0].mxu0
        %v965 = vadd.f32 0.0, %v964
        %v966 = vpop.f32.mrb[0].mxu0
        %967 = vmatprep.mubr.bf16.mxu0 0
        %968 = vmatmul.mubr.bf16.gmra.mrb[0].mxu0 %v792
        %v969 = vpop.f32.mrb[0].mxu0
        %v970 = vadd.f32 0.0, %v969
        %v971 = vpop.f32.mrb[0].mxu0
        %v972 = vpop.f32.mrb[0].mxu0
        %v973 = vadd.f32 0.0, %v972
        %v974 = vpop.f32.mrb[0].mxu0
        %975 = vmatprep.mubr.bf16.mxu0 0
        %976 = vmatmul.mubr.bf16.gmra.mrb[0].mxu0 %v793
        %v977 = vpop.f32.mrb[0].mxu0
        %v978 = vadd.f32 0.0, %v977
        %v979 = vpop.f32.mrb[0].mxu0
        %v980 = vpop.f32.mrb[0].mxu0
        %v981 = vadd.f32 0.0, %v980
        %v982 = vpop.f32.mrb[0].mxu0
        %983 = vmatprep.mubr.bf16.mxu0 0
        %984 = vmatmul.mubr.bf16.gmra.mrb[0].mxu0 %v794
        %v985 = vpop.f32.mrb[0].mxu0
        %v986 = vadd.f32 0.0, %v985
        %v987 = vpop.f32.mrb[0].mxu0
        %v988 = vpop.f32.mrb[0].mxu0
        %v989 = vadd.f32 0.0, %v988
        %v990 = vpop.f32.mrb[0].mxu0
        %991 = vmatprep.mubr.bf16.mxu0 0
        %992 = vmatmul.mubr.bf16.gmra.mrb[0].mxu0 %v795
        %v993 = vpop.f32.mrb[0].mxu0
        %v994 = vadd.f32 0.0, %v993
        %v995 = vpop.f32.mrb[0].mxu0
        %v996 = vpop.f32.mrb[0].mxu0
        %v997 = vadd.f32 0.0, %v996
        %v998 = vpop.f32.mrb[0].mxu0
        %999 = vmatprep.mubr.bf16.mxu0 0
        %1000 = vmatmul.mubr.bf16.gmra.mrb[0].mxu0 %v796
        %v1001 = vpop.f32.mrb[0].mxu0
        %v1002 = vadd.f32 0.0, %v1001
        %v1003 = vpop.f32.mrb[0].mxu0
        %v1004 = vpop.f32.mrb[0].mxu0
        %v1005 = vadd.f32 0.0, %v1004
        %v1006 = vpop.f32.mrb[0].mxu0
        %1007 = vmatprep.mubr.bf16.mxu0 0
        %1008 = vmatmul.mubr.bf16.gmra.mrb[0].mxu0 %v797
        %v1009 = vpop.f32.mrb[0].mxu0
        %v1010 = vadd.f32 0.0, %v1009
        %v1011 = vpop.f32.mrb[0].mxu0
        %v1012 = vpop.f32.mrb[0].mxu0
        %v1013 = vadd.f32 0.0, %v1012
        %v1014 = vpop.f32.mrb[0].mxu0
        %1015 = vmatprep.mubr.bf16.mxu0 0
        %1016 = vmatmul.mubr.bf16.gmra.mrb[0].mxu0 %v798
        %v1017 = vpop.f32.mrb[0].mxu0
        %v1018 = vadd.f32 0.0, %v1017
        %v1019 = vpop.f32.mrb[0].mxu0
        %v1020 = vpop.f32.mrb[0].mxu0
        %v1021 = vadd.f32 0.0, %v1020
        %v1022 = vpop.f32.mrb[0].mxu0
        %1023 = vdwg.mxu0
        %v1025 = vlaneseq
        %v1026 = vshrl.u32 %v1025, 7
        %v1027 = vsub.s32 0, %v1026
        %v1028 = vrot.slane %v631, %v1027
        %v1030 = vmul.f32 %v898, %v1028
        %v1031 = vmul.f32 %v901, %v1028
        %v1032 = vmul.f32 %v906, %v1028
        %v1033 = vmul.f32 %v909, %v1028
        %v1034 = vmul.f32 %v914, %v1028
        %v1035 = vmul.f32 %v917, %v1028
        %v1036 = vmul.f32 %v922, %v1028
        %v1037 = vmul.f32 %v925, %v1028
        %v1038 = vmul.f32 %v930, %v1028
        %v1039 = vmul.f32 %v933, %v1028
        %v1040 = vmul.f32 %v938, %v1028
        %v1041 = vmul.f32 %v941, %v1028
        %v1042 = vmul.f32 %v946, %v1028
        %v1043 = vmul.f32 %v949, %v1028
        %v1044 = vmul.f32 %v954, %v1028
        %v1045 = vmul.f32 %v957, %v1028
        %v1046 = vmul.f32 %v962, %v1028
        %v1047 = vmul.f32 %v965, %v1028
        %v1048 = vmul.f32 %v970, %v1028
        %v1049 = vmul.f32 %v973, %v1028
        %v1050 = vmul.f32 %v978, %v1028
        %v1051 = vmul.f32 %v981, %v1028
        %v1052 = vmul.f32 %v986, %v1028
        %v1053 = vmul.f32 %v989, %v1028
        %v1054 = vmul.f32 %v994, %v1028
        %v1055 = vmul.f32 %v997, %v1028
        %v1056 = vmul.f32 %v1002, %v1028
        %v1057 = vmul.f32 %v1005, %v1028
        %v1058 = vmul.f32 %v1010, %v1028
        %v1059 = vmul.f32 %v1013, %v1028
        %v1060 = vmul.f32 %v1018, %v1028
        %v1061 = vmul.f32 %v1021, %v1028
        %v1063 = vlaneseq
        %v1064 = vshrl.u32 %v1063, 7
        %v1065 = vsub.s32 0, %v1064
        %v1066 = vrot.slane %v632, %v1065
        %v1068 = vadd.f32 %v1030, %v1066
        %v1069 = vadd.f32 %v1031, %v1066
        %v1070 = vadd.f32 %v1032, %v1066
        %v1071 = vadd.f32 %v1033, %v1066
        %v1072 = vadd.f32 %v1034, %v1066
        %v1073 = vadd.f32 %v1035, %v1066
        %v1074 = vadd.f32 %v1036, %v1066
        %v1075 = vadd.f32 %v1037, %v1066
        %v1076 = vadd.f32 %v1038, %v1066
        %v1077 = vadd.f32 %v1039, %v1066
        %v1078 = vadd.f32 %v1040, %v1066
        %v1079 = vadd.f32 %v1041, %v1066
        %v1080 = vadd.f32 %v1042, %v1066
        %v1081 = vadd.f32 %v1043, %v1066
        %v1082 = vadd.f32 %v1044, %v1066
        %v1083 = vadd.f32 %v1045, %v1066
        %v1084 = vadd.f32 %v1046, %v1066
        %v1085 = vadd.f32 %v1047, %v1066
        %v1086 = vadd.f32 %v1048, %v1066
        %v1087 = vadd.f32 %v1049, %v1066
        %v1088 = vadd.f32 %v1050, %v1066
        %v1089 = vadd.f32 %v1051, %v1066
        %v1090 = vadd.f32 %v1052, %v1066
        %v1091 = vadd.f32 %v1053, %v1066
        %v1092 = vadd.f32 %v1054, %v1066
        %v1093 = vadd.f32 %v1055, %v1066
        %v1094 = vadd.f32 %v1056, %v1066
        %v1095 = vadd.f32 %v1057, %v1066
        %v1096 = vadd.f32 %v1058, %v1066
        %v1097 = vadd.f32 %v1059, %v1066
        %v1098 = vadd.f32 %v1060, %v1066
        %v1099 = vadd.f32 %v1061, %v1066
        %v1100 = vmax.f32 %v1068, 0.0
        %v1101 = vmax.f32 %v1069, 0.0
        %v1102 = vmax.f32 %v1070, 0.0
        %v1103 = vmax.f32 %v1071, 0.0
        %v1104 = vmax.f32 %v1072, 0.0
        %v1105 = vmax.f32 %v1073, 0.0
        %v1106 = vmax.f32 %v1074, 0.0
        %v1107 = vmax.f32 %v1075, 0.0
        %v1108 = vmax.f32 %v1076, 0.0
        %v1109 = vmax.f32 %v1077, 0.0
        %v1110 = vmax.f32 %v1078, 0.0
        %v1111 = vmax.f32 %v1079, 0.0
        %v1112 = vmax.f32 %v1080, 0.0
        %v1113 = vmax.f32 %v1081, 0.0
        %v1114 = vmax.f32 %v1082, 0.0
        %v1115 = vmax.f32 %v1083, 0.0
        %v1116 = vmax.f32 %v1084, 0.0
        %v1117 = vmax.f32 %v1085, 0.0
        %v1118 = vmax.f32 %v1086, 0.0
        %v1119 = vmax.f32 %v1087, 0.0
        %v1120 = vmax.f32 %v1088, 0.0
        %v1121 = vmax.f32 %v1089, 0.0
        %v1122 = vmax.f32 %v1090, 0.0
        %v1123 = vmax.f32 %v1091, 0.0
        %v1124 = vmax.f32 %v1092, 0.0
        %v1125 = vmax.f32 %v1093, 0.0
        %v1126 = vmax.f32 %v1094, 0.0
        %v1127 = vmax.f32 %v1095, 0.0
        %v1128 = vmax.f32 %v1096, 0.0
        %v1129 = vmax.f32 %v1097, 0.0
        %v1130 = vmax.f32 %v1098, 0.0
        %v1131 = vmax.f32 %v1099, 0.0
        %s1132 = scalar_lea.vmem [#allocation2], 24
        %1133 = vst [vmem:[%s1132 + $0x1] sm:$0xff] %v1100
        %1134 = vst [vmem:[%s1132 + $0x9] sm:$0xff] %v1101
        %1135 = vst [vmem:[%s1132 + $0x19] sm:$0xff] %v1102
        %1136 = vst [vmem:[%s1132 + $0x21] sm:$0xff] %v1103
        %1137 = vst [vmem:[%s1132 + $0x31] sm:$0xff] %v1104
        %1138 = vst [vmem:[%s1132 + $0x39] sm:$0xff] %v1105
        %1139 = vst [vmem:[%s1132 + $0x49] sm:$0xff] %v1106
        %1140 = vst [vmem:[%s1132 + $0x51] sm:$0xff] %v1107
        %1141 = vst [vmem:[%s1132 + $0x61] sm:$0xff] %v1108
        %1142 = vst [vmem:[%s1132 + $0x69] sm:$0xff] %v1109
        %1143 = vst [vmem:[%s1132 + $0x79] sm:$0xff] %v1110
        %1144 = vst [vmem:[%s1132 + $0x81] sm:$0xff] %v1111
        %1145 = vst [vmem:[%s1132 + $0x91] sm:$0xff] %v1112
        %1146 = vst [vmem:[%s1132 + $0x99] sm:$0xff] %v1113
        %1147 = vst [vmem:[%s1132 + $0xa9] sm:$0xff] %v1114
        %1148 = vst [vmem:[%s1132 + $0xb1] sm:$0xff] %v1115
        %1149 = vst [vmem:[%s1132 + $0xc1] sm:$0xff] %v1116
        %1150 = vst [vmem:[%s1132 + $0xc9] sm:$0xff] %v1117
        %1151 = vst [vmem:[%s1132 + $0xd9] sm:$0xff] %v1118
        %1152 = vst [vmem:[%s1132 + $0xe1] sm:$0xff] %v1119
        %1153 = vst [vmem:[%s1132 + $0xf1] sm:$0xff] %v1120
        %1154 = vst [vmem:[%s1132 + $0xf9] sm:$0xff] %v1121
        %1155 = vst [vmem:[%s1132 + $0x109] sm:$0xff] %v1122
        %1156 = vst [vmem:[%s1132 + $0x111] sm:$0xff] %v1123
        %1157 = vst [vmem:[%s1132 + $0x121] sm:$0xff] %v1124
        %1158 = vst [vmem:[%s1132 + $0x129] sm:$0xff] %v1125
        %1159 = vst [vmem:[%s1132 + $0x139] sm:$0xff] %v1126
        %1160 = vst [vmem:[%s1132 + $0x141] sm:$0xff] %v1127
        %1161 = vst [vmem:[%s1132 + $0x151] sm:$0xff] %v1128
        %1162 = vst [vmem:[%s1132 + $0x159] sm:$0xff] %v1129
        %1163 = vst [vmem:[%s1132 + $0x169] sm:$0xff] %v1130
        %1164 = vst [vmem:[%s1132 + $0x171] sm:$0xff] %v1131
        %p1165 = scmp.gt.s32.totalorder %s39, 0
        // Predicated region
        $region93: #{tpu_custom_call.1} parent=67 // pred_check
          %p1166 = pneg %p1165
        $region94: #{tpu_custom_call.1} parent=67 // pred_check_branch
          %1168 = sbr.rel (%p1166) target = $region96
        $region95: #{tpu_custom_call.1} parent=67 // pred_region
          %v1169 = vld [vmem:[%s523] sm:$0xf]
          %v1170 = vld [vmem:[%s523 + $0x4] sm:$0xf]
          %v1173 = vunpack.c.l.b16 %v1169
          %v1174 = vunpack.c.l.b16 %v1170
          %v1175 = vpack.c.b16 %v1174, %v1173
          %1177 = vmatprep.subr.bf16.mxu0 0
          %1178 = vmatpush1.bf16.msra.mxu0 %v847
          %1179 = vmatprep.subr.bf16.mxu0 0
          %1180 = vmatpush1.bf16.msra.mxu0 %v848
          %1181 = vmatprep.subr.bf16.mxu0 0
          %1182 = vmatpush1.bf16.msra.mxu0 %v849
          %1183 = vmatprep.subr.bf16.mxu0 0
          %1184 = vmatpush1.bf16.msra.mxu0 %v850
          %1185 = vmatprep.subr.bf16.mxu0 0
          %1186 = vmatpush1.bf16.msra.mxu0 %v851
          %1187 = vmatprep.subr.bf16.mxu0 0
          %1188 = vmatpush1.bf16.msra.mxu0 %v852
          %1189 = vmatprep.subr.bf16.mxu0 0
          %1190 = vmatpush1.bf16.msra.mxu0 %v853
          %1191 = vmatprep.subr.bf16.mxu0 0
          %1192 = vmatpush1.bf16.msra.mxu0 %v854
          %1193 = vmatprep.subr.bf16.mxu0 0
          %1194 = vmatpush1.bf16.msra.mxu0 0
          %1195 = vmatprep.subr.bf16.mxu0 0
          %1196 = vmatpush1.bf16.msra.mxu0 0
          %1197 = vmatprep.subr.bf16.mxu0 0
          %1198 = vmatpush1.bf16.msra.mxu0 0
          %1199 = vmatprep.subr.bf16.mxu0 0
          %1200 = vmatpush1.bf16.msra.mxu0 0
          %1201 = vmatprep.subr.bf16.mxu0 0
          %1202 = vmatpush1.bf16.msra.mxu0 0
          %1203 = vmatprep.subr.bf16.mxu0 0
          %1204 = vmatpush1.bf16.msra.mxu0 0
          %1205 = vmatprep.subr.bf16.mxu0 0
          %1206 = vmatpush1.bf16.msra.mxu0 0
          %1207 = vmatprep.subr.bf16.mxu0 0
          %1208 = vmatpush1.bf16.msra.mxu0 0
          %1209 = vmatprep.mubr.bf16.mxu0 0
          %1210 = vmatmul.mubr.bf16.gmra.mrb[0].mxu0 %v1175
          %v1211 = vpop.f32.mrb[0].mxu0
          %v1212 = vadd.f32 0.0, %v1211
          %v1213 = vpop.f32.mrb[0].mxu0
          %v1214 = vpop.f32.mrb[0].mxu0
          %v1215 = vadd.f32 0.0, %v1214
          %v1216 = vpop.f32.mrb[0].mxu0
          %1217 = vdwg.mxu0
          %v1218 = vmul.f32 %v1212, %v1028
          %v1219 = vmul.f32 %v1215, %v1028
          %v1220 = vadd.f32 %v1218, %v1066
          %v1221 = vadd.f32 %v1219, %v1066
          %v1222 = vmax.f32 %v1220, 0.0
          %v1223 = vmax.f32 %v1221, 0.0
          %1224 = vst [vmem:[#allocation2 + $0x1] sm:$0xff] %v1222
          %1225 = vst [vmem:[#allocation2 + $0x9] sm:$0xff] %v1223
        $region96: #{tpu_custom_call.1} parent=67 // pred_fallthru
          _
        %p1226 = scmp.lt.s32.totalorder %s39, 0
        // Predicated region
        $region97: #{tpu_custom_call.1} parent=67 // pred_check
          %p1227 = pneg %p1226
        $region98: #{tpu_custom_call.1} parent=67 // pred_check_branch
          %1229 = sbr.rel (%p1227) target = $region100
        $region99: #{tpu_custom_call.1} parent=67 // pred_region
          %v1230 = vld [vmem:[%s541] sm:$0xf]
          %v1231 = vld [vmem:[%s541 + $0x4] sm:$0xf]
          %v1234 = vunpack.c.l.b16 %v1230
          %v1235 = vunpack.c.l.b16 %v1231
          %v1236 = vpack.c.b16 %v1235, %v1234
          %1238 = vmatprep.subr.bf16.mxu0 0
          %1239 = vmatpush1.bf16.msra.mxu0 %v847
          %1240 = vmatprep.subr.bf16.mxu0 0
          %1241 = vmatpush1.bf16.msra.mxu0 %v848
          %1242 = vmatprep.subr.bf16.mxu0 0
          %1243 = vmatpush1.bf16.msra.mxu0 %v849
          %1244 = vmatprep.subr.bf16.mxu0 0
          %1245 = vmatpush1.bf16.msra.mxu0 %v850
          %1246 = vmatprep.subr.bf16.mxu0 0
          %1247 = vmatpush1.bf16.msra.mxu0 %v851
          %1248 = vmatprep.subr.bf16.mxu0 0
          %1249 = vmatpush1.bf16.msra.mxu0 %v852
          %1250 = vmatprep.subr.bf16.mxu0 0
          %1251 = vmatpush1.bf16.msra.mxu0 %v853
          %1252 = vmatprep.subr.bf16.mxu0 0
          %1253 = vmatpush1.bf16.msra.mxu0 %v854
          %1254 = vmatprep.subr.bf16.mxu0 0
          %1255 = vmatpush1.bf16.msra.mxu0 0
          %1256 = vmatprep.subr.bf16.mxu0 0
          %1257 = vmatpush1.bf16.msra.mxu0 0
          %1258 = vmatprep.subr.bf16.mxu0 0
          %1259 = vmatpush1.bf16.msra.mxu0 0
          %1260 = vmatprep.subr.bf16.mxu0 0
          %1261 = vmatpush1.bf16.msra.mxu0 0
          %1262 = vmatprep.subr.bf16.mxu0 0
          %1263 = vmatpush1.bf16.msra.mxu0 0
          %1264 = vmatprep.subr.bf16.mxu0 0
          %1265 = vmatpush1.bf16.msra.mxu0 0
          %1266 = vmatprep.subr.bf16.mxu0 0
          %1267 = vmatpush1.bf16.msra.mxu0 0
          %1268 = vmatprep.subr.bf16.mxu0 0
          %1269 = vmatpush1.bf16.msra.mxu0 0
          %1270 = vmatprep.mubr.bf16.mxu0 0
          %1271 = vmatmul.mubr.bf16.gmra.mrb[0].mxu0 %v1236
          %v1272 = vpop.f32.mrb[0].mxu0
          %v1273 = vadd.f32 0.0, %v1272
          %v1274 = vpop.f32.mrb[0].mxu0
          %v1275 = vpop.f32.mrb[0].mxu0
          %v1276 = vadd.f32 0.0, %v1275
          %v1277 = vpop.f32.mrb[0].mxu0
          %1278 = vdwg.mxu0
          %v1279 = vmul.f32 %v1273, %v1028
          %v1280 = vmul.f32 %v1276, %v1028
          %v1281 = vadd.f32 %v1279, %v1066
          %v1282 = vadd.f32 %v1280, %v1066
          %v1283 = vmax.f32 %v1281, 0.0
          %v1284 = vmax.f32 %v1282, 0.0
          %s1285 = scalar_lea.vmem [#allocation2], 408
          %1286 = vst [vmem:[%s1285 + $0x1] sm:$0xff] %v1283
          %1287 = vst [vmem:[%s1285 + $0x9] sm:$0xff] %v1284
        $region100: #{tpu_custom_call.1} parent=67 // pred_fallthru
          _
        %v1288 = vld [vmem:[#allocation2] sm:$0xff]
        %v1289 = vld [vmem:[#allocation2 + $0x8] sm:$0xff]
        %v1290 = vld [vmem:[#allocation2 + $0x18] sm:$0xff]
        %v1291 = vld [vmem:[#allocation2 + $0x20] sm:$0xff]
        %v1292 = vld [vmem:[#allocation2 + $0x30] sm:$0xff]
        %v1293 = vld [vmem:[#allocation2 + $0x38] sm:$0xff]
        %v1294 = vld [vmem:[#allocation2 + $0x48] sm:$0xff]
        %v1295 = vld [vmem:[#allocation2 + $0x50] sm:$0xff]
        %v1296 = vld [vmem:[#allocation2 + $0x60] sm:$0xff]
        %v1297 = vld [vmem:[#allocation2 + $0x68] sm:$0xff]
        %v1298 = vld [vmem:[#allocation2 + $0x78] sm:$0xff]
        %v1299 = vld [vmem:[#allocation2 + $0x80] sm:$0xff]
        %v1300 = vld [vmem:[#allocation2 + $0x90] sm:$0xff]
        %v1301 = vld [vmem:[#allocation2 + $0x98] sm:$0xff]
        %v1302 = vld [vmem:[#allocation2 + $0xa8] sm:$0xff]
        %v1303 = vld [vmem:[#allocation2 + $0xb0] sm:$0xff]
        %v1304 = vld [vmem:[#allocation2 + $0xc0] sm:$0xff]
        %v1305 = vld [vmem:[#allocation2 + $0xc8] sm:$0xff]
        %v1306 = vld [vmem:[#allocation2 + $0xd8] sm:$0xff]
        %v1307 = vld [vmem:[#allocation2 + $0xe0] sm:$0xff]
        %v1308 = vld [vmem:[#allocation2 + $0xf0] sm:$0xff]
        %v1309 = vld [vmem:[#allocation2 + $0xf8] sm:$0xff]
        %v1310 = vld [vmem:[#allocation2 + $0x108] sm:$0xff]
        %v1311 = vld [vmem:[#allocation2 + $0x110] sm:$0xff]
        %v1312 = vld [vmem:[#allocation2 + $0x120] sm:$0xff]
        %v1313 = vld [vmem:[#allocation2 + $0x128] sm:$0xff]
        %v1314 = vld [vmem:[#allocation2 + $0x138] sm:$0xff]
        %v1315 = vld [vmem:[#allocation2 + $0x140] sm:$0xff]
        %v1316 = vld [vmem:[#allocation2 + $0x150] sm:$0xff]
        %v1317 = vld [vmem:[#allocation2 + $0x158] sm:$0xff]
        %v1318 = vld [vmem:[#allocation2 + $0x168] sm:$0xff]
        %v1319 = vld [vmem:[#allocation2 + $0x170] sm:$0xff]
        %v1320 = vpack.c.bf16 %v1289, %v1288
        %v1321 = vpack.c.bf16 %v1291, %v1290
        %v1322 = vpack.c.bf16 %v1293, %v1292
        %v1323 = vpack.c.bf16 %v1295, %v1294
        %v1324 = vpack.c.bf16 %v1297, %v1296
        %v1325 = vpack.c.bf16 %v1299, %v1298
        %v1326 = vpack.c.bf16 %v1301, %v1300
        %v1327 = vpack.c.bf16 %v1303, %v1302
        %v1328 = vpack.c.bf16 %v1305, %v1304
        %v1329 = vpack.c.bf16 %v1307, %v1306
        %v1330 = vpack.c.bf16 %v1309, %v1308
        %v1331 = vpack.c.bf16 %v1311, %v1310
        %v1332 = vpack.c.bf16 %v1313, %v1312
        %v1333 = vpack.c.bf16 %v1315, %v1314
        %v1334 = vpack.c.bf16 %v1317, %v1316
        %v1335 = vpack.c.bf16 %v1319, %v1318
        %v1336 = vld [vmem:[#allocation11] sm:$0xf]
        %v1337 = vld [vmem:[#allocation11 + $0x4] sm:$0xf]
        %v1338 = vld [vmem:[#allocation11 + $0x8] sm:$0xf]
        %v1339 = vld [vmem:[#allocation11 + $0xc] sm:$0xf]
        %v1340 = vld [vmem:[#allocation11 + $0x10] sm:$0xf]
        %v1341 = vld [vmem:[#allocation11 + $0x14] sm:$0xf]
        %v1342 = vld [vmem:[#allocation11 + $0x18] sm:$0xf]
        %v1343 = vld [vmem:[#allocation11 + $0x1c] sm:$0xf]
        %v1344 = vld [vmem:[#allocation11 + $0x20] sm:$0xf]
        %v1345 = vld [vmem:[#allocation11 + $0x24] sm:$0xf]
        %v1346 = vld [vmem:[#allocation11 + $0x28] sm:$0xf]
        %v1347 = vld [vmem:[#allocation11 + $0x2c] sm:$0xf]
        %v1348 = vld [vmem:[#allocation11 + $0x30] sm:$0xf]
        %v1349 = vld [vmem:[#allocation11 + $0x34] sm:$0xf]
        %v1350 = vld [vmem:[#allocation11 + $0x38] sm:$0xf]
        %v1351 = vld [vmem:[#allocation11 + $0x3c] sm:$0xf]
        %v1352 = vld [vmem:[#allocation2 + $0x1] sm:$0xff]
        %v1353 = vld [vmem:[#allocation2 + $0x9] sm:$0xff]
        %v1354 = vld [vmem:[#allocation2 + $0x19] sm:$0xff]
        %v1355 = vld [vmem:[#allocation2 + $0x21] sm:$0xff]
        %v1356 = vld [vmem:[#allocation2 + $0x31] sm:$0xff]
        %v1357 = vld [vmem:[#allocation2 + $0x39] sm:$0xff]
        %v1358 = vld [vmem:[#allocation2 + $0x49] sm:$0xff]
        %v1359 = vld [vmem:[#allocation2 + $0x51] sm:$0xff]
        %v1360 = vld [vmem:[#allocation2 + $0x61] sm:$0xff]
        %v1361 = vld [vmem:[#allocation2 + $0x69] sm:$0xff]
        %v1362 = vld [vmem:[#allocation2 + $0x79] sm:$0xff]
        %v1363 = vld [vmem:[#allocation2 + $0x81] sm:$0xff]
        %v1364 = vld [vmem:[#allocation2 + $0x91] sm:$0xff]
        %v1365 = vld [vmem:[#allocation2 + $0x99] sm:$0xff]
        %v1366 = vld [vmem:[#allocation2 + $0xa9] sm:$0xff]
        %v1367 = vld [vmem:[#allocation2 + $0xb1] sm:$0xff]
        %v1368 = vld [vmem:[#allocation2 + $0xc1] sm:$0xff]
        %v1369 = vld [vmem:[#allocation2 + $0xc9] sm:$0xff]
        %v1370 = vld [vmem:[#allocation2 + $0xd9] sm:$0xff]
        %v1371 = vld [vmem:[#allocation2 + $0xe1] sm:$0xff]
        %v1372 = vld [vmem:[#allocation2 + $0xf1] sm:$0xff]
        %v1373 = vld [vmem:[#allocation2 + $0xf9] sm:$0xff]
        %v1374 = vld [vmem:[#allocation2 + $0x109] sm:$0xff]
        %v1375 = vld [vmem:[#allocation2 + $0x111] sm:$0xff]
        %v1376 = vld [vmem:[#allocation2 + $0x121] sm:$0xff]
        %v1377 = vld [vmem:[#allocation2 + $0x129] sm:$0xff]
        %v1378 = vld [vmem:[#allocation2 + $0x139] sm:$0xff]
        %v1379 = vld [vmem:[#allocation2 + $0x141] sm:$0xff]
        %v1380 = vld [vmem:[#allocation2 + $0x151] sm:$0xff]
        %v1381 = vld [vmem:[#allocation2 + $0x159] sm:$0xff]
        %v1382 = vld [vmem:[#allocation2 + $0x169] sm:$0xff]
        %v1383 = vld [vmem:[#allocation2 + $0x171] sm:$0xff]
        %v1384 = vpack.c.bf16 %v1353, %v1352
        %v1385 = vpack.c.bf16 %v1355, %v1354
        %v1386 = vpack.c.bf16 %v1357, %v1356
        %v1387 = vpack.c.bf16 %v1359, %v1358
        %v1388 = vpack.c.bf16 %v1361, %v1360
        %v1389 = vpack.c.bf16 %v1363, %v1362
        %v1390 = vpack.c.bf16 %v1365, %v1364
        %v1391 = vpack.c.bf16 %v1367, %v1366
        %v1392 = vpack.c.bf16 %v1369, %v1368
        %v1393 = vpack.c.bf16 %v1371, %v1370
        %v1394 = vpack.c.bf16 %v1373, %v1372
        %v1395 = vpack.c.bf16 %v1375, %v1374
        %v1396 = vpack.c.bf16 %v1377, %v1376
        %v1397 = vpack.c.bf16 %v1379, %v1378
        %v1398 = vpack.c.bf16 %v1381, %v1380
        %v1399 = vpack.c.bf16 %v1383, %v1382
        %s1400 = scalar_lea.vmem [#allocation11], 64
        %v1401 = vld [vmem:[%s1400] sm:$0xf]
        %v1402 = vld [vmem:[%s1400 + $0x4] sm:$0xf]
        %v1403 = vld [vmem:[%s1400 + $0x8] sm:$0xf]
        %v1404 = vld [vmem:[%s1400 + $0xc] sm:$0xf]
        %v1405 = vld [vmem:[%s1400 + $0x10] sm:$0xf]
        %v1406 = vld [vmem:[%s1400 + $0x14] sm:$0xf]
        %v1407 = vld [vmem:[%s1400 + $0x18] sm:$0xf]
        %v1408 = vld [vmem:[%s1400 + $0x1c] sm:$0xf]
        %v1409 = vld [vmem:[%s1400 + $0x20] sm:$0xf]
        %v1410 = vld [vmem:[%s1400 + $0x24] sm:$0xf]
        %v1411 = vld [vmem:[%s1400 + $0x28] sm:$0xf]
        %v1412 = vld [vmem:[%s1400 + $0x2c] sm:$0xf]
        %v1413 = vld [vmem:[%s1400 + $0x30] sm:$0xf]
        %v1414 = vld [vmem:[%s1400 + $0x34] sm:$0xf]
        %v1415 = vld [vmem:[%s1400 + $0x38] sm:$0xf]
        %v1416 = vld [vmem:[%s1400 + $0x3c] sm:$0xf]
        %v1433 = vunpack.c.l.b16 %v1401
        %v1434 = vunpack.c.l.b16 %v1402
        %v1435 = vunpack.c.l.b16 %v1403
        %v1436 = vunpack.c.l.b16 %v1404
        %v1437 = vunpack.c.l.b16 %v1405
        %v1438 = vunpack.c.l.b16 %v1406
        %v1439 = vunpack.c.l.b16 %v1407
        %v1440 = vunpack.c.l.b16 %v1408
        %v1441 = vunpack.c.l.b16 %v1409
        %v1442 = vunpack.c.l.b16 %v1410
        %v1443 = vunpack.c.l.b16 %v1411
        %v1444 = vunpack.c.l.b16 %v1412
        %v1445 = vunpack.c.l.b16 %v1413
        %v1446 = vunpack.c.l.b16 %v1414
        %v1447 = vunpack.c.l.b16 %v1415
        %v1448 = vunpack.c.l.b16 %v1416
        %v1449 = vpack.c.b16 %v1434, %v1433
        %v1450 = vpack.c.b16 %v1436, %v1435
        %v1451 = vpack.c.b16 %v1438, %v1437
        %v1452 = vpack.c.b16 %v1440, %v1439
        %v1453 = vpack.c.b16 %v1442, %v1441
        %v1454 = vpack.c.b16 %v1444, %v1443
        %v1455 = vpack.c.b16 %v1446, %v1445
        %v1456 = vpack.c.b16 %v1448, %v1447
        %1465 = vmatprep.subr.bf16.mxu0 0
        %1466 = vmatpush1.bf16.msra.mxu0 %v1449
        %1467 = vmatprep.subr.bf16.mxu0 0
        %1468 = vmatpush1.bf16.msra.mxu0 %v1450
        %1469 = vmatprep.subr.bf16.mxu0 0
        %1470 = vmatpush1.bf16.msra.mxu0 %v1451
        %1471 = vmatprep.subr.bf16.mxu0 0
        %1472 = vmatpush1.bf16.msra.mxu0 %v1452
        %1473 = vmatprep.subr.bf16.mxu0 0
        %1474 = vmatpush1.bf16.msra.mxu0 %v1453
        %1475 = vmatprep.subr.bf16.mxu0 0
        %1476 = vmatpush1.bf16.msra.mxu0 %v1454
        %1477 = vmatprep.subr.bf16.mxu0 0
        %1478 = vmatpush1.bf16.msra.mxu0 %v1455
        %1479 = vmatprep.subr.bf16.mxu0 0
        %1480 = vmatpush1.bf16.msra.mxu0 %v1456
        %1481 = vmatprep.subr.bf16.mxu0 0
        %1482 = vmatpush1.bf16.msra.mxu0 0
        %1483 = vmatprep.subr.bf16.mxu0 0
        %1484 = vmatpush1.bf16.msra.mxu0 0
        %1485 = vmatprep.subr.bf16.mxu0 0
        %1486 = vmatpush1.bf16.msra.mxu0 0
        %1487 = vmatprep.subr.bf16.mxu0 0
        %1488 = vmatpush1.bf16.msra.mxu0 0
        %1489 = vmatprep.subr.bf16.mxu0 0
        %1490 = vmatpush1.bf16.msra.mxu0 0
        %1491 = vmatprep.subr.bf16.mxu0 0
        %1492 = vmatpush1.bf16.msra.mxu0 0
        %1493 = vmatprep.subr.bf16.mxu0 0
        %1494 = vmatpush1.bf16.msra.mxu0 0
        %1495 = vmatprep.subr.bf16.mxu0 0
        %1496 = vmatpush1.bf16.msra.mxu0 0
        %1497 = vmatprep.mubr.bf16.mxu0 0
        %1498 = vmatmul.mubr.bf16.gmra.mrb[0].mxu0 %v1384
        %v1499 = vpop.f32.mrb[0].mxu0
        %v1500 = vadd.f32 0.0, %v1499
        %v1501 = vpop.f32.mrb[0].mxu0
        %v1502 = vpop.f32.mrb[0].mxu0
        %v1503 = vadd.f32 0.0, %v1502
        %v1504 = vpop.f32.mrb[0].mxu0
        %1505 = vmatprep.mubr.bf16.mxu0 0
        %1506 = vmatmul.mubr.bf16.gmra.mrb[0].mxu0 %v1385
        %v1507 = vpop.f32.mrb[0].mxu0
        %v1508 = vadd.f32 0.0, %v1507
        %v1509 = vpop.f32.mrb[0].mxu0
        %v1510 = vpop.f32.mrb[0].mxu0
        %v1511 = vadd.f32 0.0, %v1510
        %v1512 = vpop.f32.mrb[0].mxu0
        %1513 = vmatprep.mubr.bf16.mxu0 0
        %1514 = vmatmul.mubr.bf16.gmra.mrb[0].mxu0 %v1386
        %v1515 = vpop.f32.mrb[0].mxu0
        %v1516 = vadd.f32 0.0, %v1515
        %v1517 = vpop.f32.mrb[0].mxu0
        %v1518 = vpop.f32.mrb[0].mxu0
        %v1519 = vadd.f32 0.0, %v1518
        %v1520 = vpop.f32.mrb[0].mxu0
        %1521 = vmatprep.mubr.bf16.mxu0 0
        %1522 = vmatmul.mubr.bf16.gmra.mrb[0].mxu0 %v1387
        %v1523 = vpop.f32.mrb[0].mxu0
        %v1524 = vadd.f32 0.0, %v1523
        %v1525 = vpop.f32.mrb[0].mxu0
        %v1526 = vpop.f32.mrb[0].mxu0
        %v1527 = vadd.f32 0.0, %v1526
        %v1528 = vpop.f32.mrb[0].mxu0
        %1529 = vmatprep.mubr.bf16.mxu0 0
        %1530 = vmatmul.mubr.bf16.gmra.mrb[0].mxu0 %v1388
        %v1531 = vpop.f32.mrb[0].mxu0
        %v1532 = vadd.f32 0.0, %v1531
        %v1533 = vpop.f32.mrb[0].mxu0
        %v1534 = vpop.f32.mrb[0].mxu0
        %v1535 = vadd.f32 0.0, %v1534
        %v1536 = vpop.f32.mrb[0].mxu0
        %1537 = vmatprep.mubr.bf16.mxu0 0
        %1538 = vmatmul.mubr.bf16.gmra.mrb[0].mxu0 %v1389
        %v1539 = vpop.f32.mrb[0].mxu0
        %v1540 = vadd.f32 0.0, %v1539
        %v1541 = vpop.f32.mrb[0].mxu0
        %v1542 = vpop.f32.mrb[0].mxu0
        %v1543 = vadd.f32 0.0, %v1542
        %v1544 = vpop.f32.mrb[0].mxu0
        %1545 = vmatprep.mubr.bf16.mxu0 0
        %1546 = vmatmul.mubr.bf16.gmra.mrb[0].mxu0 %v1390
        %v1547 = vpop.f32.mrb[0].mxu0
        %v1548 = vadd.f32 0.0, %v1547
        %v1549 = vpop.f32.mrb[0].mxu0
        %v1550 = vpop.f32.mrb[0].mxu0
        %v1551 = vadd.f32 0.0, %v1550
        %v1552 = vpop.f32.mrb[0].mxu0
        %1553 = vmatprep.mubr.bf16.mxu0 0
        %1554 = vmatmul.mubr.bf16.gmra.mrb[0].mxu0 %v1391
        %v1555 = vpop.f32.mrb[0].mxu0
        %v1556 = vadd.f32 0.0, %v1555
        %v1557 = vpop.f32.mrb[0].mxu0
        %v1558 = vpop.f32.mrb[0].mxu0
        %v1559 = vadd.f32 0.0, %v1558
        %v1560 = vpop.f32.mrb[0].mxu0
        %1561 = vmatprep.mubr.bf16.mxu0 0
        %1562 = vmatmul.mubr.bf16.gmra.mrb[0].mxu0 %v1392
        %v1563 = vpop.f32.mrb[0].mxu0
        %v1564 = vadd.f32 0.0, %v1563
        %v1565 = vpop.f32.mrb[0].mxu0
        %v1566 = vpop.f32.mrb[0].mxu0
        %v1567 = vadd.f32 0.0, %v1566
        %v1568 = vpop.f32.mrb[0].mxu0
        %1569 = vmatprep.mubr.bf16.mxu0 0
        %1570 = vmatmul.mubr.bf16.gmra.mrb[0].mxu0 %v1393
        %v1571 = vpop.f32.mrb[0].mxu0
        %v1572 = vadd.f32 0.0, %v1571
        %v1573 = vpop.f32.mrb[0].mxu0
        %v1574 = vpop.f32.mrb[0].mxu0
        %v1575 = vadd.f32 0.0, %v1574
        %v1576 = vpop.f32.mrb[0].mxu0
        %1577 = vmatprep.mubr.bf16.mxu0 0
        %1578 = vmatmul.mubr.bf16.gmra.mrb[0].mxu0 %v1394
        %v1579 = vpop.f32.mrb[0].mxu0
        %v1580 = vadd.f32 0.0, %v1579
        %v1581 = vpop.f32.mrb[0].mxu0
        %v1582 = vpop.f32.mrb[0].mxu0
        %v1583 = vadd.f32 0.0, %v1582
        %v1584 = vpop.f32.mrb[0].mxu0
        %1585 = vmatprep.mubr.bf16.mxu0 0
        %1586 = vmatmul.mubr.bf16.gmra.mrb[0].mxu0 %v1395
        %v1587 = vpop.f32.mrb[0].mxu0
        %v1588 = vadd.f32 0.0, %v1587
        %v1589 = vpop.f32.mrb[0].mxu0
        %v1590 = vpop.f32.mrb[0].mxu0
        %v1591 = vadd.f32 0.0, %v1590
        %v1592 = vpop.f32.mrb[0].mxu0
        %1593 = vmatprep.mubr.bf16.mxu0 0
        %1594 = vmatmul.mubr.bf16.gmra.mrb[0].mxu0 %v1396
        %v1595 = vpop.f32.mrb[0].mxu0
        %v1596 = vadd.f32 0.0, %v1595
        %v1597 = vpop.f32.mrb[0].mxu0
        %v1598 = vpop.f32.mrb[0].mxu0
        %v1599 = vadd.f32 0.0, %v1598
        %v1600 = vpop.f32.mrb[0].mxu0
        %1601 = vmatprep.mubr.bf16.mxu0 0
        %1602 = vmatmul.mubr.bf16.gmra.mrb[0].mxu0 %v1397
        %v1603 = vpop.f32.mrb[0].mxu0
        %v1604 = vadd.f32 0.0, %v1603
        %v1605 = vpop.f32.mrb[0].mxu0
        %v1606 = vpop.f32.mrb[0].mxu0
        %v1607 = vadd.f32 0.0, %v1606
        %v1608 = vpop.f32.mrb[0].mxu0
        %1609 = vmatprep.mubr.bf16.mxu0 0
        %1610 = vmatmul.mubr.bf16.gmra.mrb[0].mxu0 %v1398
        %v1611 = vpop.f32.mrb[0].mxu0
        %v1612 = vadd.f32 0.0, %v1611
        %v1613 = vpop.f32.mrb[0].mxu0
        %v1614 = vpop.f32.mrb[0].mxu0
        %v1615 = vadd.f32 0.0, %v1614
        %v1616 = vpop.f32.mrb[0].mxu0
        %1617 = vmatprep.mubr.bf16.mxu0 0
        %1618 = vmatmul.mubr.bf16.gmra.mrb[0].mxu0 %v1399
        %v1619 = vpop.f32.mrb[0].mxu0
        %v1620 = vadd.f32 0.0, %v1619
        %v1621 = vpop.f32.mrb[0].mxu0
        %v1622 = vpop.f32.mrb[0].mxu0
        %v1623 = vadd.f32 0.0, %v1622
        %v1624 = vpop.f32.mrb[0].mxu0
        %1625 = vdwg.mxu0
        %v1642 = vunpack.c.l.b16 %v1336
        %v1643 = vunpack.c.l.b16 %v1337
        %v1644 = vunpack.c.l.b16 %v1338
        %v1645 = vunpack.c.l.b16 %v1339
        %v1646 = vunpack.c.l.b16 %v1340
        %v1647 = vunpack.c.l.b16 %v1341
        %v1648 = vunpack.c.l.b16 %v1342
        %v1649 = vunpack.c.l.b16 %v1343
        %v1650 = vunpack.c.l.b16 %v1344
        %v1651 = vunpack.c.l.b16 %v1345
        %v1652 = vunpack.c.l.b16 %v1346
        %v1653 = vunpack.c.l.b16 %v1347
        %v1654 = vunpack.c.l.b16 %v1348
        %v1655 = vunpack.c.l.b16 %v1349
        %v1656 = vunpack.c.l.b16 %v1350
        %v1657 = vunpack.c.l.b16 %v1351
        %v1658 = vpack.c.b16 %v1643, %v1642
        %v1659 = vpack.c.b16 %v1645, %v1644
        %v1660 = vpack.c.b16 %v1647, %v1646
        %v1661 = vpack.c.b16 %v1649, %v1648
        %v1662 = vpack.c.b16 %v1651, %v1650
        %v1663 = vpack.c.b16 %v1653, %v1652
        %v1664 = vpack.c.b16 %v1655, %v1654
        %v1665 = vpack.c.b16 %v1657, %v1656
        %1674 = vmatprep.subr.bf16.mxu0 0
        %1675 = vmatpush1.bf16.msra.mxu0 %v1658
        %1676 = vmatprep.subr.bf16.mxu0 0
        %1677 = vmatpush1.bf16.msra.mxu0 %v1659
        %1678 = vmatprep.subr.bf16.mxu0 0
        %1679 = vmatpush1.bf16.msra.mxu0 %v1660
        %1680 = vmatprep.subr.bf16.mxu0 0
        %1681 = vmatpush1.bf16.msra.mxu0 %v1661
        %1682 = vmatprep.subr.bf16.mxu0 0
        %1683 = vmatpush1.bf16.msra.mxu0 %v1662
        %1684 = vmatprep.subr.bf16.mxu0 0
        %1685 = vmatpush1.bf16.msra.mxu0 %v1663
        %1686 = vmatprep.subr.bf16.mxu0 0
        %1687 = vmatpush1.bf16.msra.mxu0 %v1664
        %1688 = vmatprep.subr.bf16.mxu0 0
        %1689 = vmatpush1.bf16.msra.mxu0 %v1665
        %1690 = vmatprep.subr.bf16.mxu0 0
        %1691 = vmatpush1.bf16.msra.mxu0 0
        %1692 = vmatprep.subr.bf16.mxu0 0
        %1693 = vmatpush1.bf16.msra.mxu0 0
        %1694 = vmatprep.subr.bf16.mxu0 0
        %1695 = vmatpush1.bf16.msra.mxu0 0
        %1696 = vmatprep.subr.bf16.mxu0 0
        %1697 = vmatpush1.bf16.msra.mxu0 0
        %1698 = vmatprep.subr.bf16.mxu0 0
        %1699 = vmatpush1.bf16.msra.mxu0 0
        %1700 = vmatprep.subr.bf16.mxu0 0
        %1701 = vmatpush1.bf16.msra.mxu0 0
        %1702 = vmatprep.subr.bf16.mxu0 0
        %1703 = vmatpush1.bf16.msra.mxu0 0
        %1704 = vmatprep.subr.bf16.mxu0 0
        %1705 = vmatpush1.bf16.msra.mxu0 0
        %1706 = vmatprep.mubr.bf16.mxu0 0
        %1707 = vmatmul.mubr.bf16.gmra.mrb[0].mxu0 %v1320
        %v1708 = vpop.f32.mrb[0].mxu0
        %v1709 = vadd.f32 %v1500, %v1708
        %v1710 = vpop.f32.mrb[0].mxu0
        %v1711 = vpop.f32.mrb[0].mxu0
        %v1712 = vadd.f32 %v1503, %v1711
        %v1713 = vpop.f32.mrb[0].mxu0
        %1714 = vmatprep.mubr.bf16.mxu0 0
        %1715 = vmatmul.mubr.bf16.gmra.mrb[0].mxu0 %v1321
        %v1716 = vpop.f32.mrb[0].mxu0
        %v1717 = vadd.f32 %v1508, %v1716
        %v1718 = vpop.f32.mrb[0].mxu0
        %v1719 = vpop.f32.mrb[0].mxu0
        %v1720 = vadd.f32 %v1511, %v1719
        %v1721 = vpop.f32.mrb[0].mxu0
        %1722 = vmatprep.mubr.bf16.mxu0 0
        %1723 = vmatmul.mubr.bf16.gmra.mrb[0].mxu0 %v1322
        %v1724 = vpop.f32.mrb[0].mxu0
        %v1725 = vadd.f32 %v1516, %v1724
        %v1726 = vpop.f32.mrb[0].mxu0
        %v1727 = vpop.f32.mrb[0].mxu0
        %v1728 = vadd.f32 %v1519, %v1727
        %v1729 = vpop.f32.mrb[0].mxu0
        %1730 = vmatprep.mubr.bf16.mxu0 0
        %1731 = vmatmul.mubr.bf16.gmra.mrb[0].mxu0 %v1323
        %v1732 = vpop.f32.mrb[0].mxu0
        %v1733 = vadd.f32 %v1524, %v1732
        %v1734 = vpop.f32.mrb[0].mxu0
        %v1735 = vpop.f32.mrb[0].mxu0
        %v1736 = vadd.f32 %v1527, %v1735
        %v1737 = vpop.f32.mrb[0].mxu0
        %1738 = vmatprep.mubr.bf16.mxu0 0
        %1739 = vmatmul.mubr.bf16.gmra.mrb[0].mxu0 %v1324
        %v1740 = vpop.f32.mrb[0].mxu0
        %v1741 = vadd.f32 %v1532, %v1740
        %v1742 = vpop.f32.mrb[0].mxu0
        %v1743 = vpop.f32.mrb[0].mxu0
        %v1744 = vadd.f32 %v1535, %v1743
        %v1745 = vpop.f32.mrb[0].mxu0
        %1746 = vmatprep.mubr.bf16.mxu0 0
        %1747 = vmatmul.mubr.bf16.gmra.mrb[0].mxu0 %v1325
        %v1748 = vpop.f32.mrb[0].mxu0
        %v1749 = vadd.f32 %v1540, %v1748
        %v1750 = vpop.f32.mrb[0].mxu0
        %v1751 = vpop.f32.mrb[0].mxu0
        %v1752 = vadd.f32 %v1543, %v1751
        %v1753 = vpop.f32.mrb[0].mxu0
        %1754 = vmatprep.mubr.bf16.mxu0 0
        %1755 = vmatmul.mubr.bf16.gmra.mrb[0].mxu0 %v1326
        %v1756 = vpop.f32.mrb[0].mxu0
        %v1757 = vadd.f32 %v1548, %v1756
        %v1758 = vpop.f32.mrb[0].mxu0
        %v1759 = vpop.f32.mrb[0].mxu0
        %v1760 = vadd.f32 %v1551, %v1759
        %v1761 = vpop.f32.mrb[0].mxu0
        %1762 = vmatprep.mubr.bf16.mxu0 0
        %1763 = vmatmul.mubr.bf16.gmra.mrb[0].mxu0 %v1327
        %v1764 = vpop.f32.mrb[0].mxu0
        %v1765 = vadd.f32 %v1556, %v1764
        %v1766 = vpop.f32.mrb[0].mxu0
        %v1767 = vpop.f32.mrb[0].mxu0
        %v1768 = vadd.f32 %v1559, %v1767
        %v1769 = vpop.f32.mrb[0].mxu0
        %1770 = vmatprep.mubr.bf16.mxu0 0
        %1771 = vmatmul.mubr.bf16.gmra.mrb[0].mxu0 %v1328
        %v1772 = vpop.f32.mrb[0].mxu0
        %v1773 = vadd.f32 %v1564, %v1772
        %v1774 = vpop.f32.mrb[0].mxu0
        %v1775 = vpop.f32.mrb[0].mxu0
        %v1776 = vadd.f32 %v1567, %v1775
        %v1777 = vpop.f32.mrb[0].mxu0
        %1778 = vmatprep.mubr.bf16.mxu0 0
        %1779 = vmatmul.mubr.bf16.gmra.mrb[0].mxu0 %v1329
        %v1780 = vpop.f32.mrb[0].mxu0
        %v1781 = vadd.f32 %v1572, %v1780
        %v1782 = vpop.f32.mrb[0].mxu0
        %v1783 = vpop.f32.mrb[0].mxu0
        %v1784 = vadd.f32 %v1575, %v1783
        %v1785 = vpop.f32.mrb[0].mxu0
        %1786 = vmatprep.mubr.bf16.mxu0 0
        %1787 = vmatmul.mubr.bf16.gmra.mrb[0].mxu0 %v1330
        %v1788 = vpop.f32.mrb[0].mxu0
        %v1789 = vadd.f32 %v1580, %v1788
        %v1790 = vpop.f32.mrb[0].mxu0
        %v1791 = vpop.f32.mrb[0].mxu0
        %v1792 = vadd.f32 %v1583, %v1791
        %v1793 = vpop.f32.mrb[0].mxu0
        %1794 = vmatprep.mubr.bf16.mxu0 0
        %1795 = vmatmul.mubr.bf16.gmra.mrb[0].mxu0 %v1331
        %v1796 = vpop.f32.mrb[0].mxu0
        %v1797 = vadd.f32 %v1588, %v1796
        %v1798 = vpop.f32.mrb[0].mxu0
        %v1799 = vpop.f32.mrb[0].mxu0
        %v1800 = vadd.f32 %v1591, %v1799
        %v1801 = vpop.f32.mrb[0].mxu0
        %1802 = vmatprep.mubr.bf16.mxu0 0
        %1803 = vmatmul.mubr.bf16.gmra.mrb[0].mxu0 %v1332
        %v1804 = vpop.f32.mrb[0].mxu0
        %v1805 = vadd.f32 %v1596, %v1804
        %v1806 = vpop.f32.mrb[0].mxu0
        %v1807 = vpop.f32.mrb[0].mxu0
        %v1808 = vadd.f32 %v1599, %v1807
        %v1809 = vpop.f32.mrb[0].mxu0
        %1810 = vmatprep.mubr.bf16.mxu0 0
        %1811 = vmatmul.mubr.bf16.gmra.mrb[0].mxu0 %v1333
        %v1812 = vpop.f32.mrb[0].mxu0
        %v1813 = vadd.f32 %v1604, %v1812
        %v1814 = vpop.f32.mrb[0].mxu0
        %v1815 = vpop.f32.mrb[0].mxu0
        %v1816 = vadd.f32 %v1607, %v1815
        %v1817 = vpop.f32.mrb[0].mxu0
        %1818 = vmatprep.mubr.bf16.mxu0 0
        %1819 = vmatmul.mubr.bf16.gmra.mrb[0].mxu0 %v1334
        %v1820 = vpop.f32.mrb[0].mxu0
        %v1821 = vadd.f32 %v1612, %v1820
        %v1822 = vpop.f32.mrb[0].mxu0
        %v1823 = vpop.f32.mrb[0].mxu0
        %v1824 = vadd.f32 %v1615, %v1823
        %v1825 = vpop.f32.mrb[0].mxu0
        %1826 = vmatprep.mubr.bf16.mxu0 0
        %1827 = vmatmul.mubr.bf16.gmra.mrb[0].mxu0 %v1335
        %v1828 = vpop.f32.mrb[0].mxu0
        %v1829 = vadd.f32 %v1620, %v1828
        %v1830 = vpop.f32.mrb[0].mxu0
        %v1831 = vpop.f32.mrb[0].mxu0
        %v1832 = vadd.f32 %v1623, %v1831
        %v1833 = vpop.f32.mrb[0].mxu0
        %1834 = vdwg.mxu0
        %v1835 = vld [vmem:[#allocation2 + $0x2] sm:$0xff]
        %v1836 = vld [vmem:[#allocation2 + $0xa] sm:$0xff]
        %v1837 = vld [vmem:[#allocation2 + $0x1a] sm:$0xff]
        %v1838 = vld [vmem:[#allocation2 + $0x22] sm:$0xff]
        %v1839 = vld [vmem:[#allocation2 + $0x32] sm:$0xff]
        %v1840 = vld [vmem:[#allocation2 + $0x3a] sm:$0xff]
        %v1841 = vld [vmem:[#allocation2 + $0x4a] sm:$0xff]
        %v1842 = vld [vmem:[#allocation2 + $0x52] sm:$0xff]
        %v1843 = vld [vmem:[#allocation2 + $0x62] sm:$0xff]
        %v1844 = vld [vmem:[#allocation2 + $0x6a] sm:$0xff]
        %v1845 = vld [vmem:[#allocation2 + $0x7a] sm:$0xff]
        %v1846 = vld [vmem:[#allocation2 + $0x82] sm:$0xff]
        %v1847 = vld [vmem:[#allocation2 + $0x92] sm:$0xff]
        %v1848 = vld [vmem:[#allocation2 + $0x9a] sm:$0xff]
        %v1849 = vld [vmem:[#allocation2 + $0xaa] sm:$0xff]
        %v1850 = vld [vmem:[#allocation2 + $0xb2] sm:$0xff]
        %v1851 = vld [vmem:[#allocation2 + $0xc2] sm:$0xff]
        %v1852 = vld [vmem:[#allocation2 + $0xca] sm:$0xff]
        %v1853 = vld [vmem:[#allocation2 + $0xda] sm:$0xff]
        %v1854 = vld [vmem:[#allocation2 + $0xe2] sm:$0xff]
        %v1855 = vld [vmem:[#allocation2 + $0xf2] sm:$0xff]
        %v1856 = vld [vmem:[#allocation2 + $0xfa] sm:$0xff]
        %v1857 = vld [vmem:[#allocation2 + $0x10a] sm:$0xff]
        %v1858 = vld [vmem:[#allocation2 + $0x112] sm:$0xff]
        %v1859 = vld [vmem:[#allocation2 + $0x122] sm:$0xff]
        %v1860 = vld [vmem:[#allocation2 + $0x12a] sm:$0xff]
        %v1861 = vld [vmem:[#allocation2 + $0x13a] sm:$0xff]
        %v1862 = vld [vmem:[#allocation2 + $0x142] sm:$0xff]
        %v1863 = vld [vmem:[#allocation2 + $0x152] sm:$0xff]
        %v1864 = vld [vmem:[#allocation2 + $0x15a] sm:$0xff]
        %v1865 = vld [vmem:[#allocation2 + $0x16a] sm:$0xff]
        %v1866 = vld [vmem:[#allocation2 + $0x172] sm:$0xff]
        %v1867 = vpack.c.bf16 %v1836, %v1835
        %v1868 = vpack.c.bf16 %v1838, %v1837
        %v1869 = vpack.c.bf16 %v1840, %v1839
        %v1870 = vpack.c.bf16 %v1842, %v1841
        %v1871 = vpack.c.bf16 %v1844, %v1843
        %v1872 = vpack.c.bf16 %v1846, %v1845
        %v1873 = vpack.c.bf16 %v1848, %v1847
        %v1874 = vpack.c.bf16 %v1850, %v1849
        %v1875 = vpack.c.bf16 %v1852, %v1851
        %v1876 = vpack.c.bf16 %v1854, %v1853
        %v1877 = vpack.c.bf16 %v1856, %v1855
        %v1878 = vpack.c.bf16 %v1858, %v1857
        %v1879 = vpack.c.bf16 %v1860, %v1859
        %v1880 = vpack.c.bf16 %v1862, %v1861
        %v1881 = vpack.c.bf16 %v1864, %v1863
        %v1882 = vpack.c.bf16 %v1866, %v1865
        %s1883 = scalar_lea.vmem [#allocation11], 128
        %v1884 = vld [vmem:[%s1883] sm:$0xf]
        %v1885 = vld [vmem:[%s1883 + $0x4] sm:$0xf]
        %v1886 = vld [vmem:[%s1883 + $0x8] sm:$0xf]
        %v1887 = vld [vmem:[%s1883 + $0xc] sm:$0xf]
        %v1888 = vld [vmem:[%s1883 + $0x10] sm:$0xf]
        %v1889 = vld [vmem:[%s1883 + $0x14] sm:$0xf]
        %v1890 = vld [vmem:[%s1883 + $0x18] sm:$0xf]
        %v1891 = vld [vmem:[%s1883 + $0x1c] sm:$0xf]
        %v1892 = vld [vmem:[%s1883 + $0x20] sm:$0xf]
        %v1893 = vld [vmem:[%s1883 + $0x24] sm:$0xf]
        %v1894 = vld [vmem:[%s1883 + $0x28] sm:$0xf]
        %v1895 = vld [vmem:[%s1883 + $0x2c] sm:$0xf]
        %v1896 = vld [vmem:[%s1883 + $0x30] sm:$0xf]
        %v1897 = vld [vmem:[%s1883 + $0x34] sm:$0xf]
        %v1898 = vld [vmem:[%s1883 + $0x38] sm:$0xf]
        %v1899 = vld [vmem:[%s1883 + $0x3c] sm:$0xf]
        %v1916 = vunpack.c.l.b16 %v1884
        %v1917 = vunpack.c.l.b16 %v1885
        %v1918 = vunpack.c.l.b16 %v1886
        %v1919 = vunpack.c.l.b16 %v1887
        %v1920 = vunpack.c.l.b16 %v1888
        %v1921 = vunpack.c.l.b16 %v1889
        %v1922 = vunpack.c.l.b16 %v1890
        %v1923 = vunpack.c.l.b16 %v1891
        %v1924 = vunpack.c.l.b16 %v1892
        %v1925 = vunpack.c.l.b16 %v1893
        %v1926 = vunpack.c.l.b16 %v1894
        %v1927 = vunpack.c.l.b16 %v1895
        %v1928 = vunpack.c.l.b16 %v1896
        %v1929 = vunpack.c.l.b16 %v1897
        %v1930 = vunpack.c.l.b16 %v1898
        %v1931 = vunpack.c.l.b16 %v1899
        %v1932 = vpack.c.b16 %v1917, %v1916
        %v1933 = vpack.c.b16 %v1919, %v1918
        %v1934 = vpack.c.b16 %v1921, %v1920
        %v1935 = vpack.c.b16 %v1923, %v1922
        %v1936 = vpack.c.b16 %v1925, %v1924
        %v1937 = vpack.c.b16 %v1927, %v1926
        %v1938 = vpack.c.b16 %v1929, %v1928
        %v1939 = vpack.c.b16 %v1931, %v1930
        %1948 = vmatprep.subr.bf16.mxu0 0
        %1949 = vmatpush1.bf16.msra.mxu0 %v1932
        %1950 = vmatprep.subr.bf16.mxu0 0
        %1951 = vmatpush1.bf16.msra.mxu0 %v1933
        %1952 = vmatprep.subr.bf16.mxu0 0
        %1953 = vmatpush1.bf16.msra.mxu0 %v1934
        %1954 = vmatprep.subr.bf16.mxu0 0
        %1955 = vmatpush1.bf16.msra.mxu0 %v1935
        %1956 = vmatprep.subr.bf16.mxu0 0
        %1957 = vmatpush1.bf16.msra.mxu0 %v1936
        %1958 = vmatprep.subr.bf16.mxu0 0
        %1959 = vmatpush1.bf16.msra.mxu0 %v1937
        %1960 = vmatprep.subr.bf16.mxu0 0
        %1961 = vmatpush1.bf16.msra.mxu0 %v1938
        %1962 = vmatprep.subr.bf16.mxu0 0
        %1963 = vmatpush1.bf16.msra.mxu0 %v1939
        %1964 = vmatprep.subr.bf16.mxu0 0
        %1965 = vmatpush1.bf16.msra.mxu0 0
        %1966 = vmatprep.subr.bf16.mxu0 0
        %1967 = vmatpush1.bf16.msra.mxu0 0
        %1968 = vmatprep.subr.bf16.mxu0 0
        %1969 = vmatpush1.bf16.msra.mxu0 0
        %1970 = vmatprep.subr.bf16.mxu0 0
        %1971 = vmatpush1.bf16.msra.mxu0 0
        %1972 = vmatprep.subr.bf16.mxu0 0
        %1973 = vmatpush1.bf16.msra.mxu0 0
        %1974 = vmatprep.subr.bf16.mxu0 0
        %1975 = vmatpush1.bf16.msra.mxu0 0
        %1976 = vmatprep.subr.bf16.mxu0 0
        %1977 = vmatpush1.bf16.msra.mxu0 0
        %1978 = vmatprep.subr.bf16.mxu0 0
        %1979 = vmatpush1.bf16.msra.mxu0 0
        %1980 = vmatprep.mubr.bf16.mxu0 0
        %1981 = vmatmul.mubr.bf16.gmra.mrb[0].mxu0 %v1867
        %v1982 = vpop.f32.mrb[0].mxu0
        %v1983 = vadd.f32 0.0, %v1982
        %v1984 = vpop.f32.mrb[0].mxu0
        %v1985 = vpop.f32.mrb[0].mxu0
        %v1986 = vadd.f32 0.0, %v1985
        %v1987 = vpop.f32.mrb[0].mxu0
        %1988 = vmatprep.mubr.bf16.mxu0 0
        %1989 = vmatmul.mubr.bf16.gmra.mrb[0].mxu0 %v1868
        %v1990 = vpop.f32.mrb[0].mxu0
        %v1991 = vadd.f32 0.0, %v1990
        %v1992 = vpop.f32.mrb[0].mxu0
        %v1993 = vpop.f32.mrb[0].mxu0
        %v1994 = vadd.f32 0.0, %v1993
        %v1995 = vpop.f32.mrb[0].mxu0
        %1996 = vmatprep.mubr.bf16.mxu0 0
        %1997 = vmatmul.mubr.bf16.gmra.mrb[0].mxu0 %v1869
        %v1998 = vpop.f32.mrb[0].mxu0
        %v1999 = vadd.f32 0.0, %v1998
        %v2000 = vpop.f32.mrb[0].mxu0
        %v2001 = vpop.f32.mrb[0].mxu0
        %v2002 = vadd.f32 0.0, %v2001
        %v2003 = vpop.f32.mrb[0].mxu0
        %2004 = vmatprep.mubr.bf16.mxu0 0
        %2005 = vmatmul.mubr.bf16.gmra.mrb[0].mxu0 %v1870
        %v2006 = vpop.f32.mrb[0].mxu0
        %v2007 = vadd.f32 0.0, %v2006
        %v2008 = vpop.f32.mrb[0].mxu0
        %v2009 = vpop.f32.mrb[0].mxu0
        %v2010 = vadd.f32 0.0, %v2009
        %v2011 = vpop.f32.mrb[0].mxu0
        %2012 = vmatprep.mubr.bf16.mxu0 0
        %2013 = vmatmul.mubr.bf16.gmra.mrb[0].mxu0 %v1871
        %v2014 = vpop.f32.mrb[0].mxu0
        %v2015 = vadd.f32 0.0, %v2014
        %v2016 = vpop.f32.mrb[0].mxu0
        %v2017 = vpop.f32.mrb[0].mxu0
        %v2018 = vadd.f32 0.0, %v2017
        %v2019 = vpop.f32.mrb[0].mxu0
        %2020 = vmatprep.mubr.bf16.mxu0 0
        %2021 = vmatmul.mubr.bf16.gmra.mrb[0].mxu0 %v1872
        %v2022 = vpop.f32.mrb[0].mxu0
        %v2023 = vadd.f32 0.0, %v2022
        %v2024 = vpop.f32.mrb[0].mxu0
        %v2025 = vpop.f32.mrb[0].mxu0
        %v2026 = vadd.f32 0.0, %v2025
        %v2027 = vpop.f32.mrb[0].mxu0
        %2028 = vmatprep.mubr.bf16.mxu0 0
        %2029 = vmatmul.mubr.bf16.gmra.mrb[0].mxu0 %v1873
        %v2030 = vpop.f32.mrb[0].mxu0
        %v2031 = vadd.f32 0.0, %v2030
        %v2032 = vpop.f32.mrb[0].mxu0
        %v2033 = vpop.f32.mrb[0].mxu0
        %v2034 = vadd.f32 0.0, %v2033
        %v2035 = vpop.f32.mrb[0].mxu0
        %2036 = vmatprep.mubr.bf16.mxu0 0
        %2037 = vmatmul.mubr.bf16.gmra.mrb[0].mxu0 %v1874
        %v2038 = vpop.f32.mrb[0].mxu0
        %v2039 = vadd.f32 0.0, %v2038
        %v2040 = vpop.f32.mrb[0].mxu0
        %v2041 = vpop.f32.mrb[0].mxu0
        %v2042 = vadd.f32 0.0, %v2041
        %v2043 = vpop.f32.mrb[0].mxu0
        %2044 = vmatprep.mubr.bf16.mxu0 0
        %2045 = vmatmul.mubr.bf16.gmra.mrb[0].mxu0 %v1875
        %v2046 = vpop.f32.mrb[0].mxu0
        %v2047 = vadd.f32 0.0, %v2046
        %v2048 = vpop.f32.mrb[0].mxu0
        %v2049 = vpop.f32.mrb[0].mxu0
        %v2050 = vadd.f32 0.0, %v2049
        %v2051 = vpop.f32.mrb[0].mxu0
        %2052 = vmatprep.mubr.bf16.mxu0 0
        %2053 = vmatmul.mubr.bf16.gmra.mrb[0].mxu0 %v1876
        %v2054 = vpop.f32.mrb[0].mxu0
        %v2055 = vadd.f32 0.0, %v2054
        %v2056 = vpop.f32.mrb[0].mxu0
        %v2057 = vpop.f32.mrb[0].mxu0
        %v2058 = vadd.f32 0.0, %v2057
        %v2059 = vpop.f32.mrb[0].mxu0
        %2060 = vmatprep.mubr.bf16.mxu0 0
        %2061 = vmatmul.mubr.bf16.gmra.mrb[0].mxu0 %v1877
        %v2062 = vpop.f32.mrb[0].mxu0
        %v2063 = vadd.f32 0.0, %v2062
        %v2064 = vpop.f32.mrb[0].mxu0
        %v2065 = vpop.f32.mrb[0].mxu0
        %v2066 = vadd.f32 0.0, %v2065
        %v2067 = vpop.f32.mrb[0].mxu0
        %2068 = vmatprep.mubr.bf16.mxu0 0
        %2069 = vmatmul.mubr.bf16.gmra.mrb[0].mxu0 %v1878
        %v2070 = vpop.f32.mrb[0].mxu0
        %v2071 = vadd.f32 0.0, %v2070
        %v2072 = vpop.f32.mrb[0].mxu0
        %v2073 = vpop.f32.mrb[0].mxu0
        %v2074 = vadd.f32 0.0, %v2073
        %v2075 = vpop.f32.mrb[0].mxu0
        %2076 = vmatprep.mubr.bf16.mxu0 0
        %2077 = vmatmul.mubr.bf16.gmra.mrb[0].mxu0 %v1879
        %v2078 = vpop.f32.mrb[0].mxu0
        %v2079 = vadd.f32 0.0, %v2078
        %v2080 = vpop.f32.mrb[0].mxu0
        %v2081 = vpop.f32.mrb[0].mxu0
        %v2082 = vadd.f32 0.0, %v2081
        %v2083 = vpop.f32.mrb[0].mxu0
        %2084 = vmatprep.mubr.bf16.mxu0 0
        %2085 = vmatmul.mubr.bf16.gmra.mrb[0].mxu0 %v1880
        %v2086 = vpop.f32.mrb[0].mxu0
        %v2087 = vadd.f32 0.0, %v2086
        %v2088 = vpop.f32.mrb[0].mxu0
        %v2089 = vpop.f32.mrb[0].mxu0
        %v2090 = vadd.f32 0.0, %v2089
        %v2091 = vpop.f32.mrb[0].mxu0
        %2092 = vmatprep.mubr.bf16.mxu0 0
        %2093 = vmatmul.mubr.bf16.gmra.mrb[0].mxu0 %v1881
        %v2094 = vpop.f32.mrb[0].mxu0
        %v2095 = vadd.f32 0.0, %v2094
        %v2096 = vpop.f32.mrb[0].mxu0
        %v2097 = vpop.f32.mrb[0].mxu0
        %v2098 = vadd.f32 0.0, %v2097
        %v2099 = vpop.f32.mrb[0].mxu0
        %2100 = vmatprep.mubr.bf16.mxu0 0
        %2101 = vmatmul.mubr.bf16.gmra.mrb[0].mxu0 %v1882
        %v2102 = vpop.f32.mrb[0].mxu0
        %v2103 = vadd.f32 0.0, %v2102
        %v2104 = vpop.f32.mrb[0].mxu0
        %v2105 = vpop.f32.mrb[0].mxu0
        %v2106 = vadd.f32 0.0, %v2105
        %v2107 = vpop.f32.mrb[0].mxu0
        %2108 = vdwg.mxu0
        %v2109 = vadd.f32 %v1709, %v1983
        %v2110 = vadd.f32 %v1712, %v1986
        %v2111 = vadd.f32 %v1717, %v1991
        %v2112 = vadd.f32 %v1720, %v1994
        %v2113 = vadd.f32 %v1725, %v1999
        %v2114 = vadd.f32 %v1728, %v2002
        %v2115 = vadd.f32 %v1733, %v2007
        %v2116 = vadd.f32 %v1736, %v2010
        %v2117 = vadd.f32 %v1741, %v2015
        %v2118 = vadd.f32 %v1744, %v2018
        %v2119 = vadd.f32 %v1749, %v2023
        %v2120 = vadd.f32 %v1752, %v2026
        %v2121 = vadd.f32 %v1757, %v2031
        %v2122 = vadd.f32 %v1760, %v2034
        %v2123 = vadd.f32 %v1765, %v2039
        %v2124 = vadd.f32 %v1768, %v2042
        %v2125 = vadd.f32 %v1773, %v2047
        %v2126 = vadd.f32 %v1776, %v2050
        %v2127 = vadd.f32 %v1781, %v2055
        %v2128 = vadd.f32 %v1784, %v2058
        %v2129 = vadd.f32 %v1789, %v2063
        %v2130 = vadd.f32 %v1792, %v2066
        %v2131 = vadd.f32 %v1797, %v2071
        %v2132 = vadd.f32 %v1800, %v2074
        %v2133 = vadd.f32 %v1805, %v2079
        %v2134 = vadd.f32 %v1808, %v2082
        %v2135 = vadd.f32 %v1813, %v2087
        %v2136 = vadd.f32 %v1816, %v2090
        %v2137 = vadd.f32 %v1821, %v2095
        %v2138 = vadd.f32 %v1824, %v2098
        %v2139 = vadd.f32 %v1829, %v2103
        %v2140 = vadd.f32 %v1832, %v2106
        %v2141 = vld [vmem:[%s1132] sm:$0xff]
        %v2142 = vld [vmem:[%s1132 + $0x8] sm:$0xff]
        %v2143 = vld [vmem:[%s1132 + $0x18] sm:$0xff]
        %v2144 = vld [vmem:[%s1132 + $0x20] sm:$0xff]
        %v2145 = vld [vmem:[%s1132 + $0x30] sm:$0xff]
        %v2146 = vld [vmem:[%s1132 + $0x38] sm:$0xff]
        %v2147 = vld [vmem:[%s1132 + $0x48] sm:$0xff]
        %v2148 = vld [vmem:[%s1132 + $0x50] sm:$0xff]
        %v2149 = vld [vmem:[%s1132 + $0x60] sm:$0xff]
        %v2150 = vld [vmem:[%s1132 + $0x68] sm:$0xff]
        %v2151 = vld [vmem:[%s1132 + $0x78] sm:$0xff]
        %v2152 = vld [vmem:[%s1132 + $0x80] sm:$0xff]
        %v2153 = vld [vmem:[%s1132 + $0x90] sm:$0xff]
        %v2154 = vld [vmem:[%s1132 + $0x98] sm:$0xff]
        %v2155 = vld [vmem:[%s1132 + $0xa8] sm:$0xff]
        %v2156 = vld [vmem:[%s1132 + $0xb0] sm:$0xff]
        %v2157 = vld [vmem:[%s1132 + $0xc0] sm:$0xff]
        %v2158 = vld [vmem:[%s1132 + $0xc8] sm:$0xff]
        %v2159 = vld [vmem:[%s1132 + $0xd8] sm:$0xff]
        %v2160 = vld [vmem:[%s1132 + $0xe0] sm:$0xff]
        %v2161 = vld [vmem:[%s1132 + $0xf0] sm:$0xff]
        %v2162 = vld [vmem:[%s1132 + $0xf8] sm:$0xff]
        %v2163 = vld [vmem:[%s1132 + $0x108] sm:$0xff]
        %v2164 = vld [vmem:[%s1132 + $0x110] sm:$0xff]
        %v2165 = vld [vmem:[%s1132 + $0x120] sm:$0xff]
        %v2166 = vld [vmem:[%s1132 + $0x128] sm:$0xff]
        %v2167 = vld [vmem:[%s1132 + $0x138] sm:$0xff]
        %v2168 = vld [vmem:[%s1132 + $0x140] sm:$0xff]
        %v2169 = vld [vmem:[%s1132 + $0x150] sm:$0xff]
        %v2170 = vld [vmem:[%s1132 + $0x158] sm:$0xff]
        %v2171 = vld [vmem:[%s1132 + $0x168] sm:$0xff]
        %v2172 = vld [vmem:[%s1132 + $0x170] sm:$0xff]
        %v2173 = vpack.c.bf16 %v2142, %v2141
        %v2174 = vpack.c.bf16 %v2144, %v2143
        %v2175 = vpack.c.bf16 %v2146, %v2145
        %v2176 = vpack.c.bf16 %v2148, %v2147
        %v2177 = vpack.c.bf16 %v2150, %v2149
        %v2178 = vpack.c.bf16 %v2152, %v2151
        %v2179 = vpack.c.bf16 %v2154, %v2153
        %v2180 = vpack.c.bf16 %v2156, %v2155
        %v2181 = vpack.c.bf16 %v2158, %v2157
        %v2182 = vpack.c.bf16 %v2160, %v2159
        %v2183 = vpack.c.bf16 %v2162, %v2161
        %v2184 = vpack.c.bf16 %v2164, %v2163
        %v2185 = vpack.c.bf16 %v2166, %v2165
        %v2186 = vpack.c.bf16 %v2168, %v2167
        %v2187 = vpack.c.bf16 %v2170, %v2169
        %v2188 = vpack.c.bf16 %v2172, %v2171
        %s2189 = scalar_lea.vmem [#allocation11], 192
        %v2190 = vld [vmem:[%s2189] sm:$0xf]
        %v2191 = vld [vmem:[%s2189 + $0x4] sm:$0xf]
        %v2192 = vld [vmem:[%s2189 + $0x8] sm:$0xf]
        %v2193 = vld [vmem:[%s2189 + $0xc] sm:$0xf]
        %v2194 = vld [vmem:[%s2189 + $0x10] sm:$0xf]
        %v2195 = vld [vmem:[%s2189 + $0x14] sm:$0xf]
        %v2196 = vld [vmem:[%s2189 + $0x18] sm:$0xf]
        %v2197 = vld [vmem:[%s2189 + $0x1c] sm:$0xf]
        %v2198 = vld [vmem:[%s2189 + $0x20] sm:$0xf]
        %v2199 = vld [vmem:[%s2189 + $0x24] sm:$0xf]
        %v2200 = vld [vmem:[%s2189 + $0x28] sm:$0xf]
        %v2201 = vld [vmem:[%s2189 + $0x2c] sm:$0xf]
        %v2202 = vld [vmem:[%s2189 + $0x30] sm:$0xf]
        %v2203 = vld [vmem:[%s2189 + $0x34] sm:$0xf]
        %v2204 = vld [vmem:[%s2189 + $0x38] sm:$0xf]
        %v2205 = vld [vmem:[%s2189 + $0x3c] sm:$0xf]
        %v2222 = vunpack.c.l.b16 %v2190
        %v2223 = vunpack.c.l.b16 %v2191
        %v2224 = vunpack.c.l.b16 %v2192
        %v2225 = vunpack.c.l.b16 %v2193
        %v2226 = vunpack.c.l.b16 %v2194
        %v2227 = vunpack.c.l.b16 %v2195
        %v2228 = vunpack.c.l.b16 %v2196
        %v2229 = vunpack.c.l.b16 %v2197
        %v2230 = vunpack.c.l.b16 %v2198
        %v2231 = vunpack.c.l.b16 %v2199
        %v2232 = vunpack.c.l.b16 %v2200
        %v2233 = vunpack.c.l.b16 %v2201
        %v2234 = vunpack.c.l.b16 %v2202
        %v2235 = vunpack.c.l.b16 %v2203
        %v2236 = vunpack.c.l.b16 %v2204
        %v2237 = vunpack.c.l.b16 %v2205
        %v2238 = vpack.c.b16 %v2223, %v2222
        %v2239 = vpack.c.b16 %v2225, %v2224
        %v2240 = vpack.c.b16 %v2227, %v2226
        %v2241 = vpack.c.b16 %v2229, %v2228
        %v2242 = vpack.c.b16 %v2231, %v2230
        %v2243 = vpack.c.b16 %v2233, %v2232
        %v2244 = vpack.c.b16 %v2235, %v2234
        %v2245 = vpack.c.b16 %v2237, %v2236
        %2254 = vmatprep.subr.bf16.mxu0 0
        %2255 = vmatpush1.bf16.msra.mxu0 %v2238
        %2256 = vmatprep.subr.bf16.mxu0 0
        %2257 = vmatpush1.bf16.msra.mxu0 %v2239
        %2258 = vmatprep.subr.bf16.mxu0 0
        %2259 = vmatpush1.bf16.msra.mxu0 %v2240
        %2260 = vmatprep.subr.bf16.mxu0 0
        %2261 = vmatpush1.bf16.msra.mxu0 %v2241
        %2262 = vmatprep.subr.bf16.mxu0 0
        %2263 = vmatpush1.bf16.msra.mxu0 %v2242
        %2264 = vmatprep.subr.bf16.mxu0 0
        %2265 = vmatpush1.bf16.msra.mxu0 %v2243
        %2266 = vmatprep.subr.bf16.mxu0 0
        %2267 = vmatpush1.bf16.msra.mxu0 %v2244
        %2268 = vmatprep.subr.bf16.mxu0 0
        %2269 = vmatpush1.bf16.msra.mxu0 %v2245
        %2270 = vmatprep.subr.bf16.mxu0 0
        %2271 = vmatpush1.bf16.msra.mxu0 0
        %2272 = vmatprep.subr.bf16.mxu0 0
        %2273 = vmatpush1.bf16.msra.mxu0 0
        %2274 = vmatprep.subr.bf16.mxu0 0
        %2275 = vmatpush1.bf16.msra.mxu0 0
        %2276 = vmatprep.subr.bf16.mxu0 0
        %2277 = vmatpush1.bf16.msra.mxu0 0
        %2278 = vmatprep.subr.bf16.mxu0 0
        %2279 = vmatpush1.bf16.msra.mxu0 0
        %2280 = vmatprep.subr.bf16.mxu0 0
        %2281 = vmatpush1.bf16.msra.mxu0 0
        %2282 = vmatprep.subr.bf16.mxu0 0
        %2283 = vmatpush1.bf16.msra.mxu0 0
        %2284 = vmatprep.subr.bf16.mxu0 0
        %2285 = vmatpush1.bf16.msra.mxu0 0
        %2286 = vmatprep.mubr.bf16.mxu0 0
        %2287 = vmatmul.mubr.bf16.gmra.mrb[0].mxu0 %v2173
        %v2288 = vpop.f32.mrb[0].mxu0
        %v2289 = vadd.f32 0.0, %v2288
        %v2290 = vpop.f32.mrb[0].mxu0
        %v2291 = vpop.f32.mrb[0].mxu0
        %v2292 = vadd.f32 0.0, %v2291
        %v2293 = vpop.f32.mrb[0].mxu0
        %2294 = vmatprep.mubr.bf16.mxu0 0
        %2295 = vmatmul.mubr.bf16.gmra.mrb[0].mxu0 %v2174
        %v2296 = vpop.f32.mrb[0].mxu0
        %v2297 = vadd.f32 0.0, %v2296
        %v2298 = vpop.f32.mrb[0].mxu0
        %v2299 = vpop.f32.mrb[0].mxu0
        %v2300 = vadd.f32 0.0, %v2299
        %v2301 = vpop.f32.mrb[0].mxu0
        %2302 = vmatprep.mubr.bf16.mxu0 0
        %2303 = vmatmul.mubr.bf16.gmra.mrb[0].mxu0 %v2175
        %v2304 = vpop.f32.mrb[0].mxu0
        %v2305 = vadd.f32 0.0, %v2304
        %v2306 = vpop.f32.mrb[0].mxu0
        %v2307 = vpop.f32.mrb[0].mxu0
        %v2308 = vadd.f32 0.0, %v2307
        %v2309 = vpop.f32.mrb[0].mxu0
        %2310 = vmatprep.mubr.bf16.mxu0 0
        %2311 = vmatmul.mubr.bf16.gmra.mrb[0].mxu0 %v2176
        %v2312 = vpop.f32.mrb[0].mxu0
        %v2313 = vadd.f32 0.0, %v2312
        %v2314 = vpop.f32.mrb[0].mxu0
        %v2315 = vpop.f32.mrb[0].mxu0
        %v2316 = vadd.f32 0.0, %v2315
        %v2317 = vpop.f32.mrb[0].mxu0
        %2318 = vmatprep.mubr.bf16.mxu0 0
        %2319 = vmatmul.mubr.bf16.gmra.mrb[0].mxu0 %v2177
        %v2320 = vpop.f32.mrb[0].mxu0
        %v2321 = vadd.f32 0.0, %v2320
        %v2322 = vpop.f32.mrb[0].mxu0
        %v2323 = vpop.f32.mrb[0].mxu0
        %v2324 = vadd.f32 0.0, %v2323
        %v2325 = vpop.f32.mrb[0].mxu0
        %2326 = vmatprep.mubr.bf16.mxu0 0
        %2327 = vmatmul.mubr.bf16.gmra.mrb[0].mxu0 %v2178
        %v2328 = vpop.f32.mrb[0].mxu0
        %v2329 = vadd.f32 0.0, %v2328
        %v2330 = vpop.f32.mrb[0].mxu0
        %v2331 = vpop.f32.mrb[0].mxu0
        %v2332 = vadd.f32 0.0, %v2331
        %v2333 = vpop.f32.mrb[0].mxu0
        %2334 = vmatprep.mubr.bf16.mxu0 0
        %2335 = vmatmul.mubr.bf16.gmra.mrb[0].mxu0 %v2179
        %v2336 = vpop.f32.mrb[0].mxu0
        %v2337 = vadd.f32 0.0, %v2336
        %v2338 = vpop.f32.mrb[0].mxu0
        %v2339 = vpop.f32.mrb[0].mxu0
        %v2340 = vadd.f32 0.0, %v2339
        %v2341 = vpop.f32.mrb[0].mxu0
        %2342 = vmatprep.mubr.bf16.mxu0 0
        %2343 = vmatmul.mubr.bf16.gmra.mrb[0].mxu0 %v2180
        %v2344 = vpop.f32.mrb[0].mxu0
        %v2345 = vadd.f32 0.0, %v2344
        %v2346 = vpop.f32.mrb[0].mxu0
        %v2347 = vpop.f32.mrb[0].mxu0
        %v2348 = vadd.f32 0.0, %v2347
        %v2349 = vpop.f32.mrb[0].mxu0
        %2350 = vmatprep.mubr.bf16.mxu0 0
        %2351 = vmatmul.mubr.bf16.gmra.mrb[0].mxu0 %v2181
        %v2352 = vpop.f32.mrb[0].mxu0
        %v2353 = vadd.f32 0.0, %v2352
        %v2354 = vpop.f32.mrb[0].mxu0
        %v2355 = vpop.f32.mrb[0].mxu0
        %v2356 = vadd.f32 0.0, %v2355
        %v2357 = vpop.f32.mrb[0].mxu0
        %2358 = vmatprep.mubr.bf16.mxu0 0
        %2359 = vmatmul.mubr.bf16.gmra.mrb[0].mxu0 %v2182
        %v2360 = vpop.f32.mrb[0].mxu0
        %v2361 = vadd.f32 0.0, %v2360
        %v2362 = vpop.f32.mrb[0].mxu0
        %v2363 = vpop.f32.mrb[0].mxu0
        %v2364 = vadd.f32 0.0, %v2363
        %v2365 = vpop.f32.mrb[0].mxu0
        %2366 = vmatprep.mubr.bf16.mxu0 0
        %2367 = vmatmul.mubr.bf16.gmra.mrb[0].mxu0 %v2183
        %v2368 = vpop.f32.mrb[0].mxu0
        %v2369 = vadd.f32 0.0, %v2368
        %v2370 = vpop.f32.mrb[0].mxu0
        %v2371 = vpop.f32.mrb[0].mxu0
        %v2372 = vadd.f32 0.0, %v2371
        %v2373 = vpop.f32.mrb[0].mxu0
        %2374 = vmatprep.mubr.bf16.mxu0 0
        %2375 = vmatmul.mubr.bf16.gmra.mrb[0].mxu0 %v2184
        %v2376 = vpop.f32.mrb[0].mxu0
        %v2377 = vadd.f32 0.0, %v2376
        %v2378 = vpop.f32.mrb[0].mxu0
        %v2379 = vpop.f32.mrb[0].mxu0
        %v2380 = vadd.f32 0.0, %v2379
        %v2381 = vpop.f32.mrb[0].mxu0
        %2382 = vmatprep.mubr.bf16.mxu0 0
        %2383 = vmatmul.mubr.bf16.gmra.mrb[0].mxu0 %v2185
        %v2384 = vpop.f32.mrb[0].mxu0
        %v2385 = vadd.f32 0.0, %v2384
        %v2386 = vpop.f32.mrb[0].mxu0
        %v2387 = vpop.f32.mrb[0].mxu0
        %v2388 = vadd.f32 0.0, %v2387
        %v2389 = vpop.f32.mrb[0].mxu0
        %2390 = vmatprep.mubr.bf16.mxu0 0
        %2391 = vmatmul.mubr.bf16.gmra.mrb[0].mxu0 %v2186
        %v2392 = vpop.f32.mrb[0].mxu0
        %v2393 = vadd.f32 0.0, %v2392
        %v2394 = vpop.f32.mrb[0].mxu0
        %v2395 = vpop.f32.mrb[0].mxu0
        %v2396 = vadd.f32 0.0, %v2395
        %v2397 = vpop.f32.mrb[0].mxu0
        %2398 = vmatprep.mubr.bf16.mxu0 0
        %2399 = vmatmul.mubr.bf16.gmra.mrb[0].mxu0 %v2187
        %v2400 = vpop.f32.mrb[0].mxu0
        %v2401 = vadd.f32 0.0, %v2400
        %v2402 = vpop.f32.mrb[0].mxu0
        %v2403 = vpop.f32.mrb[0].mxu0
        %v2404 = vadd.f32 0.0, %v2403
        %v2405 = vpop.f32.mrb[0].mxu0
        %2406 = vmatprep.mubr.bf16.mxu0 0
        %2407 = vmatmul.mubr.bf16.gmra.mrb[0].mxu0 %v2188
        %v2408 = vpop.f32.mrb[0].mxu0
        %v2409 = vadd.f32 0.0, %v2408
        %v2410 = vpop.f32.mrb[0].mxu0
        %v2411 = vpop.f32.mrb[0].mxu0
        %v2412 = vadd.f32 0.0, %v2411
        %v2413 = vpop.f32.mrb[0].mxu0
        %2414 = vdwg.mxu0
        %v2415 = vadd.f32 %v2109, %v2289
        %v2416 = vadd.f32 %v2110, %v2292
        %v2417 = vadd.f32 %v2111, %v2297
        %v2418 = vadd.f32 %v2112, %v2300
        %v2419 = vadd.f32 %v2113, %v2305
        %v2420 = vadd.f32 %v2114, %v2308
        %v2421 = vadd.f32 %v2115, %v2313
        %v2422 = vadd.f32 %v2116, %v2316
        %v2423 = vadd.f32 %v2117, %v2321
        %v2424 = vadd.f32 %v2118, %v2324
        %v2425 = vadd.f32 %v2119, %v2329
        %v2426 = vadd.f32 %v2120, %v2332
        %v2427 = vadd.f32 %v2121, %v2337
        %v2428 = vadd.f32 %v2122, %v2340
        %v2429 = vadd.f32 %v2123, %v2345
        %v2430 = vadd.f32 %v2124, %v2348
        %v2431 = vadd.f32 %v2125, %v2353
        %v2432 = vadd.f32 %v2126, %v2356
        %v2433 = vadd.f32 %v2127, %v2361
        %v2434 = vadd.f32 %v2128, %v2364
        %v2435 = vadd.f32 %v2129, %v2369
        %v2436 = vadd.f32 %v2130, %v2372
        %v2437 = vadd.f32 %v2131, %v2377
        %v2438 = vadd.f32 %v2132, %v2380
        %v2439 = vadd.f32 %v2133, %v2385
        %v2440 = vadd.f32 %v2134, %v2388
        %v2441 = vadd.f32 %v2135, %v2393
        %v2442 = vadd.f32 %v2136, %v2396
        %v2443 = vadd.f32 %v2137, %v2401
        %v2444 = vadd.f32 %v2138, %v2404
        %v2445 = vadd.f32 %v2139, %v2409
        %v2446 = vadd.f32 %v2140, %v2412
        %v2447 = vld [vmem:[%s1132 + $0x1] sm:$0xff]
        %v2448 = vld [vmem:[%s1132 + $0x9] sm:$0xff]
        %v2449 = vld [vmem:[%s1132 + $0x19] sm:$0xff]
        %v2450 = vld [vmem:[%s1132 + $0x21] sm:$0xff]
        %v2451 = vld [vmem:[%s1132 + $0x31] sm:$0xff]
        %v2452 = vld [vmem:[%s1132 + $0x39] sm:$0xff]
        %v2453 = vld [vmem:[%s1132 + $0x49] sm:$0xff]
        %v2454 = vld [vmem:[%s1132 + $0x51] sm:$0xff]
        %v2455 = vld [vmem:[%s1132 + $0x61] sm:$0xff]
        %v2456 = vld [vmem:[%s1132 + $0x69] sm:$0xff]
        %v2457 = vld [vmem:[%s1132 + $0x79] sm:$0xff]
        %v2458 = vld [vmem:[%s1132 + $0x81] sm:$0xff]
        %v2459 = vld [vmem:[%s1132 + $0x91] sm:$0xff]
        %v2460 = vld [vmem:[%s1132 + $0x99] sm:$0xff]
        %v2461 = vld [vmem:[%s1132 + $0xa9] sm:$0xff]
        %v2462 = vld [vmem:[%s1132 + $0xb1] sm:$0xff]
        %v2463 = vld [vmem:[%s1132 + $0xc1] sm:$0xff]
        %v2464 = vld [vmem:[%s1132 + $0xc9] sm:$0xff]
        %v2465 = vld [vmem:[%s1132 + $0xd9] sm:$0xff]
        %v2466 = vld [vmem:[%s1132 + $0xe1] sm:$0xff]
        %v2467 = vld [vmem:[%s1132 + $0xf1] sm:$0xff]
        %v2468 = vld [vmem:[%s1132 + $0xf9] sm:$0xff]
        %v2469 = vld [vmem:[%s1132 + $0x109] sm:$0xff]
        %v2470 = vld [vmem:[%s1132 + $0x111] sm:$0xff]
        %v2471 = vld [vmem:[%s1132 + $0x121] sm:$0xff]
        %v2472 = vld [vmem:[%s1132 + $0x129] sm:$0xff]
        %v2473 = vld [vmem:[%s1132 + $0x139] sm:$0xff]
        %v2474 = vld [vmem:[%s1132 + $0x141] sm:$0xff]
        %v2475 = vld [vmem:[%s1132 + $0x151] sm:$0xff]
        %v2476 = vld [vmem:[%s1132 + $0x159] sm:$0xff]
        %v2477 = vld [vmem:[%s1132 + $0x169] sm:$0xff]
        %v2478 = vld [vmem:[%s1132 + $0x171] sm:$0xff]
        %v2479 = vpack.c.bf16 %v2448, %v2447
        %v2480 = vpack.c.bf16 %v2450, %v2449
        %v2481 = vpack.c.bf16 %v2452, %v2451
        %v2482 = vpack.c.bf16 %v2454, %v2453
        %v2483 = vpack.c.bf16 %v2456, %v2455
        %v2484 = vpack.c.bf16 %v2458, %v2457
        %v2485 = vpack.c.bf16 %v2460, %v2459
        %v2486 = vpack.c.bf16 %v2462, %v2461
        %v2487 = vpack.c.bf16 %v2464, %v2463
        %v2488 = vpack.c.bf16 %v2466, %v2465
        %v2489 = vpack.c.bf16 %v2468, %v2467
        %v2490 = vpack.c.bf16 %v2470, %v2469
        %v2491 = vpack.c.bf16 %v2472, %v2471
        %v2492 = vpack.c.bf16 %v2474, %v2473
        %v2493 = vpack.c.bf16 %v2476, %v2475
        %v2494 = vpack.c.bf16 %v2478, %v2477
        %s2495 = scalar_lea.vmem [#allocation11], 256
        %v2496 = vld [vmem:[%s2495] sm:$0xf]
        %v2497 = vld [vmem:[%s2495 + $0x4] sm:$0xf]
        %v2498 = vld [vmem:[%s2495 + $0x8] sm:$0xf]
        %v2499 = vld [vmem:[%s2495 + $0xc] sm:$0xf]
        %v2500 = vld [vmem:[%s2495 + $0x10] sm:$0xf]
        %v2501 = vld [vmem:[%s2495 + $0x14] sm:$0xf]
        %v2502 = vld [vmem:[%s2495 + $0x18] sm:$0xf]
        %v2503 = vld [vmem:[%s2495 + $0x1c] sm:$0xf]
        %v2504 = vld [vmem:[%s2495 + $0x20] sm:$0xf]
        %v2505 = vld [vmem:[%s2495 + $0x24] sm:$0xf]
        %v2506 = vld [vmem:[%s2495 + $0x28] sm:$0xf]
        %v2507 = vld [vmem:[%s2495 + $0x2c] sm:$0xf]
        %v2508 = vld [vmem:[%s2495 + $0x30] sm:$0xf]
        %v2509 = vld [vmem:[%s2495 + $0x34] sm:$0xf]
        %v2510 = vld [vmem:[%s2495 + $0x38] sm:$0xf]
        %v2511 = vld [vmem:[%s2495 + $0x3c] sm:$0xf]
        %v2528 = vunpack.c.l.b16 %v2496
        %v2529 = vunpack.c.l.b16 %v2497
        %v2530 = vunpack.c.l.b16 %v2498
        %v2531 = vunpack.c.l.b16 %v2499
        %v2532 = vunpack.c.l.b16 %v2500
        %v2533 = vunpack.c.l.b16 %v2501
        %v2534 = vunpack.c.l.b16 %v2502
        %v2535 = vunpack.c.l.b16 %v2503
        %v2536 = vunpack.c.l.b16 %v2504
        %v2537 = vunpack.c.l.b16 %v2505
        %v2538 = vunpack.c.l.b16 %v2506
        %v2539 = vunpack.c.l.b16 %v2507
        %v2540 = vunpack.c.l.b16 %v2508
        %v2541 = vunpack.c.l.b16 %v2509
        %v2542 = vunpack.c.l.b16 %v2510
        %v2543 = vunpack.c.l.b16 %v2511
        %v2544 = vpack.c.b16 %v2529, %v2528
        %v2545 = vpack.c.b16 %v2531, %v2530
        %v2546 = vpack.c.b16 %v2533, %v2532
        %v2547 = vpack.c.b16 %v2535, %v2534
        %v2548 = vpack.c.b16 %v2537, %v2536
        %v2549 = vpack.c.b16 %v2539, %v2538
        %v2550 = vpack.c.b16 %v2541, %v2540
        %v2551 = vpack.c.b16 %v2543, %v2542
        %2560 = vmatprep.subr.bf16.mxu0 0
        %2561 = vmatpush1.bf16.msra.mxu0 %v2544
        %2562 = vmatprep.subr.bf16.mxu0 0
        %2563 = vmatpush1.bf16.msra.mxu0 %v2545
        %2564 = vmatprep.subr.bf16.mxu0 0
        %2565 = vmatpush1.bf16.msra.mxu0 %v2546
        %2566 = vmatprep.subr.bf16.mxu0 0
        %2567 = vmatpush1.bf16.msra.mxu0 %v2547
        %2568 = vmatprep.subr.bf16.mxu0 0
        %2569 = vmatpush1.bf16.msra.mxu0 %v2548
        %2570 = vmatprep.subr.bf16.mxu0 0
        %2571 = vmatpush1.bf16.msra.mxu0 %v2549
        %2572 = vmatprep.subr.bf16.mxu0 0
        %2573 = vmatpush1.bf16.msra.mxu0 %v2550
        %2574 = vmatprep.subr.bf16.mxu0 0
        %2575 = vmatpush1.bf16.msra.mxu0 %v2551
        %2576 = vmatprep.subr.bf16.mxu0 0
        %2577 = vmatpush1.bf16.msra.mxu0 0
        %2578 = vmatprep.subr.bf16.mxu0 0
        %2579 = vmatpush1.bf16.msra.mxu0 0
        %2580 = vmatprep.subr.bf16.mxu0 0
        %2581 = vmatpush1.bf16.msra.mxu0 0
        %2582 = vmatprep.subr.bf16.mxu0 0
        %2583 = vmatpush1.bf16.msra.mxu0 0
        %2584 = vmatprep.subr.bf16.mxu0 0
        %2585 = vmatpush1.bf16.msra.mxu0 0
        %2586 = vmatprep.subr.bf16.mxu0 0
        %2587 = vmatpush1.bf16.msra.mxu0 0
        %2588 = vmatprep.subr.bf16.mxu0 0
        %2589 = vmatpush1.bf16.msra.mxu0 0
        %2590 = vmatprep.subr.bf16.mxu0 0
        %2591 = vmatpush1.bf16.msra.mxu0 0
        %2592 = vmatprep.mubr.bf16.mxu0 0
        %2593 = vmatmul.mubr.bf16.gmra.mrb[0].mxu0 %v2479
        %v2594 = vpop.f32.mrb[0].mxu0
        %v2595 = vadd.f32 0.0, %v2594
        %v2596 = vpop.f32.mrb[0].mxu0
        %v2597 = vpop.f32.mrb[0].mxu0
        %v2598 = vadd.f32 0.0, %v2597
        %v2599 = vpop.f32.mrb[0].mxu0
        %2600 = vmatprep.mubr.bf16.mxu0 0
        %2601 = vmatmul.mubr.bf16.gmra.mrb[0].mxu0 %v2480
        %v2602 = vpop.f32.mrb[0].mxu0
        %v2603 = vadd.f32 0.0, %v2602
        %v2604 = vpop.f32.mrb[0].mxu0
        %v2605 = vpop.f32.mrb[0].mxu0
        %v2606 = vadd.f32 0.0, %v2605
        %v2607 = vpop.f32.mrb[0].mxu0
        %2608 = vmatprep.mubr.bf16.mxu0 0
        %2609 = vmatmul.mubr.bf16.gmra.mrb[0].mxu0 %v2481
        %v2610 = vpop.f32.mrb[0].mxu0
        %v2611 = vadd.f32 0.0, %v2610
        %v2612 = vpop.f32.mrb[0].mxu0
        %v2613 = vpop.f32.mrb[0].mxu0
        %v2614 = vadd.f32 0.0, %v2613
        %v2615 = vpop.f32.mrb[0].mxu0
        %2616 = vmatprep.mubr.bf16.mxu0 0
        %2617 = vmatmul.mubr.bf16.gmra.mrb[0].mxu0 %v2482
        %v2618 = vpop.f32.mrb[0].mxu0
        %v2619 = vadd.f32 0.0, %v2618
        %v2620 = vpop.f32.mrb[0].mxu0
        %v2621 = vpop.f32.mrb[0].mxu0
        %v2622 = vadd.f32 0.0, %v2621
        %v2623 = vpop.f32.mrb[0].mxu0
        %2624 = vmatprep.mubr.bf16.mxu0 0
        %2625 = vmatmul.mubr.bf16.gmra.mrb[0].mxu0 %v2483
        %v2626 = vpop.f32.mrb[0].mxu0
        %v2627 = vadd.f32 0.0, %v2626
        %v2628 = vpop.f32.mrb[0].mxu0
        %v2629 = vpop.f32.mrb[0].mxu0
        %v2630 = vadd.f32 0.0, %v2629
        %v2631 = vpop.f32.mrb[0].mxu0
        %2632 = vmatprep.mubr.bf16.mxu0 0
        %2633 = vmatmul.mubr.bf16.gmra.mrb[0].mxu0 %v2484
        %v2634 = vpop.f32.mrb[0].mxu0
        %v2635 = vadd.f32 0.0, %v2634
        %v2636 = vpop.f32.mrb[0].mxu0
        %v2637 = vpop.f32.mrb[0].mxu0
        %v2638 = vadd.f32 0.0, %v2637
        %v2639 = vpop.f32.mrb[0].mxu0
        %2640 = vmatprep.mubr.bf16.mxu0 0
        %2641 = vmatmul.mubr.bf16.gmra.mrb[0].mxu0 %v2485
        %v2642 = vpop.f32.mrb[0].mxu0
        %v2643 = vadd.f32 0.0, %v2642
        %v2644 = vpop.f32.mrb[0].mxu0
        %v2645 = vpop.f32.mrb[0].mxu0
        %v2646 = vadd.f32 0.0, %v2645
        %v2647 = vpop.f32.mrb[0].mxu0
        %2648 = vmatprep.mubr.bf16.mxu0 0
        %2649 = vmatmul.mubr.bf16.gmra.mrb[0].mxu0 %v2486
        %v2650 = vpop.f32.mrb[0].mxu0
        %v2651 = vadd.f32 0.0, %v2650
        %v2652 = vpop.f32.mrb[0].mxu0
        %v2653 = vpop.f32.mrb[0].mxu0
        %v2654 = vadd.f32 0.0, %v2653
        %v2655 = vpop.f32.mrb[0].mxu0
        %2656 = vmatprep.mubr.bf16.mxu0 0
        %2657 = vmatmul.mubr.bf16.gmra.mrb[0].mxu0 %v2487
        %v2658 = vpop.f32.mrb[0].mxu0
        %v2659 = vadd.f32 0.0, %v2658
        %v2660 = vpop.f32.mrb[0].mxu0
        %v2661 = vpop.f32.mrb[0].mxu0
        %v2662 = vadd.f32 0.0, %v2661
        %v2663 = vpop.f32.mrb[0].mxu0
        %2664 = vmatprep.mubr.bf16.mxu0 0
        %2665 = vmatmul.mubr.bf16.gmra.mrb[0].mxu0 %v2488
        %v2666 = vpop.f32.mrb[0].mxu0
        %v2667 = vadd.f32 0.0, %v2666
        %v2668 = vpop.f32.mrb[0].mxu0
        %v2669 = vpop.f32.mrb[0].mxu0
        %v2670 = vadd.f32 0.0, %v2669
        %v2671 = vpop.f32.mrb[0].mxu0
        %2672 = vmatprep.mubr.bf16.mxu0 0
        %2673 = vmatmul.mubr.bf16.gmra.mrb[0].mxu0 %v2489
        %v2674 = vpop.f32.mrb[0].mxu0
        %v2675 = vadd.f32 0.0, %v2674
        %v2676 = vpop.f32.mrb[0].mxu0
        %v2677 = vpop.f32.mrb[0].mxu0
        %v2678 = vadd.f32 0.0, %v2677
        %v2679 = vpop.f32.mrb[0].mxu0
        %2680 = vmatprep.mubr.bf16.mxu0 0
        %2681 = vmatmul.mubr.bf16.gmra.mrb[0].mxu0 %v2490
        %v2682 = vpop.f32.mrb[0].mxu0
        %v2683 = vadd.f32 0.0, %v2682
        %v2684 = vpop.f32.mrb[0].mxu0
        %v2685 = vpop.f32.mrb[0].mxu0
        %v2686 = vadd.f32 0.0, %v2685
        %v2687 = vpop.f32.mrb[0].mxu0
        %2688 = vmatprep.mubr.bf16.mxu0 0
        %2689 = vmatmul.mubr.bf16.gmra.mrb[0].mxu0 %v2491
        %v2690 = vpop.f32.mrb[0].mxu0
        %v2691 = vadd.f32 0.0, %v2690
        %v2692 = vpop.f32.mrb[0].mxu0
        %v2693 = vpop.f32.mrb[0].mxu0
        %v2694 = vadd.f32 0.0, %v2693
        %v2695 = vpop.f32.mrb[0].mxu0
        %2696 = vmatprep.mubr.bf16.mxu0 0
        %2697 = vmatmul.mubr.bf16.gmra.mrb[0].mxu0 %v2492
        %v2698 = vpop.f32.mrb[0].mxu0
        %v2699 = vadd.f32 0.0, %v2698
        %v2700 = vpop.f32.mrb[0].mxu0
        %v2701 = vpop.f32.mrb[0].mxu0
        %v2702 = vadd.f32 0.0, %v2701
        %v2703 = vpop.f32.mrb[0].mxu0
        %2704 = vmatprep.mubr.bf16.mxu0 0
        %2705 = vmatmul.mubr.bf16.gmra.mrb[0].mxu0 %v2493
        %v2706 = vpop.f32.mrb[0].mxu0
        %v2707 = vadd.f32 0.0, %v2706
        %v2708 = vpop.f32.mrb[0].mxu0
        %v2709 = vpop.f32.mrb[0].mxu0
        %v2710 = vadd.f32 0.0, %v2709
        %v2711 = vpop.f32.mrb[0].mxu0
        %2712 = vmatprep.mubr.bf16.mxu0 0
        %2713 = vmatmul.mubr.bf16.gmra.mrb[0].mxu0 %v2494
        %v2714 = vpop.f32.mrb[0].mxu0
        %v2715 = vadd.f32 0.0, %v2714
        %v2716 = vpop.f32.mrb[0].mxu0
        %v2717 = vpop.f32.mrb[0].mxu0
        %v2718 = vadd.f32 0.0, %v2717
        %v2719 = vpop.f32.mrb[0].mxu0
        %2720 = vdwg.mxu0
        %v2721 = vadd.f32 %v2415, %v2595
        %v2722 = vadd.f32 %v2416, %v2598
        %v2723 = vadd.f32 %v2417, %v2603
        %v2724 = vadd.f32 %v2418, %v2606
        %v2725 = vadd.f32 %v2419, %v2611
        %v2726 = vadd.f32 %v2420, %v2614
        %v2727 = vadd.f32 %v2421, %v2619
        %v2728 = vadd.f32 %v2422, %v2622
        %v2729 = vadd.f32 %v2423, %v2627
        %v2730 = vadd.f32 %v2424, %v2630
        %v2731 = vadd.f32 %v2425, %v2635
        %v2732 = vadd.f32 %v2426, %v2638
        %v2733 = vadd.f32 %v2427, %v2643
        %v2734 = vadd.f32 %v2428, %v2646
        %v2735 = vadd.f32 %v2429, %v2651
        %v2736 = vadd.f32 %v2430, %v2654
        %v2737 = vadd.f32 %v2431, %v2659
        %v2738 = vadd.f32 %v2432, %v2662
        %v2739 = vadd.f32 %v2433, %v2667
        %v2740 = vadd.f32 %v2434, %v2670
        %v2741 = vadd.f32 %v2435, %v2675
        %v2742 = vadd.f32 %v2436, %v2678
        %v2743 = vadd.f32 %v2437, %v2683
        %v2744 = vadd.f32 %v2438, %v2686
        %v2745 = vadd.f32 %v2439, %v2691
        %v2746 = vadd.f32 %v2440, %v2694
        %v2747 = vadd.f32 %v2441, %v2699
        %v2748 = vadd.f32 %v2442, %v2702
        %v2749 = vadd.f32 %v2443, %v2707
        %v2750 = vadd.f32 %v2444, %v2710
        %v2751 = vadd.f32 %v2445, %v2715
        %v2752 = vadd.f32 %v2446, %v2718
        %v2753 = vld [vmem:[%s1132 + $0x2] sm:$0xff]
        %v2754 = vld [vmem:[%s1132 + $0xa] sm:$0xff]
        %v2755 = vld [vmem:[%s1132 + $0x1a] sm:$0xff]
        %v2756 = vld [vmem:[%s1132 + $0x22] sm:$0xff]
        %v2757 = vld [vmem:[%s1132 + $0x32] sm:$0xff]
        %v2758 = vld [vmem:[%s1132 + $0x3a] sm:$0xff]
        %v2759 = vld [vmem:[%s1132 + $0x4a] sm:$0xff]
        %v2760 = vld [vmem:[%s1132 + $0x52] sm:$0xff]
        %v2761 = vld [vmem:[%s1132 + $0x62] sm:$0xff]
        %v2762 = vld [vmem:[%s1132 + $0x6a] sm:$0xff]
        %v2763 = vld [vmem:[%s1132 + $0x7a] sm:$0xff]
        %v2764 = vld [vmem:[%s1132 + $0x82] sm:$0xff]
        %v2765 = vld [vmem:[%s1132 + $0x92] sm:$0xff]
        %v2766 = vld [vmem:[%s1132 + $0x9a] sm:$0xff]
        %v2767 = vld [vmem:[%s1132 + $0xaa] sm:$0xff]
        %v2768 = vld [vmem:[%s1132 + $0xb2] sm:$0xff]
        %v2769 = vld [vmem:[%s1132 + $0xc2] sm:$0xff]
        %v2770 = vld [vmem:[%s1132 + $0xca] sm:$0xff]
        %v2771 = vld [vmem:[%s1132 + $0xda] sm:$0xff]
        %v2772 = vld [vmem:[%s1132 + $0xe2] sm:$0xff]
        %v2773 = vld [vmem:[%s1132 + $0xf2] sm:$0xff]
        %v2774 = vld [vmem:[%s1132 + $0xfa] sm:$0xff]
        %v2775 = vld [vmem:[%s1132 + $0x10a] sm:$0xff]
        %v2776 = vld [vmem:[%s1132 + $0x112] sm:$0xff]
        %v2777 = vld [vmem:[%s1132 + $0x122] sm:$0xff]
        %v2778 = vld [vmem:[%s1132 + $0x12a] sm:$0xff]
        %v2779 = vld [vmem:[%s1132 + $0x13a] sm:$0xff]
        %v2780 = vld [vmem:[%s1132 + $0x142] sm:$0xff]
        %v2781 = vld [vmem:[%s1132 + $0x152] sm:$0xff]
        %v2782 = vld [vmem:[%s1132 + $0x15a] sm:$0xff]
        %v2783 = vld [vmem:[%s1132 + $0x16a] sm:$0xff]
        %v2784 = vld [vmem:[%s1132 + $0x172] sm:$0xff]
        %v2785 = vpack.c.bf16 %v2754, %v2753
        %v2786 = vpack.c.bf16 %v2756, %v2755
        %v2787 = vpack.c.bf16 %v2758, %v2757
        %v2788 = vpack.c.bf16 %v2760, %v2759
        %v2789 = vpack.c.bf16 %v2762, %v2761
        %v2790 = vpack.c.bf16 %v2764, %v2763
        %v2791 = vpack.c.bf16 %v2766, %v2765
        %v2792 = vpack.c.bf16 %v2768, %v2767
        %v2793 = vpack.c.bf16 %v2770, %v2769
        %v2794 = vpack.c.bf16 %v2772, %v2771
        %v2795 = vpack.c.bf16 %v2774, %v2773
        %v2796 = vpack.c.bf16 %v2776, %v2775
        %v2797 = vpack.c.bf16 %v2778, %v2777
        %v2798 = vpack.c.bf16 %v2780, %v2779
        %v2799 = vpack.c.bf16 %v2782, %v2781
        %v2800 = vpack.c.bf16 %v2784, %v2783
        %s2801 = scalar_lea.vmem [#allocation11], 320
        %v2802 = vld [vmem:[%s2801] sm:$0xf]
        %v2803 = vld [vmem:[%s2801 + $0x4] sm:$0xf]
        %v2804 = vld [vmem:[%s2801 + $0x8] sm:$0xf]
        %v2805 = vld [vmem:[%s2801 + $0xc] sm:$0xf]
        %v2806 = vld [vmem:[%s2801 + $0x10] sm:$0xf]
        %v2807 = vld [vmem:[%s2801 + $0x14] sm:$0xf]
        %v2808 = vld [vmem:[%s2801 + $0x18] sm:$0xf]
        %v2809 = vld [vmem:[%s2801 + $0x1c] sm:$0xf]
        %v2810 = vld [vmem:[%s2801 + $0x20] sm:$0xf]
        %v2811 = vld [vmem:[%s2801 + $0x24] sm:$0xf]
        %v2812 = vld [vmem:[%s2801 + $0x28] sm:$0xf]
        %v2813 = vld [vmem:[%s2801 + $0x2c] sm:$0xf]
        %v2814 = vld [vmem:[%s2801 + $0x30] sm:$0xf]
        %v2815 = vld [vmem:[%s2801 + $0x34] sm:$0xf]
        %v2816 = vld [vmem:[%s2801 + $0x38] sm:$0xf]
        %v2817 = vld [vmem:[%s2801 + $0x3c] sm:$0xf]
        %v2834 = vunpack.c.l.b16 %v2802
        %v2835 = vunpack.c.l.b16 %v2803
        %v2836 = vunpack.c.l.b16 %v2804
        %v2837 = vunpack.c.l.b16 %v2805
        %v2838 = vunpack.c.l.b16 %v2806
        %v2839 = vunpack.c.l.b16 %v2807
        %v2840 = vunpack.c.l.b16 %v2808
        %v2841 = vunpack.c.l.b16 %v2809
        %v2842 = vunpack.c.l.b16 %v2810
        %v2843 = vunpack.c.l.b16 %v2811
        %v2844 = vunpack.c.l.b16 %v2812
        %v2845 = vunpack.c.l.b16 %v2813
        %v2846 = vunpack.c.l.b16 %v2814
        %v2847 = vunpack.c.l.b16 %v2815
        %v2848 = vunpack.c.l.b16 %v2816
        %v2849 = vunpack.c.l.b16 %v2817
        %v2850 = vpack.c.b16 %v2835, %v2834
        %v2851 = vpack.c.b16 %v2837, %v2836
        %v2852 = vpack.c.b16 %v2839, %v2838
        %v2853 = vpack.c.b16 %v2841, %v2840
        %v2854 = vpack.c.b16 %v2843, %v2842
        %v2855 = vpack.c.b16 %v2845, %v2844
        %v2856 = vpack.c.b16 %v2847, %v2846
        %v2857 = vpack.c.b16 %v2849, %v2848
        %2866 = vmatprep.subr.bf16.mxu0 0
        %2867 = vmatpush1.bf16.msra.mxu0 %v2850
        %2868 = vmatprep.subr.bf16.mxu0 0
        %2869 = vmatpush1.bf16.msra.mxu0 %v2851
        %2870 = vmatprep.subr.bf16.mxu0 0
        %2871 = vmatpush1.bf16.msra.mxu0 %v2852
        %2872 = vmatprep.subr.bf16.mxu0 0
        %2873 = vmatpush1.bf16.msra.mxu0 %v2853
        %2874 = vmatprep.subr.bf16.mxu0 0
        %2875 = vmatpush1.bf16.msra.mxu0 %v2854
        %2876 = vmatprep.subr.bf16.mxu0 0
        %2877 = vmatpush1.bf16.msra.mxu0 %v2855
        %2878 = vmatprep.subr.bf16.mxu0 0
        %2879 = vmatpush1.bf16.msra.mxu0 %v2856
        %2880 = vmatprep.subr.bf16.mxu0 0
        %2881 = vmatpush1.bf16.msra.mxu0 %v2857
        %2882 = vmatprep.subr.bf16.mxu0 0
        %2883 = vmatpush1.bf16.msra.mxu0 0
        %2884 = vmatprep.subr.bf16.mxu0 0
        %2885 = vmatpush1.bf16.msra.mxu0 0
        %2886 = vmatprep.subr.bf16.mxu0 0
        %2887 = vmatpush1.bf16.msra.mxu0 0
        %2888 = vmatprep.subr.bf16.mxu0 0
        %2889 = vmatpush1.bf16.msra.mxu0 0
        %2890 = vmatprep.subr.bf16.mxu0 0
        %2891 = vmatpush1.bf16.msra.mxu0 0
        %2892 = vmatprep.subr.bf16.mxu0 0
        %2893 = vmatpush1.bf16.msra.mxu0 0
        %2894 = vmatprep.subr.bf16.mxu0 0
        %2895 = vmatpush1.bf16.msra.mxu0 0
        %2896 = vmatprep.subr.bf16.mxu0 0
        %2897 = vmatpush1.bf16.msra.mxu0 0
        %2898 = vmatprep.mubr.bf16.mxu0 0
        %2899 = vmatmul.mubr.bf16.gmra.mrb[0].mxu0 %v2785
        %v2900 = vpop.f32.mrb[0].mxu0
        %v2901 = vadd.f32 0.0, %v2900
        %v2902 = vpop.f32.mrb[0].mxu0
        %v2903 = vpop.f32.mrb[0].mxu0
        %v2904 = vadd.f32 0.0, %v2903
        %v2905 = vpop.f32.mrb[0].mxu0
        %2906 = vmatprep.mubr.bf16.mxu0 0
        %2907 = vmatmul.mubr.bf16.gmra.mrb[0].mxu0 %v2786
        %v2908 = vpop.f32.mrb[0].mxu0
        %v2909 = vadd.f32 0.0, %v2908
        %v2910 = vpop.f32.mrb[0].mxu0
        %v2911 = vpop.f32.mrb[0].mxu0
        %v2912 = vadd.f32 0.0, %v2911
        %v2913 = vpop.f32.mrb[0].mxu0
        %2914 = vmatprep.mubr.bf16.mxu0 0
        %2915 = vmatmul.mubr.bf16.gmra.mrb[0].mxu0 %v2787
        %v2916 = vpop.f32.mrb[0].mxu0
        %v2917 = vadd.f32 0.0, %v2916
        %v2918 = vpop.f32.mrb[0].mxu0
        %v2919 = vpop.f32.mrb[0].mxu0
        %v2920 = vadd.f32 0.0, %v2919
        %v2921 = vpop.f32.mrb[0].mxu0
        %2922 = vmatprep.mubr.bf16.mxu0 0
        %2923 = vmatmul.mubr.bf16.gmra.mrb[0].mxu0 %v2788
        %v2924 = vpop.f32.mrb[0].mxu0
        %v2925 = vadd.f32 0.0, %v2924
        %v2926 = vpop.f32.mrb[0].mxu0
        %v2927 = vpop.f32.mrb[0].mxu0
        %v2928 = vadd.f32 0.0, %v2927
        %v2929 = vpop.f32.mrb[0].mxu0
        %2930 = vmatprep.mubr.bf16.mxu0 0
        %2931 = vmatmul.mubr.bf16.gmra.mrb[0].mxu0 %v2789
        %v2932 = vpop.f32.mrb[0].mxu0
        %v2933 = vadd.f32 0.0, %v2932
        %v2934 = vpop.f32.mrb[0].mxu0
        %v2935 = vpop.f32.mrb[0].mxu0
        %v2936 = vadd.f32 0.0, %v2935
        %v2937 = vpop.f32.mrb[0].mxu0
        %2938 = vmatprep.mubr.bf16.mxu0 0
        %2939 = vmatmul.mubr.bf16.gmra.mrb[0].mxu0 %v2790
        %v2940 = vpop.f32.mrb[0].mxu0
        %v2941 = vadd.f32 0.0, %v2940
        %v2942 = vpop.f32.mrb[0].mxu0
        %v2943 = vpop.f32.mrb[0].mxu0
        %v2944 = vadd.f32 0.0, %v2943
        %v2945 = vpop.f32.mrb[0].mxu0
        %2946 = vmatprep.mubr.bf16.mxu0 0
        %2947 = vmatmul.mubr.bf16.gmra.mrb[0].mxu0 %v2791
        %v2948 = vpop.f32.mrb[0].mxu0
        %v2949 = vadd.f32 0.0, %v2948
        %v2950 = vpop.f32.mrb[0].mxu0
        %v2951 = vpop.f32.mrb[0].mxu0
        %v2952 = vadd.f32 0.0, %v2951
        %v2953 = vpop.f32.mrb[0].mxu0
        %2954 = vmatprep.mubr.bf16.mxu0 0
        %2955 = vmatmul.mubr.bf16.gmra.mrb[0].mxu0 %v2792
        %v2956 = vpop.f32.mrb[0].mxu0
        %v2957 = vadd.f32 0.0, %v2956
        %v2958 = vpop.f32.mrb[0].mxu0
        %v2959 = vpop.f32.mrb[0].mxu0
        %v2960 = vadd.f32 0.0, %v2959
        %v2961 = vpop.f32.mrb[0].mxu0
        %2962 = vmatprep.mubr.bf16.mxu0 0
        %2963 = vmatmul.mubr.bf16.gmra.mrb[0].mxu0 %v2793
        %v2964 = vpop.f32.mrb[0].mxu0
        %v2965 = vadd.f32 0.0, %v2964
        %v2966 = vpop.f32.mrb[0].mxu0
        %v2967 = vpop.f32.mrb[0].mxu0
        %v2968 = vadd.f32 0.0, %v2967
        %v2969 = vpop.f32.mrb[0].mxu0
        %2970 = vmatprep.mubr.bf16.mxu0 0
        %2971 = vmatmul.mubr.bf16.gmra.mrb[0].mxu0 %v2794
        %v2972 = vpop.f32.mrb[0].mxu0
        %v2973 = vadd.f32 0.0, %v2972
        %v2974 = vpop.f32.mrb[0].mxu0
        %v2975 = vpop.f32.mrb[0].mxu0
        %v2976 = vadd.f32 0.0, %v2975
        %v2977 = vpop.f32.mrb[0].mxu0
        %2978 = vmatprep.mubr.bf16.mxu0 0
        %2979 = vmatmul.mubr.bf16.gmra.mrb[0].mxu0 %v2795
        %v2980 = vpop.f32.mrb[0].mxu0
        %v2981 = vadd.f32 0.0, %v2980
        %v2982 = vpop.f32.mrb[0].mxu0
        %v2983 = vpop.f32.mrb[0].mxu0
        %v2984 = vadd.f32 0.0, %v2983
        %v2985 = vpop.f32.mrb[0].mxu0
        %2986 = vmatprep.mubr.bf16.mxu0 0
        %2987 = vmatmul.mubr.bf16.gmra.mrb[0].mxu0 %v2796
        %v2988 = vpop.f32.mrb[0].mxu0
        %v2989 = vadd.f32 0.0, %v2988
        %v2990 = vpop.f32.mrb[0].mxu0
        %v2991 = vpop.f32.mrb[0].mxu0
        %v2992 = vadd.f32 0.0, %v2991
        %v2993 = vpop.f32.mrb[0].mxu0
        %2994 = vmatprep.mubr.bf16.mxu0 0
        %2995 = vmatmul.mubr.bf16.gmra.mrb[0].mxu0 %v2797
        %v2996 = vpop.f32.mrb[0].mxu0
        %v2997 = vadd.f32 0.0, %v2996
        %v2998 = vpop.f32.mrb[0].mxu0
        %v2999 = vpop.f32.mrb[0].mxu0
        %v3000 = vadd.f32 0.0, %v2999
        %v3001 = vpop.f32.mrb[0].mxu0
        %3002 = vmatprep.mubr.bf16.mxu0 0
        %3003 = vmatmul.mubr.bf16.gmra.mrb[0].mxu0 %v2798
        %v3004 = vpop.f32.mrb[0].mxu0
        %v3005 = vadd.f32 0.0, %v3004
        %v3006 = vpop.f32.mrb[0].mxu0
        %v3007 = vpop.f32.mrb[0].mxu0
        %v3008 = vadd.f32 0.0, %v3007
        %v3009 = vpop.f32.mrb[0].mxu0
        %3010 = vmatprep.mubr.bf16.mxu0 0
        %3011 = vmatmul.mubr.bf16.gmra.mrb[0].mxu0 %v2799
        %v3012 = vpop.f32.mrb[0].mxu0
        %v3013 = vadd.f32 0.0, %v3012
        %v3014 = vpop.f32.mrb[0].mxu0
        %v3015 = vpop.f32.mrb[0].mxu0
        %v3016 = vadd.f32 0.0, %v3015
        %v3017 = vpop.f32.mrb[0].mxu0
        %3018 = vmatprep.mubr.bf16.mxu0 0
        %3019 = vmatmul.mubr.bf16.gmra.mrb[0].mxu0 %v2800
        %v3020 = vpop.f32.mrb[0].mxu0
        %v3021 = vadd.f32 0.0, %v3020
        %v3022 = vpop.f32.mrb[0].mxu0
        %v3023 = vpop.f32.mrb[0].mxu0
        %v3024 = vadd.f32 0.0, %v3023
        %v3025 = vpop.f32.mrb[0].mxu0
        %3026 = vdwg.mxu0
        %v3027 = vadd.f32 %v2721, %v2901
        %v3028 = vadd.f32 %v2722, %v2904
        %v3029 = vadd.f32 %v2723, %v2909
        %v3030 = vadd.f32 %v2724, %v2912
        %v3031 = vadd.f32 %v2725, %v2917
        %v3032 = vadd.f32 %v2726, %v2920
        %v3033 = vadd.f32 %v2727, %v2925
        %v3034 = vadd.f32 %v2728, %v2928
        %v3035 = vadd.f32 %v2729, %v2933
        %v3036 = vadd.f32 %v2730, %v2936
        %v3037 = vadd.f32 %v2731, %v2941
        %v3038 = vadd.f32 %v2732, %v2944
        %v3039 = vadd.f32 %v2733, %v2949
        %v3040 = vadd.f32 %v2734, %v2952
        %v3041 = vadd.f32 %v2735, %v2957
        %v3042 = vadd.f32 %v2736, %v2960
        %v3043 = vadd.f32 %v2737, %v2965
        %v3044 = vadd.f32 %v2738, %v2968
        %v3045 = vadd.f32 %v2739, %v2973
        %v3046 = vadd.f32 %v2740, %v2976
        %v3047 = vadd.f32 %v2741, %v2981
        %v3048 = vadd.f32 %v2742, %v2984
        %v3049 = vadd.f32 %v2743, %v2989
        %v3050 = vadd.f32 %v2744, %v2992
        %v3051 = vadd.f32 %v2745, %v2997
        %v3052 = vadd.f32 %v2746, %v3000
        %v3053 = vadd.f32 %v2747, %v3005
        %v3054 = vadd.f32 %v2748, %v3008
        %v3055 = vadd.f32 %v2749, %v3013
        %v3056 = vadd.f32 %v2750, %v3016
        %v3057 = vadd.f32 %v2751, %v3021
        %v3058 = vadd.f32 %v2752, %v3024
        %s3059 = scalar_lea.vmem [#allocation2], 48
        %v3060 = vld [vmem:[%s3059] sm:$0xff]
        %v3061 = vld [vmem:[%s3059 + $0x8] sm:$0xff]
        %v3062 = vld [vmem:[%s3059 + $0x18] sm:$0xff]
        %v3063 = vld [vmem:[%s3059 + $0x20] sm:$0xff]
        %v3064 = vld [vmem:[%s3059 + $0x30] sm:$0xff]
        %v3065 = vld [vmem:[%s3059 + $0x38] sm:$0xff]
        %v3066 = vld [vmem:[%s3059 + $0x48] sm:$0xff]
        %v3067 = vld [vmem:[%s3059 + $0x50] sm:$0xff]
        %v3068 = vld [vmem:[%s3059 + $0x60] sm:$0xff]
        %v3069 = vld [vmem:[%s3059 + $0x68] sm:$0xff]
        %v3070 = vld [vmem:[%s3059 + $0x78] sm:$0xff]
        %v3071 = vld [vmem:[%s3059 + $0x80] sm:$0xff]
        %v3072 = vld [vmem:[%s3059 + $0x90] sm:$0xff]
        %v3073 = vld [vmem:[%s3059 + $0x98] sm:$0xff]
        %v3074 = vld [vmem:[%s3059 + $0xa8] sm:$0xff]
        %v3075 = vld [vmem:[%s3059 + $0xb0] sm:$0xff]
        %v3076 = vld [vmem:[%s3059 + $0xc0] sm:$0xff]
        %v3077 = vld [vmem:[%s3059 + $0xc8] sm:$0xff]
        %v3078 = vld [vmem:[%s3059 + $0xd8] sm:$0xff]
        %v3079 = vld [vmem:[%s3059 + $0xe0] sm:$0xff]
        %v3080 = vld [vmem:[%s3059 + $0xf0] sm:$0xff]
        %v3081 = vld [vmem:[%s3059 + $0xf8] sm:$0xff]
        %v3082 = vld [vmem:[%s3059 + $0x108] sm:$0xff]
        %v3083 = vld [vmem:[%s3059 + $0x110] sm:$0xff]
        %v3084 = vld [vmem:[%s3059 + $0x120] sm:$0xff]
        %v3085 = vld [vmem:[%s3059 + $0x128] sm:$0xff]
        %v3086 = vld [vmem:[%s3059 + $0x138] sm:$0xff]
        %v3087 = vld [vmem:[%s3059 + $0x140] sm:$0xff]
        %v3088 = vld [vmem:[%s3059 + $0x150] sm:$0xff]
        %v3089 = vld [vmem:[%s3059 + $0x158] sm:$0xff]
        %v3090 = vld [vmem:[%s3059 + $0x168] sm:$0xff]
        %v3091 = vld [vmem:[%s3059 + $0x170] sm:$0xff]
        %v3092 = vpack.c.bf16 %v3061, %v3060
        %v3093 = vpack.c.bf16 %v3063, %v3062
        %v3094 = vpack.c.bf16 %v3065, %v3064
        %v3095 = vpack.c.bf16 %v3067, %v3066
        %v3096 = vpack.c.bf16 %v3069, %v3068
        %v3097 = vpack.c.bf16 %v3071, %v3070
        %v3098 = vpack.c.bf16 %v3073, %v3072
        %v3099 = vpack.c.bf16 %v3075, %v3074
        %v3100 = vpack.c.bf16 %v3077, %v3076
        %v3101 = vpack.c.bf16 %v3079, %v3078
        %v3102 = vpack.c.bf16 %v3081, %v3080
        %v3103 = vpack.c.bf16 %v3083, %v3082
        %v3104 = vpack.c.bf16 %v3085, %v3084
        %v3105 = vpack.c.bf16 %v3087, %v3086
        %v3106 = vpack.c.bf16 %v3089, %v3088
        %v3107 = vpack.c.bf16 %v3091, %v3090
        %s3108 = scalar_lea.vmem [#allocation11], 384
        %v3109 = vld [vmem:[%s3108] sm:$0xf]
        %v3110 = vld [vmem:[%s3108 + $0x4] sm:$0xf]
        %v3111 = vld [vmem:[%s3108 + $0x8] sm:$0xf]
        %v3112 = vld [vmem:[%s3108 + $0xc] sm:$0xf]
        %v3113 = vld [vmem:[%s3108 + $0x10] sm:$0xf]
        %v3114 = vld [vmem:[%s3108 + $0x14] sm:$0xf]
        %v3115 = vld [vmem:[%s3108 + $0x18] sm:$0xf]
        %v3116 = vld [vmem:[%s3108 + $0x1c] sm:$0xf]
        %v3117 = vld [vmem:[%s3108 + $0x20] sm:$0xf]
        %v3118 = vld [vmem:[%s3108 + $0x24] sm:$0xf]
        %v3119 = vld [vmem:[%s3108 + $0x28] sm:$0xf]
        %v3120 = vld [vmem:[%s3108 + $0x2c] sm:$0xf]
        %v3121 = vld [vmem:[%s3108 + $0x30] sm:$0xf]
        %v3122 = vld [vmem:[%s3108 + $0x34] sm:$0xf]
        %v3123 = vld [vmem:[%s3108 + $0x38] sm:$0xf]
        %v3124 = vld [vmem:[%s3108 + $0x3c] sm:$0xf]
        %v3141 = vunpack.c.l.b16 %v3109
        %v3142 = vunpack.c.l.b16 %v3110
        %v3143 = vunpack.c.l.b16 %v3111
        %v3144 = vunpack.c.l.b16 %v3112
        %v3145 = vunpack.c.l.b16 %v3113
        %v3146 = vunpack.c.l.b16 %v3114
        %v3147 = vunpack.c.l.b16 %v3115
        %v3148 = vunpack.c.l.b16 %v3116
        %v3149 = vunpack.c.l.b16 %v3117
        %v3150 = vunpack.c.l.b16 %v3118
        %v3151 = vunpack.c.l.b16 %v3119
        %v3152 = vunpack.c.l.b16 %v3120
        %v3153 = vunpack.c.l.b16 %v3121
        %v3154 = vunpack.c.l.b16 %v3122
        %v3155 = vunpack.c.l.b16 %v3123
        %v3156 = vunpack.c.l.b16 %v3124
        %v3157 = vpack.c.b16 %v3142, %v3141
        %v3158 = vpack.c.b16 %v3144, %v3143
        %v3159 = vpack.c.b16 %v3146, %v3145
        %v3160 = vpack.c.b16 %v3148, %v3147
        %v3161 = vpack.c.b16 %v3150, %v3149
        %v3162 = vpack.c.b16 %v3152, %v3151
        %v3163 = vpack.c.b16 %v3154, %v3153
        %v3164 = vpack.c.b16 %v3156, %v3155
        %3173 = vmatprep.subr.bf16.mxu0 0
        %3174 = vmatpush1.bf16.msra.mxu0 %v3157
        %3175 = vmatprep.subr.bf16.mxu0 0
        %3176 = vmatpush1.bf16.msra.mxu0 %v3158
        %3177 = vmatprep.subr.bf16.mxu0 0
        %3178 = vmatpush1.bf16.msra.mxu0 %v3159
        %3179 = vmatprep.subr.bf16.mxu0 0
        %3180 = vmatpush1.bf16.msra.mxu0 %v3160
        %3181 = vmatprep.subr.bf16.mxu0 0
        %3182 = vmatpush1.bf16.msra.mxu0 %v3161
        %3183 = vmatprep.subr.bf16.mxu0 0
        %3184 = vmatpush1.bf16.msra.mxu0 %v3162
        %3185 = vmatprep.subr.bf16.mxu0 0
        %3186 = vmatpush1.bf16.msra.mxu0 %v3163
        %3187 = vmatprep.subr.bf16.mxu0 0
        %3188 = vmatpush1.bf16.msra.mxu0 %v3164
        %3189 = vmatprep.subr.bf16.mxu0 0
        %3190 = vmatpush1.bf16.msra.mxu0 0
        %3191 = vmatprep.subr.bf16.mxu0 0
        %3192 = vmatpush1.bf16.msra.mxu0 0
        %3193 = vmatprep.subr.bf16.mxu0 0
        %3194 = vmatpush1.bf16.msra.mxu0 0
        %3195 = vmatprep.subr.bf16.mxu0 0
        %3196 = vmatpush1.bf16.msra.mxu0 0
        %3197 = vmatprep.subr.bf16.mxu0 0
        %3198 = vmatpush1.bf16.msra.mxu0 0
        %3199 = vmatprep.subr.bf16.mxu0 0
        %3200 = vmatpush1.bf16.msra.mxu0 0
        %3201 = vmatprep.subr.bf16.mxu0 0
        %3202 = vmatpush1.bf16.msra.mxu0 0
        %3203 = vmatprep.subr.bf16.mxu0 0
        %3204 = vmatpush1.bf16.msra.mxu0 0
        %3205 = vmatprep.mubr.bf16.mxu0 0
        %3206 = vmatmul.mubr.bf16.gmra.mrb[0].mxu0 %v3092
        %v3207 = vpop.f32.mrb[0].mxu0
        %v3208 = vadd.f32 0.0, %v3207
        %v3209 = vpop.f32.mrb[0].mxu0
        %v3210 = vpop.f32.mrb[0].mxu0
        %v3211 = vadd.f32 0.0, %v3210
        %v3212 = vpop.f32.mrb[0].mxu0
        %3213 = vmatprep.mubr.bf16.mxu0 0
        %3214 = vmatmul.mubr.bf16.gmra.mrb[0].mxu0 %v3093
        %v3215 = vpop.f32.mrb[0].mxu0
        %v3216 = vadd.f32 0.0, %v3215
        %v3217 = vpop.f32.mrb[0].mxu0
        %v3218 = vpop.f32.mrb[0].mxu0
        %v3219 = vadd.f32 0.0, %v3218
        %v3220 = vpop.f32.mrb[0].mxu0
        %3221 = vmatprep.mubr.bf16.mxu0 0
        %3222 = vmatmul.mubr.bf16.gmra.mrb[0].mxu0 %v3094
        %v3223 = vpop.f32.mrb[0].mxu0
        %v3224 = vadd.f32 0.0, %v3223
        %v3225 = vpop.f32.mrb[0].mxu0
        %v3226 = vpop.f32.mrb[0].mxu0
        %v3227 = vadd.f32 0.0, %v3226
        %v3228 = vpop.f32.mrb[0].mxu0
        %3229 = vmatprep.mubr.bf16.mxu0 0
        %3230 = vmatmul.mubr.bf16.gmra.mrb[0].mxu0 %v3095
        %v3231 = vpop.f32.mrb[0].mxu0
        %v3232 = vadd.f32 0.0, %v3231
        %v3233 = vpop.f32.mrb[0].mxu0
        %v3234 = vpop.f32.mrb[0].mxu0
        %v3235 = vadd.f32 0.0, %v3234
        %v3236 = vpop.f32.mrb[0].mxu0
        %3237 = vmatprep.mubr.bf16.mxu0 0
        %3238 = vmatmul.mubr.bf16.gmra.mrb[0].mxu0 %v3096
        %v3239 = vpop.f32.mrb[0].mxu0
        %v3240 = vadd.f32 0.0, %v3239
        %v3241 = vpop.f32.mrb[0].mxu0
        %v3242 = vpop.f32.mrb[0].mxu0
        %v3243 = vadd.f32 0.0, %v3242
        %v3244 = vpop.f32.mrb[0].mxu0
        %3245 = vmatprep.mubr.bf16.mxu0 0
        %3246 = vmatmul.mubr.bf16.gmra.mrb[0].mxu0 %v3097
        %v3247 = vpop.f32.mrb[0].mxu0
        %v3248 = vadd.f32 0.0, %v3247
        %v3249 = vpop.f32.mrb[0].mxu0
        %v3250 = vpop.f32.mrb[0].mxu0
        %v3251 = vadd.f32 0.0, %v3250
        %v3252 = vpop.f32.mrb[0].mxu0
        %3253 = vmatprep.mubr.bf16.mxu0 0
        %3254 = vmatmul.mubr.bf16.gmra.mrb[0].mxu0 %v3098
        %v3255 = vpop.f32.mrb[0].mxu0
        %v3256 = vadd.f32 0.0, %v3255
        %v3257 = vpop.f32.mrb[0].mxu0
        %v3258 = vpop.f32.mrb[0].mxu0
        %v3259 = vadd.f32 0.0, %v3258
        %v3260 = vpop.f32.mrb[0].mxu0
        %3261 = vmatprep.mubr.bf16.mxu0 0
        %3262 = vmatmul.mubr.bf16.gmra.mrb[0].mxu0 %v3099
        %v3263 = vpop.f32.mrb[0].mxu0
        %v3264 = vadd.f32 0.0, %v3263
        %v3265 = vpop.f32.mrb[0].mxu0
        %v3266 = vpop.f32.mrb[0].mxu0
        %v3267 = vadd.f32 0.0, %v3266
        %v3268 = vpop.f32.mrb[0].mxu0
        %3269 = vmatprep.mubr.bf16.mxu0 0
        %3270 = vmatmul.mubr.bf16.gmra.mrb[0].mxu0 %v3100
        %v3271 = vpop.f32.mrb[0].mxu0
        %v3272 = vadd.f32 0.0, %v3271
        %v3273 = vpop.f32.mrb[0].mxu0
        %v3274 = vpop.f32.mrb[0].mxu0
        %v3275 = vadd.f32 0.0, %v3274
        %v3276 = vpop.f32.mrb[0].mxu0
        %3277 = vmatprep.mubr.bf16.mxu0 0
        %3278 = vmatmul.mubr.bf16.gmra.mrb[0].mxu0 %v3101
        %v3279 = vpop.f32.mrb[0].mxu0
        %v3280 = vadd.f32 0.0, %v3279
        %v3281 = vpop.f32.mrb[0].mxu0
        %v3282 = vpop.f32.mrb[0].mxu0
        %v3283 = vadd.f32 0.0, %v3282
        %v3284 = vpop.f32.mrb[0].mxu0
        %3285 = vmatprep.mubr.bf16.mxu0 0
        %3286 = vmatmul.mubr.bf16.gmra.mrb[0].mxu0 %v3102
        %v3287 = vpop.f32.mrb[0].mxu0
        %v3288 = vadd.f32 0.0, %v3287
        %v3289 = vpop.f32.mrb[0].mxu0
        %v3290 = vpop.f32.mrb[0].mxu0
        %v3291 = vadd.f32 0.0, %v3290
        %v3292 = vpop.f32.mrb[0].mxu0
        %3293 = vmatprep.mubr.bf16.mxu0 0
        %3294 = vmatmul.mubr.bf16.gmra.mrb[0].mxu0 %v3103
        %v3295 = vpop.f32.mrb[0].mxu0
        %v3296 = vadd.f32 0.0, %v3295
        %v3297 = vpop.f32.mrb[0].mxu0
        %v3298 = vpop.f32.mrb[0].mxu0
        %v3299 = vadd.f32 0.0, %v3298
        %v3300 = vpop.f32.mrb[0].mxu0
        %3301 = vmatprep.mubr.bf16.mxu0 0
        %3302 = vmatmul.mubr.bf16.gmra.mrb[0].mxu0 %v3104
        %v3303 = vpop.f32.mrb[0].mxu0
        %v3304 = vadd.f32 0.0, %v3303
        %v3305 = vpop.f32.mrb[0].mxu0
        %v3306 = vpop.f32.mrb[0].mxu0
        %v3307 = vadd.f32 0.0, %v3306
        %v3308 = vpop.f32.mrb[0].mxu0
        %3309 = vmatprep.mubr.bf16.mxu0 0
        %3310 = vmatmul.mubr.bf16.gmra.mrb[0].mxu0 %v3105
        %v3311 = vpop.f32.mrb[0].mxu0
        %v3312 = vadd.f32 0.0, %v3311
        %v3313 = vpop.f32.mrb[0].mxu0
        %v3314 = vpop.f32.mrb[0].mxu0
        %v3315 = vadd.f32 0.0, %v3314
        %v3316 = vpop.f32.mrb[0].mxu0
        %3317 = vmatprep.mubr.bf16.mxu0 0
        %3318 = vmatmul.mubr.bf16.gmra.mrb[0].mxu0 %v3106
        %v3319 = vpop.f32.mrb[0].mxu0
        %v3320 = vadd.f32 0.0, %v3319
        %v3321 = vpop.f32.mrb[0].mxu0
        %v3322 = vpop.f32.mrb[0].mxu0
        %v3323 = vadd.f32 0.0, %v3322
        %v3324 = vpop.f32.mrb[0].mxu0
        %3325 = vmatprep.mubr.bf16.mxu0 0
        %3326 = vmatmul.mubr.bf16.gmra.mrb[0].mxu0 %v3107
        %v3327 = vpop.f32.mrb[0].mxu0
        %v3328 = vadd.f32 0.0, %v3327
        %v3329 = vpop.f32.mrb[0].mxu0
        %v3330 = vpop.f32.mrb[0].mxu0
        %v3331 = vadd.f32 0.0, %v3330
        %v3332 = vpop.f32.mrb[0].mxu0
        %3333 = vdwg.mxu0
        %v3334 = vadd.f32 %v3027, %v3208
        %v3335 = vadd.f32 %v3028, %v3211
        %v3336 = vadd.f32 %v3029, %v3216
        %v3337 = vadd.f32 %v3030, %v3219
        %v3338 = vadd.f32 %v3031, %v3224
        %v3339 = vadd.f32 %v3032, %v3227
        %v3340 = vadd.f32 %v3033, %v3232
        %v3341 = vadd.f32 %v3034, %v3235
        %v3342 = vadd.f32 %v3035, %v3240
        %v3343 = vadd.f32 %v3036, %v3243
        %v3344 = vadd.f32 %v3037, %v3248
        %v3345 = vadd.f32 %v3038, %v3251
        %v3346 = vadd.f32 %v3039, %v3256
        %v3347 = vadd.f32 %v3040, %v3259
        %v3348 = vadd.f32 %v3041, %v3264
        %v3349 = vadd.f32 %v3042, %v3267
        %v3350 = vadd.f32 %v3043, %v3272
        %v3351 = vadd.f32 %v3044, %v3275
        %v3352 = vadd.f32 %v3045, %v3280
        %v3353 = vadd.f32 %v3046, %v3283
        %v3354 = vadd.f32 %v3047, %v3288
        %v3355 = vadd.f32 %v3048, %v3291
        %v3356 = vadd.f32 %v3049, %v3296
        %v3357 = vadd.f32 %v3050, %v3299
        %v3358 = vadd.f32 %v3051, %v3304
        %v3359 = vadd.f32 %v3052, %v3307
        %v3360 = vadd.f32 %v3053, %v3312
        %v3361 = vadd.f32 %v3054, %v3315
        %v3362 = vadd.f32 %v3055, %v3320
        %v3363 = vadd.f32 %v3056, %v3323
        %v3364 = vadd.f32 %v3057, %v3328
        %v3365 = vadd.f32 %v3058, %v3331
        %v3366 = vld [vmem:[%s3059 + $0x1] sm:$0xff]
        %v3367 = vld [vmem:[%s3059 + $0x9] sm:$0xff]
        %v3368 = vld [vmem:[%s3059 + $0x19] sm:$0xff]
        %v3369 = vld [vmem:[%s3059 + $0x21] sm:$0xff]
        %v3370 = vld [vmem:[%s3059 + $0x31] sm:$0xff]
        %v3371 = vld [vmem:[%s3059 + $0x39] sm:$0xff]
        %v3372 = vld [vmem:[%s3059 + $0x49] sm:$0xff]
        %v3373 = vld [vmem:[%s3059 + $0x51] sm:$0xff]
        %v3374 = vld [vmem:[%s3059 + $0x61] sm:$0xff]
        %v3375 = vld [vmem:[%s3059 + $0x69] sm:$0xff]
        %v3376 = vld [vmem:[%s3059 + $0x79] sm:$0xff]
        %v3377 = vld [vmem:[%s3059 + $0x81] sm:$0xff]
        %v3378 = vld [vmem:[%s3059 + $0x91] sm:$0xff]
        %v3379 = vld [vmem:[%s3059 + $0x99] sm:$0xff]
        %v3380 = vld [vmem:[%s3059 + $0xa9] sm:$0xff]
        %v3381 = vld [vmem:[%s3059 + $0xb1] sm:$0xff]
        %v3382 = vld [vmem:[%s3059 + $0xc1] sm:$0xff]
        %v3383 = vld [vmem:[%s3059 + $0xc9] sm:$0xff]
        %v3384 = vld [vmem:[%s3059 + $0xd9] sm:$0xff]
        %v3385 = vld [vmem:[%s3059 + $0xe1] sm:$0xff]
        %v3386 = vld [vmem:[%s3059 + $0xf1] sm:$0xff]
        %v3387 = vld [vmem:[%s3059 + $0xf9] sm:$0xff]
        %v3388 = vld [vmem:[%s3059 + $0x109] sm:$0xff]
        %v3389 = vld [vmem:[%s3059 + $0x111] sm:$0xff]
        %v3390 = vld [vmem:[%s3059 + $0x121] sm:$0xff]
        %v3391 = vld [vmem:[%s3059 + $0x129] sm:$0xff]
        %v3392 = vld [vmem:[%s3059 + $0x139] sm:$0xff]
        %v3393 = vld [vmem:[%s3059 + $0x141] sm:$0xff]
        %v3394 = vld [vmem:[%s3059 + $0x151] sm:$0xff]
        %v3395 = vld [vmem:[%s3059 + $0x159] sm:$0xff]
        %v3396 = vld [vmem:[%s3059 + $0x169] sm:$0xff]
        %v3397 = vld [vmem:[%s3059 + $0x171] sm:$0xff]
        %v3398 = vpack.c.bf16 %v3367, %v3366
        %v3399 = vpack.c.bf16 %v3369, %v3368
        %v3400 = vpack.c.bf16 %v3371, %v3370
        %v3401 = vpack.c.bf16 %v3373, %v3372
        %v3402 = vpack.c.bf16 %v3375, %v3374
        %v3403 = vpack.c.bf16 %v3377, %v3376
        %v3404 = vpack.c.bf16 %v3379, %v3378
        %v3405 = vpack.c.bf16 %v3381, %v3380
        %v3406 = vpack.c.bf16 %v3383, %v3382
        %v3407 = vpack.c.bf16 %v3385, %v3384
        %v3408 = vpack.c.bf16 %v3387, %v3386
        %v3409 = vpack.c.bf16 %v3389, %v3388
        %v3410 = vpack.c.bf16 %v3391, %v3390
        %v3411 = vpack.c.bf16 %v3393, %v3392
        %v3412 = vpack.c.bf16 %v3395, %v3394
        %v3413 = vpack.c.bf16 %v3397, %v3396
        %s3414 = scalar_lea.vmem [#allocation11], 448
        %v3415 = vld [vmem:[%s3414] sm:$0xf]
        %v3416 = vld [vmem:[%s3414 + $0x4] sm:$0xf]
        %v3417 = vld [vmem:[%s3414 + $0x8] sm:$0xf]
        %v3418 = vld [vmem:[%s3414 + $0xc] sm:$0xf]
        %v3419 = vld [vmem:[%s3414 + $0x10] sm:$0xf]
        %v3420 = vld [vmem:[%s3414 + $0x14] sm:$0xf]
        %v3421 = vld [vmem:[%s3414 + $0x18] sm:$0xf]
        %v3422 = vld [vmem:[%s3414 + $0x1c] sm:$0xf]
        %v3423 = vld [vmem:[%s3414 + $0x20] sm:$0xf]
        %v3424 = vld [vmem:[%s3414 + $0x24] sm:$0xf]
        %v3425 = vld [vmem:[%s3414 + $0x28] sm:$0xf]
        %v3426 = vld [vmem:[%s3414 + $0x2c] sm:$0xf]
        %v3427 = vld [vmem:[%s3414 + $0x30] sm:$0xf]
        %v3428 = vld [vmem:[%s3414 + $0x34] sm:$0xf]
        %v3429 = vld [vmem:[%s3414 + $0x38] sm:$0xf]
        %v3430 = vld [vmem:[%s3414 + $0x3c] sm:$0xf]
        %v3447 = vunpack.c.l.b16 %v3415
        %v3448 = vunpack.c.l.b16 %v3416
        %v3449 = vunpack.c.l.b16 %v3417
        %v3450 = vunpack.c.l.b16 %v3418
        %v3451 = vunpack.c.l.b16 %v3419
        %v3452 = vunpack.c.l.b16 %v3420
        %v3453 = vunpack.c.l.b16 %v3421
        %v3454 = vunpack.c.l.b16 %v3422
        %v3455 = vunpack.c.l.b16 %v3423
        %v3456 = vunpack.c.l.b16 %v3424
        %v3457 = vunpack.c.l.b16 %v3425
        %v3458 = vunpack.c.l.b16 %v3426
        %v3459 = vunpack.c.l.b16 %v3427
        %v3460 = vunpack.c.l.b16 %v3428
        %v3461 = vunpack.c.l.b16 %v3429
        %v3462 = vunpack.c.l.b16 %v3430
        %v3463 = vpack.c.b16 %v3448, %v3447
        %v3464 = vpack.c.b16 %v3450, %v3449
        %v3465 = vpack.c.b16 %v3452, %v3451
        %v3466 = vpack.c.b16 %v3454, %v3453
        %v3467 = vpack.c.b16 %v3456, %v3455
        %v3468 = vpack.c.b16 %v3458, %v3457
        %v3469 = vpack.c.b16 %v3460, %v3459
        %v3470 = vpack.c.b16 %v3462, %v3461
        %3479 = vmatprep.subr.bf16.mxu0 0
        %3480 = vmatpush1.bf16.msra.mxu0 %v3463
        %3481 = vmatprep.subr.bf16.mxu0 0
        %3482 = vmatpush1.bf16.msra.mxu0 %v3464
        %3483 = vmatprep.subr.bf16.mxu0 0
        %3484 = vmatpush1.bf16.msra.mxu0 %v3465
        %3485 = vmatprep.subr.bf16.mxu0 0
        %3486 = vmatpush1.bf16.msra.mxu0 %v3466
        %3487 = vmatprep.subr.bf16.mxu0 0
        %3488 = vmatpush1.bf16.msra.mxu0 %v3467
        %3489 = vmatprep.subr.bf16.mxu0 0
        %3490 = vmatpush1.bf16.msra.mxu0 %v3468
        %3491 = vmatprep.subr.bf16.mxu0 0
        %3492 = vmatpush1.bf16.msra.mxu0 %v3469
        %3493 = vmatprep.subr.bf16.mxu0 0
        %3494 = vmatpush1.bf16.msra.mxu0 %v3470
        %3495 = vmatprep.subr.bf16.mxu0 0
        %3496 = vmatpush1.bf16.msra.mxu0 0
        %3497 = vmatprep.subr.bf16.mxu0 0
        %3498 = vmatpush1.bf16.msra.mxu0 0
        %3499 = vmatprep.subr.bf16.mxu0 0
        %3500 = vmatpush1.bf16.msra.mxu0 0
        %3501 = vmatprep.subr.bf16.mxu0 0
        %3502 = vmatpush1.bf16.msra.mxu0 0
        %3503 = vmatprep.subr.bf16.mxu0 0
        %3504 = vmatpush1.bf16.msra.mxu0 0
        %3505 = vmatprep.subr.bf16.mxu0 0
        %3506 = vmatpush1.bf16.msra.mxu0 0
        %3507 = vmatprep.subr.bf16.mxu0 0
        %3508 = vmatpush1.bf16.msra.mxu0 0
        %3509 = vmatprep.subr.bf16.mxu0 0
        %3510 = vmatpush1.bf16.msra.mxu0 0
        %3511 = vmatprep.mubr.bf16.mxu0 0
        %3512 = vmatmul.mubr.bf16.gmra.mrb[0].mxu0 %v3398
        %v3513 = vpop.f32.mrb[0].mxu0
        %v3514 = vadd.f32 0.0, %v3513
        %v3515 = vpop.f32.mrb[0].mxu0
        %v3516 = vpop.f32.mrb[0].mxu0
        %v3517 = vadd.f32 0.0, %v3516
        %v3518 = vpop.f32.mrb[0].mxu0
        %3519 = vmatprep.mubr.bf16.mxu0 0
        %3520 = vmatmul.mubr.bf16.gmra.mrb[0].mxu0 %v3399
        %v3521 = vpop.f32.mrb[0].mxu0
        %v3522 = vadd.f32 0.0, %v3521
        %v3523 = vpop.f32.mrb[0].mxu0
        %v3524 = vpop.f32.mrb[0].mxu0
        %v3525 = vadd.f32 0.0, %v3524
        %v3526 = vpop.f32.mrb[0].mxu0
        %3527 = vmatprep.mubr.bf16.mxu0 0
        %3528 = vmatmul.mubr.bf16.gmra.mrb[0].mxu0 %v3400
        %v3529 = vpop.f32.mrb[0].mxu0
        %v3530 = vadd.f32 0.0, %v3529
        %v3531 = vpop.f32.mrb[0].mxu0
        %v3532 = vpop.f32.mrb[0].mxu0
        %v3533 = vadd.f32 0.0, %v3532
        %v3534 = vpop.f32.mrb[0].mxu0
        %3535 = vmatprep.mubr.bf16.mxu0 0
        %3536 = vmatmul.mubr.bf16.gmra.mrb[0].mxu0 %v3401
        %v3537 = vpop.f32.mrb[0].mxu0
        %v3538 = vadd.f32 0.0, %v3537
        %v3539 = vpop.f32.mrb[0].mxu0
        %v3540 = vpop.f32.mrb[0].mxu0
        %v3541 = vadd.f32 0.0, %v3540
        %v3542 = vpop.f32.mrb[0].mxu0
        %3543 = vmatprep.mubr.bf16.mxu0 0
        %3544 = vmatmul.mubr.bf16.gmra.mrb[0].mxu0 %v3402
        %v3545 = vpop.f32.mrb[0].mxu0
        %v3546 = vadd.f32 0.0, %v3545
        %v3547 = vpop.f32.mrb[0].mxu0
        %v3548 = vpop.f32.mrb[0].mxu0
        %v3549 = vadd.f32 0.0, %v3548
        %v3550 = vpop.f32.mrb[0].mxu0
        %3551 = vmatprep.mubr.bf16.mxu0 0
        %3552 = vmatmul.mubr.bf16.gmra.mrb[0].mxu0 %v3403
        %v3553 = vpop.f32.mrb[0].mxu0
        %v3554 = vadd.f32 0.0, %v3553
        %v3555 = vpop.f32.mrb[0].mxu0
        %v3556 = vpop.f32.mrb[0].mxu0
        %v3557 = vadd.f32 0.0, %v3556
        %v3558 = vpop.f32.mrb[0].mxu0
        %3559 = vmatprep.mubr.bf16.mxu0 0
        %3560 = vmatmul.mubr.bf16.gmra.mrb[0].mxu0 %v3404
        %v3561 = vpop.f32.mrb[0].mxu0
        %v3562 = vadd.f32 0.0, %v3561
        %v3563 = vpop.f32.mrb[0].mxu0
        %v3564 = vpop.f32.mrb[0].mxu0
        %v3565 = vadd.f32 0.0, %v3564
        %v3566 = vpop.f32.mrb[0].mxu0
        %3567 = vmatprep.mubr.bf16.mxu0 0
        %3568 = vmatmul.mubr.bf16.gmra.mrb[0].mxu0 %v3405
        %v3569 = vpop.f32.mrb[0].mxu0
        %v3570 = vadd.f32 0.0, %v3569
        %v3571 = vpop.f32.mrb[0].mxu0
        %v3572 = vpop.f32.mrb[0].mxu0
        %v3573 = vadd.f32 0.0, %v3572
        %v3574 = vpop.f32.mrb[0].mxu0
        %3575 = vmatprep.mubr.bf16.mxu0 0
        %3576 = vmatmul.mubr.bf16.gmra.mrb[0].mxu0 %v3406
        %v3577 = vpop.f32.mrb[0].mxu0
        %v3578 = vadd.f32 0.0, %v3577
        %v3579 = vpop.f32.mrb[0].mxu0
        %v3580 = vpop.f32.mrb[0].mxu0
        %v3581 = vadd.f32 0.0, %v3580
        %v3582 = vpop.f32.mrb[0].mxu0
        %3583 = vmatprep.mubr.bf16.mxu0 0
        %3584 = vmatmul.mubr.bf16.gmra.mrb[0].mxu0 %v3407
        %v3585 = vpop.f32.mrb[0].mxu0
        %v3586 = vadd.f32 0.0, %v3585
        %v3587 = vpop.f32.mrb[0].mxu0
        %v3588 = vpop.f32.mrb[0].mxu0
        %v3589 = vadd.f32 0.0, %v3588
        %v3590 = vpop.f32.mrb[0].mxu0
        %3591 = vmatprep.mubr.bf16.mxu0 0
        %3592 = vmatmul.mubr.bf16.gmra.mrb[0].mxu0 %v3408
        %v3593 = vpop.f32.mrb[0].mxu0
        %v3594 = vadd.f32 0.0, %v3593
        %v3595 = vpop.f32.mrb[0].mxu0
        %v3596 = vpop.f32.mrb[0].mxu0
        %v3597 = vadd.f32 0.0, %v3596
        %v3598 = vpop.f32.mrb[0].mxu0
        %3599 = vmatprep.mubr.bf16.mxu0 0
        %3600 = vmatmul.mubr.bf16.gmra.mrb[0].mxu0 %v3409
        %v3601 = vpop.f32.mrb[0].mxu0
        %v3602 = vadd.f32 0.0, %v3601
        %v3603 = vpop.f32.mrb[0].mxu0
        %v3604 = vpop.f32.mrb[0].mxu0
        %v3605 = vadd.f32 0.0, %v3604
        %v3606 = vpop.f32.mrb[0].mxu0
        %3607 = vmatprep.mubr.bf16.mxu0 0
        %3608 = vmatmul.mubr.bf16.gmra.mrb[0].mxu0 %v3410
        %v3609 = vpop.f32.mrb[0].mxu0
        %v3610 = vadd.f32 0.0, %v3609
        %v3611 = vpop.f32.mrb[0].mxu0
        %v3612 = vpop.f32.mrb[0].mxu0
        %v3613 = vadd.f32 0.0, %v3612
        %v3614 = vpop.f32.mrb[0].mxu0
        %3615 = vmatprep.mubr.bf16.mxu0 0
        %3616 = vmatmul.mubr.bf16.gmra.mrb[0].mxu0 %v3411
        %v3617 = vpop.f32.mrb[0].mxu0
        %v3618 = vadd.f32 0.0, %v3617
        %v3619 = vpop.f32.mrb[0].mxu0
        %v3620 = vpop.f32.mrb[0].mxu0
        %v3621 = vadd.f32 0.0, %v3620
        %v3622 = vpop.f32.mrb[0].mxu0
        %3623 = vmatprep.mubr.bf16.mxu0 0
        %3624 = vmatmul.mubr.bf16.gmra.mrb[0].mxu0 %v3412
        %v3625 = vpop.f32.mrb[0].mxu0
        %v3626 = vadd.f32 0.0, %v3625
        %v3627 = vpop.f32.mrb[0].mxu0
        %v3628 = vpop.f32.mrb[0].mxu0
        %v3629 = vadd.f32 0.0, %v3628
        %v3630 = vpop.f32.mrb[0].mxu0
        %3631 = vmatprep.mubr.bf16.mxu0 0
        %3632 = vmatmul.mubr.bf16.gmra.mrb[0].mxu0 %v3413
        %v3633 = vpop.f32.mrb[0].mxu0
        %v3634 = vadd.f32 0.0, %v3633
        %v3635 = vpop.f32.mrb[0].mxu0
        %v3636 = vpop.f32.mrb[0].mxu0
        %v3637 = vadd.f32 0.0, %v3636
        %v3638 = vpop.f32.mrb[0].mxu0
        %3639 = vdwg.mxu0
        %v3640 = vadd.f32 %v3334, %v3514
        %v3641 = vadd.f32 %v3335, %v3517
        %v3642 = vadd.f32 %v3336, %v3522
        %v3643 = vadd.f32 %v3337, %v3525
        %v3644 = vadd.f32 %v3338, %v3530
        %v3645 = vadd.f32 %v3339, %v3533
        %v3646 = vadd.f32 %v3340, %v3538
        %v3647 = vadd.f32 %v3341, %v3541
        %v3648 = vadd.f32 %v3342, %v3546
        %v3649 = vadd.f32 %v3343, %v3549
        %v3650 = vadd.f32 %v3344, %v3554
        %v3651 = vadd.f32 %v3345, %v3557
        %v3652 = vadd.f32 %v3346, %v3562
        %v3653 = vadd.f32 %v3347, %v3565
        %v3654 = vadd.f32 %v3348, %v3570
        %v3655 = vadd.f32 %v3349, %v3573
        %v3656 = vadd.f32 %v3350, %v3578
        %v3657 = vadd.f32 %v3351, %v3581
        %v3658 = vadd.f32 %v3352, %v3586
        %v3659 = vadd.f32 %v3353, %v3589
        %v3660 = vadd.f32 %v3354, %v3594
        %v3661 = vadd.f32 %v3355, %v3597
        %v3662 = vadd.f32 %v3356, %v3602
        %v3663 = vadd.f32 %v3357, %v3605
        %v3664 = vadd.f32 %v3358, %v3610
        %v3665 = vadd.f32 %v3359, %v3613
        %v3666 = vadd.f32 %v3360, %v3618
        %v3667 = vadd.f32 %v3361, %v3621
        %v3668 = vadd.f32 %v3362, %v3626
        %v3669 = vadd.f32 %v3363, %v3629
        %v3670 = vadd.f32 %v3364, %v3634
        %v3671 = vadd.f32 %v3365, %v3637
        %v3672 = vld [vmem:[%s3059 + $0x2] sm:$0xff]
        %v3673 = vld [vmem:[%s3059 + $0xa] sm:$0xff]
        %v3674 = vld [vmem:[%s3059 + $0x1a] sm:$0xff]
        %v3675 = vld [vmem:[%s3059 + $0x22] sm:$0xff]
        %v3676 = vld [vmem:[%s3059 + $0x32] sm:$0xff]
        %v3677 = vld [vmem:[%s3059 + $0x3a] sm:$0xff]
        %v3678 = vld [vmem:[%s3059 + $0x4a] sm:$0xff]
        %v3679 = vld [vmem:[%s3059 + $0x52] sm:$0xff]
        %v3680 = vld [vmem:[%s3059 + $0x62] sm:$0xff]
        %v3681 = vld [vmem:[%s3059 + $0x6a] sm:$0xff]
        %v3682 = vld [vmem:[%s3059 + $0x7a] sm:$0xff]
        %v3683 = vld [vmem:[%s3059 + $0x82] sm:$0xff]
        %v3684 = vld [vmem:[%s3059 + $0x92] sm:$0xff]
        %v3685 = vld [vmem:[%s3059 + $0x9a] sm:$0xff]
        %v3686 = vld [vmem:[%s3059 + $0xaa] sm:$0xff]
        %v3687 = vld [vmem:[%s3059 + $0xb2] sm:$0xff]
        %v3688 = vld [vmem:[%s3059 + $0xc2] sm:$0xff]
        %v3689 = vld [vmem:[%s3059 + $0xca] sm:$0xff]
        %v3690 = vld [vmem:[%s3059 + $0xda] sm:$0xff]
        %v3691 = vld [vmem:[%s3059 + $0xe2] sm:$0xff]
        %v3692 = vld [vmem:[%s3059 + $0xf2] sm:$0xff]
        %v3693 = vld [vmem:[%s3059 + $0xfa] sm:$0xff]
        %v3694 = vld [vmem:[%s3059 + $0x10a] sm:$0xff]
        %v3695 = vld [vmem:[%s3059 + $0x112] sm:$0xff]
        %v3696 = vld [vmem:[%s3059 + $0x122] sm:$0xff]
        %v3697 = vld [vmem:[%s3059 + $0x12a] sm:$0xff]
        %v3698 = vld [vmem:[%s3059 + $0x13a] sm:$0xff]
        %v3699 = vld [vmem:[%s3059 + $0x142] sm:$0xff]
        %v3700 = vld [vmem:[%s3059 + $0x152] sm:$0xff]
        %v3701 = vld [vmem:[%s3059 + $0x15a] sm:$0xff]
        %v3702 = vld [vmem:[%s3059 + $0x16a] sm:$0xff]
        %v3703 = vld [vmem:[%s3059 + $0x172] sm:$0xff]
        %v3704 = vpack.c.bf16 %v3673, %v3672
        %v3705 = vpack.c.bf16 %v3675, %v3674
        %v3706 = vpack.c.bf16 %v3677, %v3676
        %v3707 = vpack.c.bf16 %v3679, %v3678
        %v3708 = vpack.c.bf16 %v3681, %v3680
        %v3709 = vpack.c.bf16 %v3683, %v3682
        %v3710 = vpack.c.bf16 %v3685, %v3684
        %v3711 = vpack.c.bf16 %v3687, %v3686
        %v3712 = vpack.c.bf16 %v3689, %v3688
        %v3713 = vpack.c.bf16 %v3691, %v3690
        %v3714 = vpack.c.bf16 %v3693, %v3692
        %v3715 = vpack.c.bf16 %v3695, %v3694
        %v3716 = vpack.c.bf16 %v3697, %v3696
        %v3717 = vpack.c.bf16 %v3699, %v3698
        %v3718 = vpack.c.bf16 %v3701, %v3700
        %v3719 = vpack.c.bf16 %v3703, %v3702
        %s3720 = scalar_lea.vmem [#allocation11], 512
        %v3721 = vld [vmem:[%s3720] sm:$0xf]
        %v3722 = vld [vmem:[%s3720 + $0x4] sm:$0xf]
        %v3723 = vld [vmem:[%s3720 + $0x8] sm:$0xf]
        %v3724 = vld [vmem:[%s3720 + $0xc] sm:$0xf]
        %v3725 = vld [vmem:[%s3720 + $0x10] sm:$0xf]
        %v3726 = vld [vmem:[%s3720 + $0x14] sm:$0xf]
        %v3727 = vld [vmem:[%s3720 + $0x18] sm:$0xf]
        %v3728 = vld [vmem:[%s3720 + $0x1c] sm:$0xf]
        %v3729 = vld [vmem:[%s3720 + $0x20] sm:$0xf]
        %v3730 = vld [vmem:[%s3720 + $0x24] sm:$0xf]
        %v3731 = vld [vmem:[%s3720 + $0x28] sm:$0xf]
        %v3732 = vld [vmem:[%s3720 + $0x2c] sm:$0xf]
        %v3733 = vld [vmem:[%s3720 + $0x30] sm:$0xf]
        %v3734 = vld [vmem:[%s3720 + $0x34] sm:$0xf]
        %v3735 = vld [vmem:[%s3720 + $0x38] sm:$0xf]
        %v3736 = vld [vmem:[%s3720 + $0x3c] sm:$0xf]
        %v3753 = vunpack.c.l.b16 %v3721
        %v3754 = vunpack.c.l.b16 %v3722
        %v3755 = vunpack.c.l.b16 %v3723
        %v3756 = vunpack.c.l.b16 %v3724
        %v3757 = vunpack.c.l.b16 %v3725
        %v3758 = vunpack.c.l.b16 %v3726
        %v3759 = vunpack.c.l.b16 %v3727
        %v3760 = vunpack.c.l.b16 %v3728
        %v3761 = vunpack.c.l.b16 %v3729
        %v3762 = vunpack.c.l.b16 %v3730
        %v3763 = vunpack.c.l.b16 %v3731
        %v3764 = vunpack.c.l.b16 %v3732
        %v3765 = vunpack.c.l.b16 %v3733
        %v3766 = vunpack.c.l.b16 %v3734
        %v3767 = vunpack.c.l.b16 %v3735
        %v3768 = vunpack.c.l.b16 %v3736
        %v3769 = vpack.c.b16 %v3754, %v3753
        %v3770 = vpack.c.b16 %v3756, %v3755
        %v3771 = vpack.c.b16 %v3758, %v3757
        %v3772 = vpack.c.b16 %v3760, %v3759
        %v3773 = vpack.c.b16 %v3762, %v3761
        %v3774 = vpack.c.b16 %v3764, %v3763
        %v3775 = vpack.c.b16 %v3766, %v3765
        %v3776 = vpack.c.b16 %v3768, %v3767
        %3785 = vmatprep.subr.bf16.mxu0 0
        %3786 = vmatpush1.bf16.msra.mxu0 %v3769
        %3787 = vmatprep.subr.bf16.mxu0 0
        %3788 = vmatpush1.bf16.msra.mxu0 %v3770
        %3789 = vmatprep.subr.bf16.mxu0 0
        %3790 = vmatpush1.bf16.msra.mxu0 %v3771
        %3791 = vmatprep.subr.bf16.mxu0 0
        %3792 = vmatpush1.bf16.msra.mxu0 %v3772
        %3793 = vmatprep.subr.bf16.mxu0 0
        %3794 = vmatpush1.bf16.msra.mxu0 %v3773
        %3795 = vmatprep.subr.bf16.mxu0 0
        %3796 = vmatpush1.bf16.msra.mxu0 %v3774
        %3797 = vmatprep.subr.bf16.mxu0 0
        %3798 = vmatpush1.bf16.msra.mxu0 %v3775
        %3799 = vmatprep.subr.bf16.mxu0 0
        %3800 = vmatpush1.bf16.msra.mxu0 %v3776
        %3801 = vmatprep.subr.bf16.mxu0 0
        %3802 = vmatpush1.bf16.msra.mxu0 0
        %3803 = vmatprep.subr.bf16.mxu0 0
        %3804 = vmatpush1.bf16.msra.mxu0 0
        %3805 = vmatprep.subr.bf16.mxu0 0
        %3806 = vmatpush1.bf16.msra.mxu0 0
        %3807 = vmatprep.subr.bf16.mxu0 0
        %3808 = vmatpush1.bf16.msra.mxu0 0
        %3809 = vmatprep.subr.bf16.mxu0 0
        %3810 = vmatpush1.bf16.msra.mxu0 0
        %3811 = vmatprep.subr.bf16.mxu0 0
        %3812 = vmatpush1.bf16.msra.mxu0 0
        %3813 = vmatprep.subr.bf16.mxu0 0
        %3814 = vmatpush1.bf16.msra.mxu0 0
        %3815 = vmatprep.subr.bf16.mxu0 0
        %3816 = vmatpush1.bf16.msra.mxu0 0
        %3817 = vmatprep.mubr.bf16.mxu0 0
        %3818 = vmatmul.mubr.bf16.gmra.mrb[0].mxu0 %v3704
        %v3819 = vpop.f32.mrb[0].mxu0
        %v3820 = vadd.f32 0.0, %v3819
        %v3821 = vpop.f32.mrb[0].mxu0
        %v3822 = vpop.f32.mrb[0].mxu0
        %v3823 = vadd.f32 0.0, %v3822
        %v3824 = vpop.f32.mrb[0].mxu0
        %3825 = vmatprep.mubr.bf16.mxu0 0
        %3826 = vmatmul.mubr.bf16.gmra.mrb[0].mxu0 %v3705
        %v3827 = vpop.f32.mrb[0].mxu0
        %v3828 = vadd.f32 0.0, %v3827
        %v3829 = vpop.f32.mrb[0].mxu0
        %v3830 = vpop.f32.mrb[0].mxu0
        %v3831 = vadd.f32 0.0, %v3830
        %v3832 = vpop.f32.mrb[0].mxu0
        %3833 = vmatprep.mubr.bf16.mxu0 0
        %3834 = vmatmul.mubr.bf16.gmra.mrb[0].mxu0 %v3706
        %v3835 = vpop.f32.mrb[0].mxu0
        %v3836 = vadd.f32 0.0, %v3835
        %v3837 = vpop.f32.mrb[0].mxu0
        %v3838 = vpop.f32.mrb[0].mxu0
        %v3839 = vadd.f32 0.0, %v3838
        %v3840 = vpop.f32.mrb[0].mxu0
        %3841 = vmatprep.mubr.bf16.mxu0 0
        %3842 = vmatmul.mubr.bf16.gmra.mrb[0].mxu0 %v3707
        %v3843 = vpop.f32.mrb[0].mxu0
        %v3844 = vadd.f32 0.0, %v3843
        %v3845 = vpop.f32.mrb[0].mxu0
        %v3846 = vpop.f32.mrb[0].mxu0
        %v3847 = vadd.f32 0.0, %v3846
        %v3848 = vpop.f32.mrb[0].mxu0
        %3849 = vmatprep.mubr.bf16.mxu0 0
        %3850 = vmatmul.mubr.bf16.gmra.mrb[0].mxu0 %v3708
        %v3851 = vpop.f32.mrb[0].mxu0
        %v3852 = vadd.f32 0.0, %v3851
        %v3853 = vpop.f32.mrb[0].mxu0
        %v3854 = vpop.f32.mrb[0].mxu0
        %v3855 = vadd.f32 0.0, %v3854
        %v3856 = vpop.f32.mrb[0].mxu0
        %3857 = vmatprep.mubr.bf16.mxu0 0
        %3858 = vmatmul.mubr.bf16.gmra.mrb[0].mxu0 %v3709
        %v3859 = vpop.f32.mrb[0].mxu0
        %v3860 = vadd.f32 0.0, %v3859
        %v3861 = vpop.f32.mrb[0].mxu0
        %v3862 = vpop.f32.mrb[0].mxu0
        %v3863 = vadd.f32 0.0, %v3862
        %v3864 = vpop.f32.mrb[0].mxu0
        %3865 = vmatprep.mubr.bf16.mxu0 0
        %3866 = vmatmul.mubr.bf16.gmra.mrb[0].mxu0 %v3710
        %v3867 = vpop.f32.mrb[0].mxu0
        %v3868 = vadd.f32 0.0, %v3867
        %v3869 = vpop.f32.mrb[0].mxu0
        %v3870 = vpop.f32.mrb[0].mxu0
        %v3871 = vadd.f32 0.0, %v3870
        %v3872 = vpop.f32.mrb[0].mxu0
        %3873 = vmatprep.mubr.bf16.mxu0 0
        %3874 = vmatmul.mubr.bf16.gmra.mrb[0].mxu0 %v3711
        %v3875 = vpop.f32.mrb[0].mxu0
        %v3876 = vadd.f32 0.0, %v3875
        %v3877 = vpop.f32.mrb[0].mxu0
        %v3878 = vpop.f32.mrb[0].mxu0
        %v3879 = vadd.f32 0.0, %v3878
        %v3880 = vpop.f32.mrb[0].mxu0
        %3881 = vmatprep.mubr.bf16.mxu0 0
        %3882 = vmatmul.mubr.bf16.gmra.mrb[0].mxu0 %v3712
        %v3883 = vpop.f32.mrb[0].mxu0
        %v3884 = vadd.f32 0.0, %v3883
        %v3885 = vpop.f32.mrb[0].mxu0
        %v3886 = vpop.f32.mrb[0].mxu0
        %v3887 = vadd.f32 0.0, %v3886
        %v3888 = vpop.f32.mrb[0].mxu0
        %3889 = vmatprep.mubr.bf16.mxu0 0
        %3890 = vmatmul.mubr.bf16.gmra.mrb[0].mxu0 %v3713
        %v3891 = vpop.f32.mrb[0].mxu0
        %v3892 = vadd.f32 0.0, %v3891
        %v3893 = vpop.f32.mrb[0].mxu0
        %v3894 = vpop.f32.mrb[0].mxu0
        %v3895 = vadd.f32 0.0, %v3894
        %v3896 = vpop.f32.mrb[0].mxu0
        %3897 = vmatprep.mubr.bf16.mxu0 0
        %3898 = vmatmul.mubr.bf16.gmra.mrb[0].mxu0 %v3714
        %v3899 = vpop.f32.mrb[0].mxu0
        %v3900 = vadd.f32 0.0, %v3899
        %v3901 = vpop.f32.mrb[0].mxu0
        %v3902 = vpop.f32.mrb[0].mxu0
        %v3903 = vadd.f32 0.0, %v3902
        %v3904 = vpop.f32.mrb[0].mxu0
        %3905 = vmatprep.mubr.bf16.mxu0 0
        %3906 = vmatmul.mubr.bf16.gmra.mrb[0].mxu0 %v3715
        %v3907 = vpop.f32.mrb[0].mxu0
        %v3908 = vadd.f32 0.0, %v3907
        %v3909 = vpop.f32.mrb[0].mxu0
        %v3910 = vpop.f32.mrb[0].mxu0
        %v3911 = vadd.f32 0.0, %v3910
        %v3912 = vpop.f32.mrb[0].mxu0
        %3913 = vmatprep.mubr.bf16.mxu0 0
        %3914 = vmatmul.mubr.bf16.gmra.mrb[0].mxu0 %v3716
        %v3915 = vpop.f32.mrb[0].mxu0
        %v3916 = vadd.f32 0.0, %v3915
        %v3917 = vpop.f32.mrb[0].mxu0
        %v3918 = vpop.f32.mrb[0].mxu0
        %v3919 = vadd.f32 0.0, %v3918
        %v3920 = vpop.f32.mrb[0].mxu0
        %3921 = vmatprep.mubr.bf16.mxu0 0
        %3922 = vmatmul.mubr.bf16.gmra.mrb[0].mxu0 %v3717
        %v3923 = vpop.f32.mrb[0].mxu0
        %v3924 = vadd.f32 0.0, %v3923
        %v3925 = vpop.f32.mrb[0].mxu0
        %v3926 = vpop.f32.mrb[0].mxu0
        %v3927 = vadd.f32 0.0, %v3926
        %v3928 = vpop.f32.mrb[0].mxu0
        %3929 = vmatprep.mubr.bf16.mxu0 0
        %3930 = vmatmul.mubr.bf16.gmra.mrb[0].mxu0 %v3718
        %v3931 = vpop.f32.mrb[0].mxu0
        %v3932 = vadd.f32 0.0, %v3931
        %v3933 = vpop.f32.mrb[0].mxu0
        %v3934 = vpop.f32.mrb[0].mxu0
        %v3935 = vadd.f32 0.0, %v3934
        %v3936 = vpop.f32.mrb[0].mxu0
        %3937 = vmatprep.mubr.bf16.mxu0 0
        %3938 = vmatmul.mubr.bf16.gmra.mrb[0].mxu0 %v3719
        %v3939 = vpop.f32.mrb[0].mxu0
        %v3940 = vadd.f32 0.0, %v3939
        %v3941 = vpop.f32.mrb[0].mxu0
        %v3942 = vpop.f32.mrb[0].mxu0
        %v3943 = vadd.f32 0.0, %v3942
        %v3944 = vpop.f32.mrb[0].mxu0
        %3945 = vdwg.mxu0
        %v3946 = vadd.f32 %v3640, %v3820
        %v3947 = vadd.f32 %v3641, %v3823
        %v3948 = vadd.f32 %v3642, %v3828
        %v3949 = vadd.f32 %v3643, %v3831
        %v3950 = vadd.f32 %v3644, %v3836
        %v3951 = vadd.f32 %v3645, %v3839
        %v3952 = vadd.f32 %v3646, %v3844
        %v3953 = vadd.f32 %v3647, %v3847
        %v3954 = vadd.f32 %v3648, %v3852
        %v3955 = vadd.f32 %v3649, %v3855
        %v3956 = vadd.f32 %v3650, %v3860
        %v3957 = vadd.f32 %v3651, %v3863
        %v3958 = vadd.f32 %v3652, %v3868
        %v3959 = vadd.f32 %v3653, %v3871
        %v3960 = vadd.f32 %v3654, %v3876
        %v3961 = vadd.f32 %v3655, %v3879
        %v3962 = vadd.f32 %v3656, %v3884
        %v3963 = vadd.f32 %v3657, %v3887
        %v3964 = vadd.f32 %v3658, %v3892
        %v3965 = vadd.f32 %v3659, %v3895
        %v3966 = vadd.f32 %v3660, %v3900
        %v3967 = vadd.f32 %v3661, %v3903
        %v3968 = vadd.f32 %v3662, %v3908
        %v3969 = vadd.f32 %v3663, %v3911
        %v3970 = vadd.f32 %v3664, %v3916
        %v3971 = vadd.f32 %v3665, %v3919
        %v3972 = vadd.f32 %v3666, %v3924
        %v3973 = vadd.f32 %v3667, %v3927
        %v3974 = vadd.f32 %v3668, %v3932
        %v3975 = vadd.f32 %v3669, %v3935
        %v3976 = vadd.f32 %v3670, %v3940
        %v3977 = vadd.f32 %v3671, %v3943
        %v3978 = vld [vmem:[%s7] sm:$0x1]
        %v3980 = vlaneseq
        %v3981 = vshrl.u32 %v3980, 7
        %v3982 = vsub.s32 0, %v3981
        %v3983 = vrot.slane %v3978, %v3982
        %v3985 = vmul.f32 %v3946, %v3983
        %v3986 = vmul.f32 %v3947, %v3983
        %v3987 = vmul.f32 %v3948, %v3983
        %v3988 = vmul.f32 %v3949, %v3983
        %v3989 = vmul.f32 %v3950, %v3983
        %v3990 = vmul.f32 %v3951, %v3983
        %v3991 = vmul.f32 %v3952, %v3983
        %v3992 = vmul.f32 %v3953, %v3983
        %v3993 = vmul.f32 %v3954, %v3983
        %v3994 = vmul.f32 %v3955, %v3983
        %v3995 = vmul.f32 %v3956, %v3983
        %v3996 = vmul.f32 %v3957, %v3983
        %v3997 = vmul.f32 %v3958, %v3983
        %v3998 = vmul.f32 %v3959, %v3983
        %v3999 = vmul.f32 %v3960, %v3983
        %v4000 = vmul.f32 %v3961, %v3983
        %v4001 = vmul.f32 %v3962, %v3983
        %v4002 = vmul.f32 %v3963, %v3983
        %v4003 = vmul.f32 %v3964, %v3983
        %v4004 = vmul.f32 %v3965, %v3983
        %v4005 = vmul.f32 %v3966, %v3983
        %v4006 = vmul.f32 %v3967, %v3983
        %v4007 = vmul.f32 %v3968, %v3983
        %v4008 = vmul.f32 %v3969, %v3983
        %v4009 = vmul.f32 %v3970, %v3983
        %v4010 = vmul.f32 %v3971, %v3983
        %v4011 = vmul.f32 %v3972, %v3983
        %v4012 = vmul.f32 %v3973, %v3983
        %v4013 = vmul.f32 %v3974, %v3983
        %v4014 = vmul.f32 %v3975, %v3983
        %v4015 = vmul.f32 %v3976, %v3983
        %v4016 = vmul.f32 %v3977, %v3983
        %v4017 = vld [vmem:[%s8] sm:$0x1]
        %v4019 = vlaneseq
        %v4020 = vshrl.u32 %v4019, 7
        %v4021 = vsub.s32 0, %v4020
        %v4022 = vrot.slane %v4017, %v4021
        %v4024 = vadd.f32 %v3985, %v4022
        %v4025 = vadd.f32 %v3986, %v4022
        %v4026 = vadd.f32 %v3987, %v4022
        %v4027 = vadd.f32 %v3988, %v4022
        %v4028 = vadd.f32 %v3989, %v4022
        %v4029 = vadd.f32 %v3990, %v4022
        %v4030 = vadd.f32 %v3991, %v4022
        %v4031 = vadd.f32 %v3992, %v4022
        %v4032 = vadd.f32 %v3993, %v4022
        %v4033 = vadd.f32 %v3994, %v4022
        %v4034 = vadd.f32 %v3995, %v4022
        %v4035 = vadd.f32 %v3996, %v4022
        %v4036 = vadd.f32 %v3997, %v4022
        %v4037 = vadd.f32 %v3998, %v4022
        %v4038 = vadd.f32 %v3999, %v4022
        %v4039 = vadd.f32 %v4000, %v4022
        %v4040 = vadd.f32 %v4001, %v4022
        %v4041 = vadd.f32 %v4002, %v4022
        %v4042 = vadd.f32 %v4003, %v4022
        %v4043 = vadd.f32 %v4004, %v4022
        %v4044 = vadd.f32 %v4005, %v4022
        %v4045 = vadd.f32 %v4006, %v4022
        %v4046 = vadd.f32 %v4007, %v4022
        %v4047 = vadd.f32 %v4008, %v4022
        %v4048 = vadd.f32 %v4009, %v4022
        %v4049 = vadd.f32 %v4010, %v4022
        %v4050 = vadd.f32 %v4011, %v4022
        %v4051 = vadd.f32 %v4012, %v4022
        %v4052 = vadd.f32 %v4013, %v4022
        %v4053 = vadd.f32 %v4014, %v4022
        %v4054 = vadd.f32 %v4015, %v4022
        %v4055 = vadd.f32 %v4016, %v4022
        %v4056 = vmax.f32 %v4024, 0.0
        %v4057 = vmax.f32 %v4025, 0.0
        %v4058 = vmax.f32 %v4026, 0.0
        %v4059 = vmax.f32 %v4027, 0.0
        %v4060 = vmax.f32 %v4028, 0.0
        %v4061 = vmax.f32 %v4029, 0.0
        %v4062 = vmax.f32 %v4030, 0.0
        %v4063 = vmax.f32 %v4031, 0.0
        %v4064 = vmax.f32 %v4032, 0.0
        %v4065 = vmax.f32 %v4033, 0.0
        %v4066 = vmax.f32 %v4034, 0.0
        %v4067 = vmax.f32 %v4035, 0.0
        %v4068 = vmax.f32 %v4036, 0.0
        %v4069 = vmax.f32 %v4037, 0.0
        %v4070 = vmax.f32 %v4038, 0.0
        %v4071 = vmax.f32 %v4039, 0.0
        %v4072 = vmax.f32 %v4040, 0.0
        %v4073 = vmax.f32 %v4041, 0.0
        %v4074 = vmax.f32 %v4042, 0.0
        %v4075 = vmax.f32 %v4043, 0.0
        %v4076 = vmax.f32 %v4044, 0.0
        %v4077 = vmax.f32 %v4045, 0.0
        %v4078 = vmax.f32 %v4046, 0.0
        %v4079 = vmax.f32 %v4047, 0.0
        %v4080 = vmax.f32 %v4048, 0.0
        %v4081 = vmax.f32 %v4049, 0.0
        %v4082 = vmax.f32 %v4050, 0.0
        %v4083 = vmax.f32 %v4051, 0.0
        %v4084 = vmax.f32 %v4052, 0.0
        %v4085 = vmax.f32 %v4053, 0.0
        %v4086 = vmax.f32 %v4054, 0.0
        %v4087 = vmax.f32 %v4055, 0.0
        %v4088 = vpack.c.bf16 %v4057, %v4056
        %v4089 = vpack.c.bf16 %v4059, %v4058
        %v4090 = vpack.c.bf16 %v4061, %v4060
        %v4091 = vpack.c.bf16 %v4063, %v4062
        %v4092 = vpack.c.bf16 %v4065, %v4064
        %v4093 = vpack.c.bf16 %v4067, %v4066
        %v4094 = vpack.c.bf16 %v4069, %v4068
        %v4095 = vpack.c.bf16 %v4071, %v4070
        %v4096 = vpack.c.bf16 %v4073, %v4072
        %v4097 = vpack.c.bf16 %v4075, %v4074
        %v4098 = vpack.c.bf16 %v4077, %v4076
        %v4099 = vpack.c.bf16 %v4079, %v4078
        %v4100 = vpack.c.bf16 %v4081, %v4080
        %v4101 = vpack.c.bf16 %v4083, %v4082
        %v4102 = vpack.c.bf16 %v4085, %v4084
        %v4103 = vpack.c.bf16 %v4087, %v4086
        %v4104 = vld [vmem:[#allocation12] sm:$0xf]
        %v4105 = vld [vmem:[#allocation12 + $0x4] sm:$0xf]
        %v4106 = vld [vmem:[#allocation12 + $0x8] sm:$0xf]
        %v4107 = vld [vmem:[#allocation12 + $0xc] sm:$0xf]
        %v4108 = vld [vmem:[#allocation12 + $0x10] sm:$0xf]
        %v4109 = vld [vmem:[#allocation12 + $0x14] sm:$0xf]
        %v4110 = vld [vmem:[#allocation12 + $0x18] sm:$0xf]
        %v4111 = vld [vmem:[#allocation12 + $0x1c] sm:$0xf]
        %v4112 = vld [vmem:[#allocation12 + $0x20] sm:$0xf]
        %v4113 = vld [vmem:[#allocation12 + $0x24] sm:$0xf]
        %v4114 = vld [vmem:[#allocation12 + $0x28] sm:$0xf]
        %v4115 = vld [vmem:[#allocation12 + $0x2c] sm:$0xf]
        %v4116 = vld [vmem:[#allocation12 + $0x30] sm:$0xf]
        %v4117 = vld [vmem:[#allocation12 + $0x34] sm:$0xf]
        %v4118 = vld [vmem:[#allocation12 + $0x38] sm:$0xf]
        %v4119 = vld [vmem:[#allocation12 + $0x3c] sm:$0xf]
        %v4136 = vunpack.c.l.b16 %v4104
        %v4137 = vunpack.c.l.b16 %v4105
        %v4138 = vunpack.c.l.b16 %v4106
        %v4139 = vunpack.c.l.b16 %v4107
        %v4140 = vunpack.c.l.b16 %v4108
        %v4141 = vunpack.c.l.b16 %v4109
        %v4142 = vunpack.c.l.b16 %v4110
        %v4143 = vunpack.c.l.b16 %v4111
        %v4144 = vunpack.c.l.b16 %v4112
        %v4145 = vunpack.c.l.b16 %v4113
        %v4146 = vunpack.c.l.b16 %v4114
        %v4147 = vunpack.c.l.b16 %v4115
        %v4148 = vunpack.c.l.b16 %v4116
        %v4149 = vunpack.c.l.b16 %v4117
        %v4150 = vunpack.c.l.b16 %v4118
        %v4151 = vunpack.c.l.b16 %v4119
        %v4152 = vpack.c.b16 %v4137, %v4136
        %v4153 = vpack.c.b16 %v4139, %v4138
        %v4154 = vpack.c.b16 %v4141, %v4140
        %v4155 = vpack.c.b16 %v4143, %v4142
        %v4156 = vpack.c.b16 %v4145, %v4144
        %v4157 = vpack.c.b16 %v4147, %v4146
        %v4158 = vpack.c.b16 %v4149, %v4148
        %v4159 = vpack.c.b16 %v4151, %v4150
        %4168 = vmatprep.subr.bf16.mxu0 0
        %4169 = vmatpush1.bf16.msra.mxu0 %v4152
        %4170 = vmatprep.subr.bf16.mxu0 0
        %4171 = vmatpush1.bf16.msra.mxu0 %v4153
        %4172 = vmatprep.subr.bf16.mxu0 0
        %4173 = vmatpush1.bf16.msra.mxu0 %v4154
        %4174 = vmatprep.subr.bf16.mxu0 0
        %4175 = vmatpush1.bf16.msra.mxu0 %v4155
        %4176 = vmatprep.subr.bf16.mxu0 0
        %4177 = vmatpush1.bf16.msra.mxu0 %v4156
        %4178 = vmatprep.subr.bf16.mxu0 0
        %4179 = vmatpush1.bf16.msra.mxu0 %v4157
        %4180 = vmatprep.subr.bf16.mxu0 0
        %4181 = vmatpush1.bf16.msra.mxu0 %v4158
        %4182 = vmatprep.subr.bf16.mxu0 0
        %4183 = vmatpush1.bf16.msra.mxu0 %v4159
        %4184 = vmatprep.subr.bf16.mxu0 0
        %4185 = vmatpush1.bf16.msra.mxu0 0
        %4186 = vmatprep.subr.bf16.mxu0 0
        %4187 = vmatpush1.bf16.msra.mxu0 0
        %4188 = vmatprep.subr.bf16.mxu0 0
        %4189 = vmatpush1.bf16.msra.mxu0 0
        %4190 = vmatprep.subr.bf16.mxu0 0
        %4191 = vmatpush1.bf16.msra.mxu0 0
        %4192 = vmatprep.subr.bf16.mxu0 0
        %4193 = vmatpush1.bf16.msra.mxu0 0
        %4194 = vmatprep.subr.bf16.mxu0 0
        %4195 = vmatpush1.bf16.msra.mxu0 0
        %4196 = vmatprep.subr.bf16.mxu0 0
        %4197 = vmatpush1.bf16.msra.mxu0 0
        %4198 = vmatprep.subr.bf16.mxu0 0
        %4199 = vmatpush1.bf16.msra.mxu0 0
        %4200 = vmatprep.mubr.bf16.mxu0 0
        %4201 = vmatmul.mubr.bf16.gmra.mrb[0].mxu0 %v4088
        %v4202 = vpop.f32.mrb[0].mxu0
        %v4203 = vadd.f32 0.0, %v4202
        %v4204 = vpop.f32.mrb[0].mxu0
        %v4205 = vpop.f32.mrb[0].mxu0
        %v4206 = vadd.f32 0.0, %v4205
        %v4207 = vpop.f32.mrb[0].mxu0
        %4208 = vmatprep.mubr.bf16.mxu0 0
        %4209 = vmatmul.mubr.bf16.gmra.mrb[0].mxu0 %v4089
        %v4210 = vpop.f32.mrb[0].mxu0
        %v4211 = vadd.f32 0.0, %v4210
        %v4212 = vpop.f32.mrb[0].mxu0
        %v4213 = vpop.f32.mrb[0].mxu0
        %v4214 = vadd.f32 0.0, %v4213
        %v4215 = vpop.f32.mrb[0].mxu0
        %4216 = vmatprep.mubr.bf16.mxu0 0
        %4217 = vmatmul.mubr.bf16.gmra.mrb[0].mxu0 %v4090
        %v4218 = vpop.f32.mrb[0].mxu0
        %v4219 = vadd.f32 0.0, %v4218
        %v4220 = vpop.f32.mrb[0].mxu0
        %v4221 = vpop.f32.mrb[0].mxu0
        %v4222 = vadd.f32 0.0, %v4221
        %v4223 = vpop.f32.mrb[0].mxu0
        %4224 = vmatprep.mubr.bf16.mxu0 0
        %4225 = vmatmul.mubr.bf16.gmra.mrb[0].mxu0 %v4091
        %v4226 = vpop.f32.mrb[0].mxu0
        %v4227 = vadd.f32 0.0, %v4226
        %v4228 = vpop.f32.mrb[0].mxu0
        %v4229 = vpop.f32.mrb[0].mxu0
        %v4230 = vadd.f32 0.0, %v4229
        %v4231 = vpop.f32.mrb[0].mxu0
        %4232 = vmatprep.mubr.bf16.mxu0 0
        %4233 = vmatmul.mubr.bf16.gmra.mrb[0].mxu0 %v4092
        %v4234 = vpop.f32.mrb[0].mxu0
        %v4235 = vadd.f32 0.0, %v4234
        %v4236 = vpop.f32.mrb[0].mxu0
        %v4237 = vpop.f32.mrb[0].mxu0
        %v4238 = vadd.f32 0.0, %v4237
        %v4239 = vpop.f32.mrb[0].mxu0
        %4240 = vmatprep.mubr.bf16.mxu0 0
        %4241 = vmatmul.mubr.bf16.gmra.mrb[0].mxu0 %v4093
        %v4242 = vpop.f32.mrb[0].mxu0
        %v4243 = vadd.f32 0.0, %v4242
        %v4244 = vpop.f32.mrb[0].mxu0
        %v4245 = vpop.f32.mrb[0].mxu0
        %v4246 = vadd.f32 0.0, %v4245
        %v4247 = vpop.f32.mrb[0].mxu0
        %4248 = vmatprep.mubr.bf16.mxu0 0
        %4249 = vmatmul.mubr.bf16.gmra.mrb[0].mxu0 %v4094
        %v4250 = vpop.f32.mrb[0].mxu0
        %v4251 = vadd.f32 0.0, %v4250
        %v4252 = vpop.f32.mrb[0].mxu0
        %v4253 = vpop.f32.mrb[0].mxu0
        %v4254 = vadd.f32 0.0, %v4253
        %v4255 = vpop.f32.mrb[0].mxu0
        %4256 = vmatprep.mubr.bf16.mxu0 0
        %4257 = vmatmul.mubr.bf16.gmra.mrb[0].mxu0 %v4095
        %v4258 = vpop.f32.mrb[0].mxu0
        %v4259 = vadd.f32 0.0, %v4258
        %v4260 = vpop.f32.mrb[0].mxu0
        %v4261 = vpop.f32.mrb[0].mxu0
        %v4262 = vadd.f32 0.0, %v4261
        %v4263 = vpop.f32.mrb[0].mxu0
        %4264 = vmatprep.mubr.bf16.mxu0 0
        %4265 = vmatmul.mubr.bf16.gmra.mrb[0].mxu0 %v4096
        %v4266 = vpop.f32.mrb[0].mxu0
        %v4267 = vadd.f32 0.0, %v4266
        %v4268 = vpop.f32.mrb[0].mxu0
        %v4269 = vpop.f32.mrb[0].mxu0
        %v4270 = vadd.f32 0.0, %v4269
        %v4271 = vpop.f32.mrb[0].mxu0
        %4272 = vmatprep.mubr.bf16.mxu0 0
        %4273 = vmatmul.mubr.bf16.gmra.mrb[0].mxu0 %v4097
        %v4274 = vpop.f32.mrb[0].mxu0
        %v4275 = vadd.f32 0.0, %v4274
        %v4276 = vpop.f32.mrb[0].mxu0
        %v4277 = vpop.f32.mrb[0].mxu0
        %v4278 = vadd.f32 0.0, %v4277
        %v4279 = vpop.f32.mrb[0].mxu0
        %4280 = vmatprep.mubr.bf16.mxu0 0
        %4281 = vmatmul.mubr.bf16.gmra.mrb[0].mxu0 %v4098
        %v4282 = vpop.f32.mrb[0].mxu0
        %v4283 = vadd.f32 0.0, %v4282
        %v4284 = vpop.f32.mrb[0].mxu0
        %v4285 = vpop.f32.mrb[0].mxu0
        %v4286 = vadd.f32 0.0, %v4285
        %v4287 = vpop.f32.mrb[0].mxu0
        %4288 = vmatprep.mubr.bf16.mxu0 0
        %4289 = vmatmul.mubr.bf16.gmra.mrb[0].mxu0 %v4099
        %v4290 = vpop.f32.mrb[0].mxu0
        %v4291 = vadd.f32 0.0, %v4290
        %v4292 = vpop.f32.mrb[0].mxu0
        %v4293 = vpop.f32.mrb[0].mxu0
        %v4294 = vadd.f32 0.0, %v4293
        %v4295 = vpop.f32.mrb[0].mxu0
        %4296 = vmatprep.mubr.bf16.mxu0 0
        %4297 = vmatmul.mubr.bf16.gmra.mrb[0].mxu0 %v4100
        %v4298 = vpop.f32.mrb[0].mxu0
        %v4299 = vadd.f32 0.0, %v4298
        %v4300 = vpop.f32.mrb[0].mxu0
        %v4301 = vpop.f32.mrb[0].mxu0
        %v4302 = vadd.f32 0.0, %v4301
        %v4303 = vpop.f32.mrb[0].mxu0
        %4304 = vmatprep.mubr.bf16.mxu0 0
        %4305 = vmatmul.mubr.bf16.gmra.mrb[0].mxu0 %v4101
        %v4306 = vpop.f32.mrb[0].mxu0
        %v4307 = vadd.f32 0.0, %v4306
        %v4308 = vpop.f32.mrb[0].mxu0
        %v4309 = vpop.f32.mrb[0].mxu0
        %v4310 = vadd.f32 0.0, %v4309
        %v4311 = vpop.f32.mrb[0].mxu0
        %4312 = vmatprep.mubr.bf16.mxu0 0
        %4313 = vmatmul.mubr.bf16.gmra.mrb[0].mxu0 %v4102
        %v4314 = vpop.f32.mrb[0].mxu0
        %v4315 = vadd.f32 0.0, %v4314
        %v4316 = vpop.f32.mrb[0].mxu0
        %v4317 = vpop.f32.mrb[0].mxu0
        %v4318 = vadd.f32 0.0, %v4317
        %v4319 = vpop.f32.mrb[0].mxu0
        %4320 = vmatprep.mubr.bf16.mxu0 0
        %4321 = vmatmul.mubr.bf16.gmra.mrb[0].mxu0 %v4103
        %v4322 = vpop.f32.mrb[0].mxu0
        %v4323 = vadd.f32 0.0, %v4322
        %v4324 = vpop.f32.mrb[0].mxu0
        %v4325 = vpop.f32.mrb[0].mxu0
        %v4326 = vadd.f32 0.0, %v4325
        %v4327 = vpop.f32.mrb[0].mxu0
        %4328 = vdwg.mxu0
        %v4329 = vld [vmem:[%s10] sm:$0x1]
        %v4331 = vlaneseq
        %v4332 = vshrl.u32 %v4331, 7
        %v4333 = vsub.s32 0, %v4332
        %v4334 = vrot.slane %v4329, %v4333
        %v4336 = vmul.f32 %v4203, %v4334
        %v4337 = vmul.f32 %v4206, %v4334
        %v4338 = vmul.f32 %v4211, %v4334
        %v4339 = vmul.f32 %v4214, %v4334
        %v4340 = vmul.f32 %v4219, %v4334
        %v4341 = vmul.f32 %v4222, %v4334
        %v4342 = vmul.f32 %v4227, %v4334
        %v4343 = vmul.f32 %v4230, %v4334
        %v4344 = vmul.f32 %v4235, %v4334
        %v4345 = vmul.f32 %v4238, %v4334
        %v4346 = vmul.f32 %v4243, %v4334
        %v4347 = vmul.f32 %v4246, %v4334
        %v4348 = vmul.f32 %v4251, %v4334
        %v4349 = vmul.f32 %v4254, %v4334
        %v4350 = vmul.f32 %v4259, %v4334
        %v4351 = vmul.f32 %v4262, %v4334
        %v4352 = vmul.f32 %v4267, %v4334
        %v4353 = vmul.f32 %v4270, %v4334
        %v4354 = vmul.f32 %v4275, %v4334
        %v4355 = vmul.f32 %v4278, %v4334
        %v4356 = vmul.f32 %v4283, %v4334
        %v4357 = vmul.f32 %v4286, %v4334
        %v4358 = vmul.f32 %v4291, %v4334
        %v4359 = vmul.f32 %v4294, %v4334
        %v4360 = vmul.f32 %v4299, %v4334
        %v4361 = vmul.f32 %v4302, %v4334
        %v4362 = vmul.f32 %v4307, %v4334
        %v4363 = vmul.f32 %v4310, %v4334
        %v4364 = vmul.f32 %v4315, %v4334
        %v4365 = vmul.f32 %v4318, %v4334
        %v4366 = vmul.f32 %v4323, %v4334
        %v4367 = vmul.f32 %v4326, %v4334
        %v4368 = vld [vmem:[%s11] sm:$0x1]
        %v4370 = vlaneseq
        %v4371 = vshrl.u32 %v4370, 7
        %v4372 = vsub.s32 0, %v4371
        %v4373 = vrot.slane %v4368, %v4372
        %v4375 = vadd.f32 %v4336, %v4373
        %v4376 = vadd.f32 %v4337, %v4373
        %v4377 = vadd.f32 %v4338, %v4373
        %v4378 = vadd.f32 %v4339, %v4373
        %v4379 = vadd.f32 %v4340, %v4373
        %v4380 = vadd.f32 %v4341, %v4373
        %v4381 = vadd.f32 %v4342, %v4373
        %v4382 = vadd.f32 %v4343, %v4373
        %v4383 = vadd.f32 %v4344, %v4373
        %v4384 = vadd.f32 %v4345, %v4373
        %v4385 = vadd.f32 %v4346, %v4373
        %v4386 = vadd.f32 %v4347, %v4373
        %v4387 = vadd.f32 %v4348, %v4373
        %v4388 = vadd.f32 %v4349, %v4373
        %v4389 = vadd.f32 %v4350, %v4373
        %v4390 = vadd.f32 %v4351, %v4373
        %v4391 = vadd.f32 %v4352, %v4373
        %v4392 = vadd.f32 %v4353, %v4373
        %v4393 = vadd.f32 %v4354, %v4373
        %v4394 = vadd.f32 %v4355, %v4373
        %v4395 = vadd.f32 %v4356, %v4373
        %v4396 = vadd.f32 %v4357, %v4373
        %v4397 = vadd.f32 %v4358, %v4373
        %v4398 = vadd.f32 %v4359, %v4373
        %v4399 = vadd.f32 %v4360, %v4373
        %v4400 = vadd.f32 %v4361, %v4373
        %v4401 = vadd.f32 %v4362, %v4373
        %v4402 = vadd.f32 %v4363, %v4373
        %v4403 = vadd.f32 %v4364, %v4373
        %v4404 = vadd.f32 %v4365, %v4373
        %v4405 = vadd.f32 %v4366, %v4373
        %v4406 = vadd.f32 %v4367, %v4373
        %v4407 = vunpack.c.l.bf16 %v687
        %v4408 = vunpack.c.l.bf16 %v688
        %v4409 = vunpack.c.l.bf16 %v689
        %v4410 = vunpack.c.l.bf16 %v690
        %v4411 = vunpack.c.l.bf16 %v691
        %v4412 = vunpack.c.l.bf16 %v692
        %v4413 = vunpack.c.l.bf16 %v693
        %v4414 = vunpack.c.l.bf16 %v694
        %v4415 = vunpack.c.l.bf16 %v695
        %v4416 = vunpack.c.l.bf16 %v696
        %v4417 = vunpack.c.l.bf16 %v697
        %v4418 = vunpack.c.l.bf16 %v698
        %v4419 = vunpack.c.l.bf16 %v699
        %v4420 = vunpack.c.l.bf16 %v700
        %v4421 = vunpack.c.l.bf16 %v701
        %v4422 = vunpack.c.l.bf16 %v702
        %v4423 = vunpack.c.l.bf16 %v703
        %v4424 = vunpack.c.l.bf16 %v704
        %v4425 = vunpack.c.l.bf16 %v705
        %v4426 = vunpack.c.l.bf16 %v706
        %v4427 = vunpack.c.l.bf16 %v707
        %v4428 = vunpack.c.l.bf16 %v708
        %v4429 = vunpack.c.l.bf16 %v709
        %v4430 = vunpack.c.l.bf16 %v710
        %v4431 = vunpack.c.l.bf16 %v711
        %v4432 = vunpack.c.l.bf16 %v712
        %v4433 = vunpack.c.l.bf16 %v713
        %v4434 = vunpack.c.l.bf16 %v714
        %v4435 = vunpack.c.l.bf16 %v715
        %v4436 = vunpack.c.l.bf16 %v716
        %v4437 = vunpack.c.l.bf16 %v717
        %v4438 = vunpack.c.l.bf16 %v718
        %v4439 = vadd.f32 %v4375, %v4407
        %v4440 = vadd.f32 %v4376, %v4408
        %v4441 = vadd.f32 %v4377, %v4409
        %v4442 = vadd.f32 %v4378, %v4410
        %v4443 = vadd.f32 %v4379, %v4411
        %v4444 = vadd.f32 %v4380, %v4412
        %v4445 = vadd.f32 %v4381, %v4413
        %v4446 = vadd.f32 %v4382, %v4414
        %v4447 = vadd.f32 %v4383, %v4415
        %v4448 = vadd.f32 %v4384, %v4416
        %v4449 = vadd.f32 %v4385, %v4417
        %v4450 = vadd.f32 %v4386, %v4418
        %v4451 = vadd.f32 %v4387, %v4419
        %v4452 = vadd.f32 %v4388, %v4420
        %v4453 = vadd.f32 %v4389, %v4421
        %v4454 = vadd.f32 %v4390, %v4422
        %v4455 = vadd.f32 %v4391, %v4423
        %v4456 = vadd.f32 %v4392, %v4424
        %v4457 = vadd.f32 %v4393, %v4425
        %v4458 = vadd.f32 %v4394, %v4426
        %v4459 = vadd.f32 %v4395, %v4427
        %v4460 = vadd.f32 %v4396, %v4428
        %v4461 = vadd.f32 %v4397, %v4429
        %v4462 = vadd.f32 %v4398, %v4430
        %v4463 = vadd.f32 %v4399, %v4431
        %v4464 = vadd.f32 %v4400, %v4432
        %v4465 = vadd.f32 %v4401, %v4433
        %v4466 = vadd.f32 %v4402, %v4434
        %v4467 = vadd.f32 %v4403, %v4435
        %v4468 = vadd.f32 %v4404, %v4436
        %v4469 = vadd.f32 %v4405, %v4437
        %v4470 = vadd.f32 %v4406, %v4438
        %v4471 = vmax.f32 %v4439, 0.0
        %v4472 = vmax.f32 %v4440, 0.0
        %v4473 = vmax.f32 %v4441, 0.0
        %v4474 = vmax.f32 %v4442, 0.0
        %v4475 = vmax.f32 %v4443, 0.0
        %v4476 = vmax.f32 %v4444, 0.0
        %v4477 = vmax.f32 %v4445, 0.0
        %v4478 = vmax.f32 %v4446, 0.0
        %v4479 = vmax.f32 %v4447, 0.0
        %v4480 = vmax.f32 %v4448, 0.0
        %v4481 = vmax.f32 %v4449, 0.0
        %v4482 = vmax.f32 %v4450, 0.0
        %v4483 = vmax.f32 %v4451, 0.0
        %v4484 = vmax.f32 %v4452, 0.0
        %v4485 = vmax.f32 %v4453, 0.0
        %v4486 = vmax.f32 %v4454, 0.0
        %v4487 = vmax.f32 %v4455, 0.0
        %v4488 = vmax.f32 %v4456, 0.0
        %v4489 = vmax.f32 %v4457, 0.0
        %v4490 = vmax.f32 %v4458, 0.0
        %v4491 = vmax.f32 %v4459, 0.0
        %v4492 = vmax.f32 %v4460, 0.0
        %v4493 = vmax.f32 %v4461, 0.0
        %v4494 = vmax.f32 %v4462, 0.0
        %v4495 = vmax.f32 %v4463, 0.0
        %v4496 = vmax.f32 %v4464, 0.0
        %v4497 = vmax.f32 %v4465, 0.0
        %v4498 = vmax.f32 %v4466, 0.0
        %v4499 = vmax.f32 %v4467, 0.0
        %v4500 = vmax.f32 %v4468, 0.0
        %v4501 = vmax.f32 %v4469, 0.0
        %v4502 = vmax.f32 %v4470, 0.0
        %v4503 = vpack.c.bf16 %v4472, %v4471
        %v4504 = vpack.c.bf16 %v4474, %v4473
        %v4505 = vpack.c.bf16 %v4476, %v4475
        %v4506 = vpack.c.bf16 %v4478, %v4477
        %v4507 = vpack.c.bf16 %v4480, %v4479
        %v4508 = vpack.c.bf16 %v4482, %v4481
        %v4509 = vpack.c.bf16 %v4484, %v4483
        %v4510 = vpack.c.bf16 %v4486, %v4485
        %v4511 = vpack.c.bf16 %v4488, %v4487
        %v4512 = vpack.c.bf16 %v4490, %v4489
        %v4513 = vpack.c.bf16 %v4492, %v4491
        %v4514 = vpack.c.bf16 %v4494, %v4493
        %v4515 = vpack.c.bf16 %v4496, %v4495
        %v4516 = vpack.c.bf16 %v4498, %v4497
        %v4517 = vpack.c.bf16 %v4500, %v4499
        %v4518 = vpack.c.bf16 %v4502, %v4501
        %v4535 = vunpack.c.l.b16 %v4503
        %v4536 = vunpack.c.h.b16 %v4503
        %v4537 = vunpack.c.l.b16 %v4504
        %v4538 = vunpack.c.h.b16 %v4504
        %v4539 = vunpack.c.l.b16 %v4505
        %v4540 = vunpack.c.h.b16 %v4505
        %v4541 = vunpack.c.l.b16 %v4506
        %v4542 = vunpack.c.h.b16 %v4506
        %v4543 = vunpack.c.l.b16 %v4507
        %v4544 = vunpack.c.h.b16 %v4507
        %v4545 = vunpack.c.l.b16 %v4508
        %v4546 = vunpack.c.h.b16 %v4508
        %v4547 = vunpack.c.l.b16 %v4509
        %v4548 = vunpack.c.h.b16 %v4509
        %v4549 = vunpack.c.l.b16 %v4510
        %v4550 = vunpack.c.h.b16 %v4510
        %v4551 = vunpack.c.l.b16 %v4511
        %v4552 = vunpack.c.h.b16 %v4511
        %v4553 = vunpack.c.l.b16 %v4512
        %v4554 = vunpack.c.h.b16 %v4512
        %v4555 = vunpack.c.l.b16 %v4513
        %v4556 = vunpack.c.h.b16 %v4513
        %v4557 = vunpack.c.l.b16 %v4514
        %v4558 = vunpack.c.h.b16 %v4514
        %v4559 = vunpack.c.l.b16 %v4515
        %v4560 = vunpack.c.h.b16 %v4515
        %v4561 = vunpack.c.l.b16 %v4516
        %v4562 = vunpack.c.h.b16 %v4516
        %v4563 = vunpack.c.l.b16 %v4517
        %v4564 = vunpack.c.h.b16 %v4517
        %v4565 = vunpack.c.l.b16 %v4518
        %v4566 = vunpack.c.h.b16 %v4518
        %v4567 = vpack.c.b16 %v4535, %v4535
        %v4568 = vpack.c.b16 %v4536, %v4536
        %v4569 = vpack.c.b16 %v4537, %v4537
        %v4570 = vpack.c.b16 %v4538, %v4538
        %v4571 = vpack.c.b16 %v4539, %v4539
        %v4572 = vpack.c.b16 %v4540, %v4540
        %v4573 = vpack.c.b16 %v4541, %v4541
        %v4574 = vpack.c.b16 %v4542, %v4542
        %v4575 = vpack.c.b16 %v4543, %v4543
        %v4576 = vpack.c.b16 %v4544, %v4544
        %v4577 = vpack.c.b16 %v4545, %v4545
        %v4578 = vpack.c.b16 %v4546, %v4546
        %v4579 = vpack.c.b16 %v4547, %v4547
        %v4580 = vpack.c.b16 %v4548, %v4548
        %v4581 = vpack.c.b16 %v4549, %v4549
        %v4582 = vpack.c.b16 %v4550, %v4550
        %v4583 = vpack.c.b16 %v4551, %v4551
        %v4584 = vpack.c.b16 %v4552, %v4552
        %v4585 = vpack.c.b16 %v4553, %v4553
        %v4586 = vpack.c.b16 %v4554, %v4554
        %v4587 = vpack.c.b16 %v4555, %v4555
        %v4588 = vpack.c.b16 %v4556, %v4556
        %v4589 = vpack.c.b16 %v4557, %v4557
        %v4590 = vpack.c.b16 %v4558, %v4558
        %v4591 = vpack.c.b16 %v4559, %v4559
        %v4592 = vpack.c.b16 %v4560, %v4560
        %v4593 = vpack.c.b16 %v4561, %v4561
        %v4594 = vpack.c.b16 %v4562, %v4562
        %v4595 = vpack.c.b16 %v4563, %v4563
        %v4596 = vpack.c.b16 %v4564, %v4564
        %v4597 = vpack.c.b16 %v4565, %v4565
        %v4598 = vpack.c.b16 %v4566, %v4566
        %4631 = vst [vmem:[%s603] sm:$0xf] %v4567
        %4632 = vst [vmem:[%s603 + $0x4] sm:$0xf] %v4568
        %4633 = vst [vmem:[%s603 + $0x8] sm:$0xf] %v4569
        %4634 = vst [vmem:[%s603 + $0xc] sm:$0xf] %v4570
        %4635 = vst [vmem:[%s603 + $0x10] sm:$0xf] %v4571
        %4636 = vst [vmem:[%s603 + $0x14] sm:$0xf] %v4572
        %4637 = vst [vmem:[%s603 + $0x18] sm:$0xf] %v4573
        %4638 = vst [vmem:[%s603 + $0x1c] sm:$0xf] %v4574
        %4639 = vst [vmem:[%s603 + $0x20] sm:$0xf] %v4575
        %4640 = vst [vmem:[%s603 + $0x24] sm:$0xf] %v4576
        %4641 = vst [vmem:[%s603 + $0x28] sm:$0xf] %v4577
        %4642 = vst [vmem:[%s603 + $0x2c] sm:$0xf] %v4578
        %4643 = vst [vmem:[%s603 + $0x30] sm:$0xf] %v4579
        %4644 = vst [vmem:[%s603 + $0x34] sm:$0xf] %v4580
        %4645 = vst [vmem:[%s603 + $0x38] sm:$0xf] %v4581
        %4646 = vst [vmem:[%s603 + $0x3c] sm:$0xf] %v4582
        %4647 = vst [vmem:[%s603 + $0x40] sm:$0xf] %v4583
        %4648 = vst [vmem:[%s603 + $0x44] sm:$0xf] %v4584
        %4649 = vst [vmem:[%s603 + $0x48] sm:$0xf] %v4585
        %4650 = vst [vmem:[%s603 + $0x4c] sm:$0xf] %v4586
        %4651 = vst [vmem:[%s603 + $0x50] sm:$0xf] %v4587
        %4652 = vst [vmem:[%s603 + $0x54] sm:$0xf] %v4588
        %4653 = vst [vmem:[%s603 + $0x58] sm:$0xf] %v4589
        %4654 = vst [vmem:[%s603 + $0x5c] sm:$0xf] %v4590
        %4655 = vst [vmem:[%s603 + $0x60] sm:$0xf] %v4591
        %4656 = vst [vmem:[%s603 + $0x64] sm:$0xf] %v4592
        %4657 = vst [vmem:[%s603 + $0x68] sm:$0xf] %v4593
        %4658 = vst [vmem:[%s603 + $0x6c] sm:$0xf] %v4594
        %4659 = vst [vmem:[%s603 + $0x70] sm:$0xf] %v4595
        %4660 = vst [vmem:[%s603 + $0x74] sm:$0xf] %v4596
        %4661 = vst [vmem:[%s603 + $0x78] sm:$0xf] %v4597
        %4662 = vst [vmem:[%s603 + $0x7c] sm:$0xf] %v4598
        %s4663 = sand.u32 %s345, 1
        %s4664 = scalar_lea.sflag [#allocation5], %s4663
        %s4665 = sand.u32 %s345, 1
        %s4666 = smul.addr %s4665, 128
        %s4667 = scalar_lea.vmem [#allocation14], %s4666
        // Predicated region
        $region101: #{tpu_custom_call.1} parent=67 // pred_check
          %p4668 = pneg %p355
        $region102: #{tpu_custom_call.1} parent=67 // pred_check_branch
          %4670 = sbr.rel (%p4668) target = $region104
        $region103: #{tpu_custom_call.1} parent=67 // pred_region
          %s4671 = smul.u32 16, %s39
          %s4673 = ssub.s32 2048, 2048
          %4674 = vsyncadd %s4664, %s4673
          %s4675 = smul.addr %s4671, 2
          %s4676 = smul.addr %s38, 32
          %s4677 = sadd.s32 %s4675, %s4676
          %s4678 = smul.addr %s4677, 64
          %s4679 = scalar_lea.hbm %s12, %s4678
          %s4680 = sshll.u32 %s4667, 4
          %s4681 = int_to_ptr.vmem [resolvable:$true] %s4680
          %4686 = dma.vmem_to_hbm [thread:$0]  %s4681, 2048, %s4679, %s4664, 64, 64, 4
        $region104: #{tpu_custom_call.1} parent=67 // pred_fallthru
          _
      $region68: #{tpu_custom_call.1} parent=5 // pred_fallthru
        _
      %p4687 = scmp.le.s32.totalorder 2, %s29
      // Predicated region
      $region105: #{tpu_custom_call.1} parent=5 // pred_check
        %p4688 = pneg %p4687
      $region106: #{tpu_custom_call.1} parent=5 // pred_check_branch
        %4690 = sbr.rel (%p4688) target = $region108
      $region107: #{tpu_custom_call.1} parent=5 // pred_region
        %s4691 = ssub.s32 %s29, 2
        // Predicated region
        $region109: #{tpu_custom_call.1} parent=107 // pred_check
          %p4692 = pneg %p361
        $region110: #{tpu_custom_call.1} parent=107 // pred_check_branch
          %4694 = sbr.rel (%p4692) target = $region112
        $region111: #{tpu_custom_call.1} parent=107 // pred_region
          %s4695 = sand.u32 %s346, 1
          %s4696 = scalar_lea.sflag [#allocation5], %s4695
          %s4697 = sand.u32 %s346, 1
          %s4698 = smul.addr %s4697, 128
          %s4699 = scalar_lea.vmem [#allocation14], %s4698
          %4700 = dma.done %s4696, 2048
        $region112: #{tpu_custom_call.1} parent=107 // pred_fallthru
          _
      $region108: #{tpu_custom_call.1} parent=5 // pred_fallthru
        _
    $region6: #{tpu_custom_call.1} parent=1 // loop_footer
      %s33 = sadd.s32 1, %s29
    $region7: #{tpu_custom_call.1} parent=1 // loop_footer_branch
      %28 = sbr.rel target = $region3
    $region8: #{tpu_custom_call.1} parent=1 // loop_exit
      _
    %4701 = vsyncpa [#allocation4], 1
    %s4702 = scalar_lea.sflag [#allocation4], 1
    %4703 = vsyncpa %s4702, 1
    %4704 = vsyncpa [#allocation7], 1
    %s4705 = scalar_lea.sflag [#allocation7], 1
    %4706 = vsyncpa %s4705, 1
    %4707 = vsyncpa [#allocation10], 1
    %4708 = vsyncpa [#allocation13], 1
    %4709 = vsyncpa [#allocation5], 1
    %s4710 = scalar_lea.sflag [#allocation5], 1
    %4711 = vsyncpa %s4710, 1

</llo_original>
